<compile_context>
chip_gen: v6e
topology: v6e:2x2x1
jax: 0.10.0
libtpu: 0.0.40
codegen_flags: <defaults>
</compile_context>

<pallas_src>
import functools

import jax
import jax.numpy as jnp
import numpy as np
from jax.experimental import pallas as pl
from jax.experimental.pallas import tpu as pltpu

# Keep f32 matmuls exact everywhere (reference, wrapper weight-folding and the
# in-kernel dots) so the folded-weight rounding-order change stays well inside
# the 1e-5 tolerance.  Cost is irrelevant at these contraction sizes.
jax.config.update("jax_default_matmul_precision", "highest")


def _value_synapse_kernel(xin_ref, wbig_ref, bbig_ref, whh_ref, bhhn_ref,
                          h0_ref, v_ref, hlast_ref, *, B):
    """Whole forward in one kernel invocation (everything resident in VMEM).

    xin_ref : (T*B, D)    time-major input, flattened over (T, B)
    wbig    : (D, 4H+1)   [w_rep@wih_cat | wrep_z@w_val.T | wrep_z@b_val.T]
    bbig    : (1, 4H+1)   matching fused bias (GRU r/z hidden biases + output
                          bias already folded in)
    whh     : (H, 3H)     GRU hidden weights, gates concatenated (r, z, n)
    bhhn    : (1, H)      b_hn (must stay inside r * (gh_n + b_hn))
    h0      : (1, H)      initial_state
    v_ref   : (B, T)      output values, lane-dense along T
    hlast   : (B, H)      output last GRU hidden state
    """
    TB = xin_ref.shape[0]
    T = TB // B
    H = h0_ref.shape[-1]

    # ---- hoisted loop-invariant loads ----
    # whh_cat is the loop-invariant RHS of every per-step matmul.
    # TODO(synk): confirm in the bundle dump that Mosaic keeps this (H,3H) RHS
    # staged in MXU weight registers across the unrolled steps; if not, drive
    # it explicitly with pltpu.matmul_push_rhs / matmul_acc_lhs / matmul_pop.
    whh_cat = whh_ref[...]          # (H, 3H)
    bhh_n = bhhn_ref[...]           # (1, H)

    # ---- ONE fused batched precompute over all timesteps (single MXU push) ----
    big = jnp.dot(xin_ref[...], wbig_ref[...],
                  preferred_element_type=jnp.float32) + bbig_ref[...]       # (T*B, 4H+1)
    gx = big[:, :3 * H]             # GRU input-side gate preactivations (r, z, n)
    xM = big[:, 3 * H:4 * H]        # x_orig @ w_val.T   (value readout operand)
    vconst = big[:, 4 * H:]         # sum(x_orig * b_val) + bias             (T*B, 1)

    # ---- serial GRU recurrence: only h-dependent work; fully unrolled ----
    h = jnp.broadcast_to(h0_ref[...], (B, H))
    vts = []
    for t in range(T):
        lo = t * B
        # per-step value contribution uses the PRE-step hidden
        # (== vstack([h0, w])[t]); kept in vregs, off the h critical path.
        vts.append(jnp.sum(xM[lo:lo + B, :] * h, axis=-1, keepdims=True)
                   + vconst[lo:lo + B, :])                                   # (B, 1)
        gh = jnp.dot(h, whh_cat, preferred_element_type=jnp.float32)         # (B, 3H)
        # single-EUP sigmoid: sigmoid(x) == 0.5 * tanh(0.5 * x) + 0.5
        rz = 0.5 * jnp.tanh(0.5 * (gx[lo:lo + B, :2 * H] + gh[:, :2 * H])) + 0.5
        r = rz[:, :H]
        z = rz[:, H:]
        n = jnp.tanh(gx[lo:lo + B, 2 * H:] + r * (gh[:, 2 * H:] + bhh_n))
        h = (1.0 - z) * n + z * h
    # TODO(synk): for large T switch the unrolled Python loop to
    # lax.fori_loop(..., unroll=4..8) to cap code size / vreg live ranges.

    hlast_ref[...] = h
    # single lane-dense store (T on the lane axis); wrapper transposes.
    v_ref[...] = jnp.concatenate(vts, axis=1)                                # (B, T)


@jax.jit
def value_synapse_forward(xin, params):
    T, B, D = xin.shape
    H = params["h0"].shape[-1]
    f32 = jnp.float32

    # ---- weight folding (tiny XLA-side matmuls, O(D*R*4H)) ----
    # fused GRU gate weights, gate order (r, z, n)
    wih_cat = jnp.concatenate(
        [params["w_ih"][0], params["w_ih"][1], params["w_ih"][2]], axis=-1)   # (R, 3H)
    whh_cat = jnp.concatenate(
        [params["w_hh"][0], params["w_hh"][1], params["w_hh"][2]], axis=-1)   # (H, 3H)
    # r/z hidden biases fold into the input-side preactivation; the n-gate
    # hidden bias must stay inside r * (gh_n + b_hn)
    b_gx = jnp.concatenate(
        [params["b_ih"][0] + params["b_hh"][0],
         params["b_ih"][1] + params["b_hh"][1],
         params["b_ih"][2]], axis=-1)                                         # (1, 3H)
    bhh_n = params["b_hh"][2]                                                 # (1, H)

    wrep = params["w_rep"]                                                    # (D, R)
    wrep_z = wrep.at[-1, :].set(0.0)   # zeroing last input channel == zero last row
    wval_T = params["w_val"].T                                                # (R, H)
    b_rep = params["b_rep"]                                                   # (1, R)
    b_val = params["b_val"]                                                   # (1, R)

    # Fold representation + GRU-input + value Linears into ONE (D, 4H+1) RHS:
    #   gx     = xin @ (w_rep  @ wih_cat) + (b_rep @ wih_cat + b_gx)
    #   xM     = xin @ (wrep_z @ wval_T ) + (b_rep @ wval_T)
    #   vconst = xin @ (wrep_z @ b_val.T) + (b_rep @ b_val.T + bias)
    W_big = jnp.concatenate(
        [wrep @ wih_cat, wrep_z @ wval_T, wrep_z @ b_val.T], axis=-1)         # (D, 4H+1)
    b_big = jnp.concatenate(
        [b_rep @ wih_cat + b_gx, b_rep @ wval_T,
         b_rep @ b_val.T + params["bias"][None, :]], axis=-1)                 # (1, 4H+1)

    xin_flat = xin.reshape(T * B, D)

    # Explicit VMEM budget (everything whole-resident, no grid): resident peak
    # plus generous headroom, capped well under every generation's limit.
    resident = 4 * (T * B * (D + 4 * H + 2) + (D + 1) * (4 * H + 1)
                    + 3 * H * H + 2 * H + B * (T + H))
    vmem_limit = int(min(max(8 * resident, 1 << 20), 32 << 20))

    vmem = pl.BlockSpec(memory_space=pltpu.MemorySpace.VMEM)

    v_bt, h_last = pl.pallas_call(
        functools.partial(_value_synapse_kernel, B=B),
        out_shape=(
            jax.ShapeDtypeStruct((B, T), f32),
            jax.ShapeDtypeStruct((B, H), f32),
        ),
        in_specs=[vmem] * 6,
        out_specs=(vmem, vmem),
        compiler_params=pltpu.CompilerParams(vmem_limit_bytes=vmem_limit),
    )(xin_flat, W_big, b_big, whh_cat, bhh_n, params["h0"])

    # (B, T) -> (T, B, 1); hidden returned as (num_layers=1, B, H) like nn.GRU
    return jnp.transpose(v_bt)[:, :, None], h_last[None]


def init_params(key, D, R, H):
    """Deterministic synthetic parameters (shapes match the module's __init__).

    The module's reset() zeroes representation.bias, value.bias, self.bias and
    initial_state at init; here they are given small nonzero values (as after
    training) so the fused-bias / vconst / h0-broadcast paths are actually
    exercised by the correctness check.
    """
    ks = jax.random.split(key, 10)
    s = 0.3
    return dict(
        w_rep=jax.random.normal(ks[0], (D, R), jnp.float32) * s,
        b_rep=jax.random.normal(ks[1], (1, R), jnp.float32) * s,
        w_ih=jax.random.normal(ks[2], (3, R, H), jnp.float32) * s,   # gates (r, z, n)
        w_hh=jax.random.normal(ks[3], (3, H, H), jnp.float32) * s,
        b_ih=jax.random.normal(ks[4], (3, 1, H), jnp.float32) * s,
        b_hh=jax.random.normal(ks[5], (3, 1, H), jnp.float32) * s,
        w_val=jax.random.normal(ks[6], (H, R), jnp.float32) * s,
        b_val=jax.random.normal(ks[7], (1, R), jnp.float32) * s,
        h0=jax.random.normal(ks[8], (1, H), jnp.float32) * s,        # initial_state
        bias=jax.random.normal(ks[9], (1,), jnp.float32) * s,        # scalar output bias
    )


def reference_forward(xin, params):
    """Pure-JAX mirror of the PyTorch forward (for correctness check)."""
    T, B, D = xin.shape
    H = params["h0"].shape[-1]

    x = xin @ params["w_rep"] + params["b_rep"]                 # (T, B, R)
    xinc = xin.at[:, :, -1].set(0.0)
    x_orig = xinc @ params["w_rep"] + params["b_rep"]           # (T, B, R)

    h = jnp.broadcast_to(params["h0"], (B, H))
    hs = [h]
    for t in range(T):
        x_t = x[t]
        r = jax.nn.sigmoid(x_t @ params["w_ih"][0] + params["b_ih"][0]
                           + h @ params["w_hh"][0] + params["b_hh"][0])
        z = jax.nn.sigmoid(x_t @ params["w_ih"][1] + params["b_ih"][1]
                           + h @ params["w_hh"][1] + params["b_hh"][1])
        n = jnp.tanh(x_t @ params["w_ih"][2] + params["b_ih"][2]
                     + r * (h @ params["w_hh"][2] + params["b_hh"][2]))
        h = (1.0 - z) * n + z * h
        hs.append(h)
    Hs = jnp.stack(hs)                                          # (T+1, B, H)
    W = Hs @ params["w_val"] + params["b_val"]                  # (T+1, B, R)
    V = jnp.sum(x_orig * W[:-1], axis=-1)[..., None] + params["bias"]
    return V, h[None]


if __name__ == "__main__":
    # small shapes consistent with the module's forward:
    # seq T=8, batch B=2, input_size D=4, representation_size R=8, hidden H=32
    T, B, D, R, H = 8, 2, 4, 8, 32

    key = jax.random.PRNGKey(0)
    k_params, k_x = jax.random.split(key)
    params = init_params(k_params, D, R, H)
    xin = jax.random.normal(k_x, (T, B, D), jnp.float32)

    V, hidden = value_synapse_forward(xin, params)
    jax.block_until_ready((V, hidden))

    V_ref, hidden_ref = reference_forward(xin, params)
    np.testing.assert_allclose(np.asarray(V), np.asarray(V_ref), rtol=1e-5, atol=1e-5)
    np.testing.assert_allclose(np.asarray(hidden), np.asarray(hidden_ref),
                               rtol=1e-5, atol=1e-5)

    assert V.shape == (T, B, 1) and hidden.shape == (1, B, H)
    print("KERNEL_OK")
</pallas_src>

<mosaic_0001>
module attributes {stable_mosaic.version = 11 : i64} {
  func.func @_value_synapse_kernel(%arg0: memref<16x4xf32, #tpu.memory_space<vmem>>, %arg1: memref<4x129xf32, #tpu.memory_space<vmem>>, %arg2: memref<1x129xf32, #tpu.memory_space<vmem>>, %arg3: memref<32x96xf32, #tpu.memory_space<vmem>>, %arg4: memref<1x32xf32, #tpu.memory_space<vmem>>, %arg5: memref<1x32xf32, #tpu.memory_space<vmem>>, %arg6: memref<2x8xf32, #tpu.memory_space<vmem>>, %arg7: memref<2x32xf32, #tpu.memory_space<vmem>>) attributes {dimension_semantics = [], scalar_prefetch = 0 : i64, scratch_operands = 0 : i64, tpu.core_type = #tpu.core_type<tc>} {
    %c0 = arith.constant 0 : index
    %c0_0 = arith.constant 0 : index
    %0 = vector.load %arg3[%c0, %c0_0] : memref<32x96xf32, #tpu.memory_space<vmem>>, vector<32x96xf32>
    %c0_1 = arith.constant 0 : index
    %c0_2 = arith.constant 0 : index
    %1 = vector.load %arg4[%c0_1, %c0_2] : memref<1x32xf32, #tpu.memory_space<vmem>>, vector<1x32xf32>
    %c0_3 = arith.constant 0 : index
    %c0_4 = arith.constant 0 : index
    %2 = vector.load %arg0[%c0_3, %c0_4] : memref<16x4xf32, #tpu.memory_space<vmem>>, vector<16x4xf32>
    %c0_5 = arith.constant 0 : index
    %c0_6 = arith.constant 0 : index
    %3 = vector.load %arg1[%c0_5, %c0_6] : memref<4x129xf32, #tpu.memory_space<vmem>>, vector<4x129xf32>
    %cst = arith.constant dense<0.000000e+00> : vector<16x129xf32>
    %4 = tpu.matmul %2, %3, %cst {dimension_numbers = #tpu.dot_dimension_numbers<[1], [0], [0], [1], [0, 0, 1, 1], [], []>, precision = #tpu.contract_precision<fp32>} : vector<16x4xf32>, vector<4x129xf32>, vector<16x129xf32> -> vector<16x129xf32>
    %c0_7 = arith.constant 0 : index
    %c0_8 = arith.constant 0 : index
    %5 = vector.load %arg2[%c0_7, %c0_8] : memref<1x129xf32, #tpu.memory_space<vmem>>, vector<1x129xf32>
    %6 = vector.broadcast %5 : vector<1x129xf32> to vector<16x129xf32>
    %7 = arith.addf %4, %6 : vector<16x129xf32>
    %8 = vector.extract_strided_slice %7 {offsets = [0, 0], sizes = [16, 96], strides = [1, 1]} : vector<16x129xf32> to vector<16x96xf32>
    %9 = vector.extract_strided_slice %7 {offsets = [0, 96], sizes = [16, 32], strides = [1, 1]} : vector<16x129xf32> to vector<16x32xf32>
    %10 = vector.extract_strided_slice %7 {offsets = [0, 128], sizes = [16, 1], strides = [1, 1]} : vector<16x129xf32> to vector<16x1xf32>
    %c0_9 = arith.constant 0 : index
    %c0_10 = arith.constant 0 : index
    %11 = vector.load %arg5[%c0_9, %c0_10] : memref<1x32xf32, #tpu.memory_space<vmem>>, vector<1x32xf32>
    %12 = vector.shape_cast %11 : vector<1x32xf32> to vector<1x32xf32>
    %13 = vector.broadcast %12 : vector<1x32xf32> to vector<2x32xf32>
    %14 = vector.extract_strided_slice %9 {offsets = [0, 0], sizes = [2, 32], strides = [1, 1]} : vector<16x32xf32> to vector<2x32xf32>
    %15 = arith.mulf %14, %13 : vector<2x32xf32>
    %cst_11 = arith.constant dense<0.000000e+00> : vector<2xf32>
    %16 = vector.multi_reduction <add>, %15, %cst_11 [1] : vector<2x32xf32> to vector<2xf32>
    %17 = vector.shape_cast %16 : vector<2xf32> to vector<2x1xf32>
    %18 = vector.extract_strided_slice %10 {offsets = [0, 0], sizes = [2, 1], strides = [1, 1]} : vector<16x1xf32> to vector<2x1xf32>
    %19 = arith.addf %17, %18 : vector<2x1xf32>
    %cst_12 = arith.constant dense<0.000000e+00> : vector<2x96xf32>
    %20 = tpu.matmul %13, %0, %cst_12 {dimension_numbers = #tpu.dot_dimension_numbers<[1], [0], [0], [1], [0, 0, 1, 1], [], []>, precision = #tpu.contract_precision<fp32>} : vector<2x32xf32>, vector<32x96xf32>, vector<2x96xf32> -> vector<2x96xf32>
    %21 = vector.extract_strided_slice %8 {offsets = [0, 0], sizes = [2, 64], strides = [1, 1]} : vector<16x96xf32> to vector<2x64xf32>
    %22 = vector.extract_strided_slice %20 {offsets = [0, 0], sizes = [2, 64], strides = [1, 1]} : vector<2x96xf32> to vector<2x64xf32>
    %23 = arith.addf %21, %22 : vector<2x64xf32>
    %cst_13 = arith.constant 5.000000e-01 : f32
    %24 = vector.broadcast %cst_13 : f32 to vector<2x64xf32>
    %25 = arith.mulf %24, %23 : vector<2x64xf32>
    %26 = math.tanh %25 : vector<2x64xf32>
    %cst_14 = arith.constant 5.000000e-01 : f32
    %27 = vector.broadcast %cst_14 : f32 to vector<2x64xf32>
    %28 = arith.mulf %27, %26 : vector<2x64xf32>
    %cst_15 = arith.constant 5.000000e-01 : f32
    %29 = vector.broadcast %cst_15 : f32 to vector<2x64xf32>
    %30 = arith.addf %28, %29 : vector<2x64xf32>
    %31 = vector.extract_strided_slice %30 {offsets = [0, 0], sizes = [2, 32], strides = [1, 1]} : vector<2x64xf32> to vector<2x32xf32>
    %32 = vector.extract_strided_slice %30 {offsets = [0, 32], sizes = [2, 32], strides = [1, 1]} : vector<2x64xf32> to vector<2x32xf32>
    %33 = vector.extract_strided_slice %8 {offsets = [0, 64], sizes = [2, 32], strides = [1, 1]} : vector<16x96xf32> to vector<2x32xf32>
    %34 = vector.extract_strided_slice %20 {offsets = [0, 64], sizes = [2, 32], strides = [1, 1]} : vector<2x96xf32> to vector<2x32xf32>
    %35 = vector.broadcast %1 : vector<1x32xf32> to vector<2x32xf32>
    %36 = arith.addf %34, %35 : vector<2x32xf32>
    %37 = arith.mulf %31, %36 : vector<2x32xf32>
    %38 = arith.addf %33, %37 : vector<2x32xf32>
    %39 = math.tanh %38 : vector<2x32xf32>
    %cst_16 = arith.constant 1.000000e+00 : f32
    %40 = vector.broadcast %cst_16 : f32 to vector<2x32xf32>
    %41 = arith.subf %40, %32 : vector<2x32xf32>
    %42 = arith.mulf %41, %39 : vector<2x32xf32>
    %43 = arith.mulf %32, %13 : vector<2x32xf32>
    %44 = arith.addf %42, %43 : vector<2x32xf32>
    %45 = vector.extract_strided_slice %9 {offsets = [2, 0], sizes = [2, 32], strides = [1, 1]} : vector<16x32xf32> to vector<2x32xf32>
    %46 = arith.mulf %45, %44 : vector<2x32xf32>
    %cst_17 = arith.constant dense<0.000000e+00> : vector<2xf32>
    %47 = vector.multi_reduction <add>, %46, %cst_17 [1] : vector<2x32xf32> to vector<2xf32>
    %48 = vector.shape_cast %47 : vector<2xf32> to vector<2x1xf32>
    %49 = vector.extract_strided_slice %10 {offsets = [2, 0], sizes = [2, 1], strides = [1, 1]} : vector<16x1xf32> to vector<2x1xf32>
    %50 = arith.addf %48, %49 : vector<2x1xf32>
    %cst_18 = arith.constant dense<0.000000e+00> : vector<2x96xf32>
    %51 = tpu.matmul %44, %0, %cst_18 {dimension_numbers = #tpu.dot_dimension_numbers<[1], [0], [0], [1], [0, 0, 1, 1], [], []>, precision = #tpu.contract_precision<fp32>} : vector<2x32xf32>, vector<32x96xf32>, vector<2x96xf32> -> vector<2x96xf32>
    %52 = vector.extract_strided_slice %8 {offsets = [2, 0], sizes = [2, 64], strides = [1, 1]} : vector<16x96xf32> to vector<2x64xf32>
    %53 = vector.extract_strided_slice %51 {offsets = [0, 0], sizes = [2, 64], strides = [1, 1]} : vector<2x96xf32> to vector<2x64xf32>
    %54 = arith.addf %52, %53 : vector<2x64xf32>
    %cst_19 = arith.constant 5.000000e-01 : f32
    %55 = vector.broadcast %cst_19 : f32 to vector<2x64xf32>
    %56 = arith.mulf %55, %54 : vector<2x64xf32>
    %57 = math.tanh %56 : vector<2x64xf32>
    %cst_20 = arith.constant 5.000000e-01 : f32
    %58 = vector.broadcast %cst_20 : f32 to vector<2x64xf32>
    %59 = arith.mulf %58, %57 : vector<2x64xf32>
    %cst_21 = arith.constant 5.000000e-01 : f32
    %60 = vector.broadcast %cst_21 : f32 to vector<2x64xf32>
    %61 = arith.addf %59, %60 : vector<2x64xf32>
    %62 = vector.extract_strided_slice %61 {offsets = [0, 0], sizes = [2, 32], strides = [1, 1]} : vector<2x64xf32> to vector<2x32xf32>
    %63 = vector.extract_strided_slice %61 {offsets = [0, 32], sizes = [2, 32], strides = [1, 1]} : vector<2x64xf32> to vector<2x32xf32>
    %64 = vector.extract_strided_slice %8 {offsets = [2, 64], sizes = [2, 32], strides = [1, 1]} : vector<16x96xf32> to vector<2x32xf32>
    %65 = vector.extract_strided_slice %51 {offsets = [0, 64], sizes = [2, 32], strides = [1, 1]} : vector<2x96xf32> to vector<2x32xf32>
    %66 = vector.broadcast %1 : vector<1x32xf32> to vector<2x32xf32>
    %67 = arith.addf %65, %66 : vector<2x32xf32>
    %68 = arith.mulf %62, %67 : vector<2x32xf32>
    %69 = arith.addf %64, %68 : vector<2x32xf32>
    %70 = math.tanh %69 : vector<2x32xf32>
    %cst_22 = arith.constant 1.000000e+00 : f32
    %71 = vector.broadcast %cst_22 : f32 to vector<2x32xf32>
    %72 = arith.subf %71, %63 : vector<2x32xf32>
    %73 = arith.mulf %72, %70 : vector<2x32xf32>
    %74 = arith.mulf %63, %44 : vector<2x32xf32>
    %75 = arith.addf %73, %74 : vector<2x32xf32>
    %76 = vector.extract_strided_slice %9 {offsets = [4, 0], sizes = [2, 32], strides = [1, 1]} : vector<16x32xf32> to vector<2x32xf32>
    %77 = arith.mulf %76, %75 : vector<2x32xf32>
    %cst_23 = arith.constant dense<0.000000e+00> : vector<2xf32>
    %78 = vector.multi_reduction <add>, %77, %cst_23 [1] : vector<2x32xf32> to vector<2xf32>
    %79 = vector.shape_cast %78 : vector<2xf32> to vector<2x1xf32>
    %80 = vector.extract_strided_slice %10 {offsets = [4, 0], sizes = [2, 1], strides = [1, 1]} : vector<16x1xf32> to vector<2x1xf32>
    %81 = arith.addf %79, %80 : vector<2x1xf32>
    %cst_24 = arith.constant dense<0.000000e+00> : vector<2x96xf32>
    %82 = tpu.matmul %75, %0, %cst_24 {dimension_numbers = #tpu.dot_dimension_numbers<[1], [0], [0], [1], [0, 0, 1, 1], [], []>, precision = #tpu.contract_precision<fp32>} : vector<2x32xf32>, vector<32x96xf32>, vector<2x96xf32> -> vector<2x96xf32>
    %83 = vector.extract_strided_slice %8 {offsets = [4, 0], sizes = [2, 64], strides = [1, 1]} : vector<16x96xf32> to vector<2x64xf32>
    %84 = vector.extract_strided_slice %82 {offsets = [0, 0], sizes = [2, 64], strides = [1, 1]} : vector<2x96xf32> to vector<2x64xf32>
    %85 = arith.addf %83, %84 : vector<2x64xf32>
    %cst_25 = arith.constant 5.000000e-01 : f32
    %86 = vector.broadcast %cst_25 : f32 to vector<2x64xf32>
    %87 = arith.mulf %86, %85 : vector<2x64xf32>
    %88 = math.tanh %87 : vector<2x64xf32>
    %cst_26 = arith.constant 5.000000e-01 : f32
    %89 = vector.broadcast %cst_26 : f32 to vector<2x64xf32>
    %90 = arith.mulf %89, %88 : vector<2x64xf32>
    %cst_27 = arith.constant 5.000000e-01 : f32
    %91 = vector.broadcast %cst_27 : f32 to vector<2x64xf32>
    %92 = arith.addf %90, %91 : vector<2x64xf32>
    %93 = vector.extract_strided_slice %92 {offsets = [0, 0], sizes = [2, 32], strides = [1, 1]} : vector<2x64xf32> to vector<2x32xf32>
    %94 = vector.extract_strided_slice %92 {offsets = [0, 32], sizes = [2, 32], strides = [1, 1]} : vector<2x64xf32> to vector<2x32xf32>
    %95 = vector.extract_strided_slice %8 {offsets = [4, 64], sizes = [2, 32], strides = [1, 1]} : vector<16x96xf32> to vector<2x32xf32>
    %96 = vector.extract_strided_slice %82 {offsets = [0, 64], sizes = [2, 32], strides = [1, 1]} : vector<2x96xf32> to vector<2x32xf32>
    %97 = vector.broadcast %1 : vector<1x32xf32> to vector<2x32xf32>
    %98 = arith.addf %96, %97 : vector<2x32xf32>
    %99 = arith.mulf %93, %98 : vector<2x32xf32>
    %100 = arith.addf %95, %99 : vector<2x32xf32>
    %101 = math.tanh %100 : vector<2x32xf32>
    %cst_28 = arith.constant 1.000000e+00 : f32
    %102 = vector.broadcast %cst_28 : f32 to vector<2x32xf32>
    %103 = arith.subf %102, %94 : vector<2x32xf32>
    %104 = arith.mulf %103, %101 : vector<2x32xf32>
    %105 = arith.mulf %94, %75 : vector<2x32xf32>
    %106 = arith.addf %104, %105 : vector<2x32xf32>
    %107 = vector.extract_strided_slice %9 {offsets = [6, 0], sizes = [2, 32], strides = [1, 1]} : vector<16x32xf32> to vector<2x32xf32>
    %108 = arith.mulf %107, %106 : vector<2x32xf32>
    %cst_29 = arith.constant dense<0.000000e+00> : vector<2xf32>
    %109 = vector.multi_reduction <add>, %108, %cst_29 [1] : vector<2x32xf32> to vector<2xf32>
    %110 = vector.shape_cast %109 : vector<2xf32> to vector<2x1xf32>
    %111 = vector.extract_strided_slice %10 {offsets = [6, 0], sizes = [2, 1], strides = [1, 1]} : vector<16x1xf32> to vector<2x1xf32>
    %112 = arith.addf %110, %111 : vector<2x1xf32>
    %cst_30 = arith.constant dense<0.000000e+00> : vector<2x96xf32>
    %113 = tpu.matmul %106, %0, %cst_30 {dimension_numbers = #tpu.dot_dimension_numbers<[1], [0], [0], [1], [0, 0, 1, 1], [], []>, precision = #tpu.contract_precision<fp32>} : vector<2x32xf32>, vector<32x96xf32>, vector<2x96xf32> -> vector<2x96xf32>
    %114 = vector.extract_strided_slice %8 {offsets = [6, 0], sizes = [2, 64], strides = [1, 1]} : vector<16x96xf32> to vector<2x64xf32>
    %115 = vector.extract_strided_slice %113 {offsets = [0, 0], sizes = [2, 64], strides = [1, 1]} : vector<2x96xf32> to vector<2x64xf32>
    %116 = arith.addf %114, %115 : vector<2x64xf32>
    %cst_31 = arith.constant 5.000000e-01 : f32
    %117 = vector.broadcast %cst_31 : f32 to vector<2x64xf32>
    %118 = arith.mulf %117, %116 : vector<2x64xf32>
    %119 = math.tanh %118 : vector<2x64xf32>
    %cst_32 = arith.constant 5.000000e-01 : f32
    %120 = vector.broadcast %cst_32 : f32 to vector<2x64xf32>
    %121 = arith.mulf %120, %119 : vector<2x64xf32>
    %cst_33 = arith.constant 5.000000e-01 : f32
    %122 = vector.broadcast %cst_33 : f32 to vector<2x64xf32>
    %123 = arith.addf %121, %122 : vector<2x64xf32>
    %124 = vector.extract_strided_slice %123 {offsets = [0, 0], sizes = [2, 32], strides = [1, 1]} : vector<2x64xf32> to vector<2x32xf32>
    %125 = vector.extract_strided_slice %123 {offsets = [0, 32], sizes = [2, 32], strides = [1, 1]} : vector<2x64xf32> to vector<2x32xf32>
    %126 = vector.extract_strided_slice %8 {offsets = [6, 64], sizes = [2, 32], strides = [1, 1]} : vector<16x96xf32> to vector<2x32xf32>
    %127 = vector.extract_strided_slice %113 {offsets = [0, 64], sizes = [2, 32], strides = [1, 1]} : vector<2x96xf32> to vector<2x32xf32>
    %128 = vector.broadcast %1 : vector<1x32xf32> to vector<2x32xf32>
    %129 = arith.addf %127, %128 : vector<2x32xf32>
    %130 = arith.mulf %124, %129 : vector<2x32xf32>
    %131 = arith.addf %126, %130 : vector<2x32xf32>
    %132 = math.tanh %131 : vector<2x32xf32>
    %cst_34 = arith.constant 1.000000e+00 : f32
    %133 = vector.broadcast %cst_34 : f32 to vector<2x32xf32>
    %134 = arith.subf %133, %125 : vector<2x32xf32>
    %135 = arith.mulf %134, %132 : vector<2x32xf32>
    %136 = arith.mulf %125, %106 : vector<2x32xf32>
    %137 = arith.addf %135, %136 : vector<2x32xf32>
    %138 = vector.extract_strided_slice %9 {offsets = [8, 0], sizes = [2, 32], strides = [1, 1]} : vector<16x32xf32> to vector<2x32xf32>
    %139 = arith.mulf %138, %137 : vector<2x32xf32>
    %cst_35 = arith.constant dense<0.000000e+00> : vector<2xf32>
    %140 = vector.multi_reduction <add>, %139, %cst_35 [1] : vector<2x32xf32> to vector<2xf32>
    %141 = vector.shape_cast %140 : vector<2xf32> to vector<2x1xf32>
    %142 = vector.extract_strided_slice %10 {offsets = [8, 0], sizes = [2, 1], strides = [1, 1]} : vector<16x1xf32> to vector<2x1xf32>
    %143 = arith.addf %141, %142 : vector<2x1xf32>
    %cst_36 = arith.constant dense<0.000000e+00> : vector<2x96xf32>
    %144 = tpu.matmul %137, %0, %cst_36 {dimension_numbers = #tpu.dot_dimension_numbers<[1], [0], [0], [1], [0, 0, 1, 1], [], []>, precision = #tpu.contract_precision<fp32>} : vector<2x32xf32>, vector<32x96xf32>, vector<2x96xf32> -> vector<2x96xf32>
    %145 = vector.extract_strided_slice %8 {offsets = [8, 0], sizes = [2, 64], strides = [1, 1]} : vector<16x96xf32> to vector<2x64xf32>
    %146 = vector.extract_strided_slice %144 {offsets = [0, 0], sizes = [2, 64], strides = [1, 1]} : vector<2x96xf32> to vector<2x64xf32>
    %147 = arith.addf %145, %146 : vector<2x64xf32>
    %cst_37 = arith.constant 5.000000e-01 : f32
    %148 = vector.broadcast %cst_37 : f32 to vector<2x64xf32>
    %149 = arith.mulf %148, %147 : vector<2x64xf32>
    %150 = math.tanh %149 : vector<2x64xf32>
    %cst_38 = arith.constant 5.000000e-01 : f32
    %151 = vector.broadcast %cst_38 : f32 to vector<2x64xf32>
    %152 = arith.mulf %151, %150 : vector<2x64xf32>
    %cst_39 = arith.constant 5.000000e-01 : f32
    %153 = vector.broadcast %cst_39 : f32 to vector<2x64xf32>
    %154 = arith.addf %152, %153 : vector<2x64xf32>
    %155 = vector.extract_strided_slice %154 {offsets = [0, 0], sizes = [2, 32], strides = [1, 1]} : vector<2x64xf32> to vector<2x32xf32>
    %156 = vector.extract_strided_slice %154 {offsets = [0, 32], sizes = [2, 32], strides = [1, 1]} : vector<2x64xf32> to vector<2x32xf32>
    %157 = vector.extract_strided_slice %8 {offsets = [8, 64], sizes = [2, 32], strides = [1, 1]} : vector<16x96xf32> to vector<2x32xf32>
    %158 = vector.extract_strided_slice %144 {offsets = [0, 64], sizes = [2, 32], strides = [1, 1]} : vector<2x96xf32> to vector<2x32xf32>
    %159 = vector.broadcast %1 : vector<1x32xf32> to vector<2x32xf32>
    %160 = arith.addf %158, %159 : vector<2x32xf32>
    %161 = arith.mulf %155, %160 : vector<2x32xf32>
    %162 = arith.addf %157, %161 : vector<2x32xf32>
    %163 = math.tanh %162 : vector<2x32xf32>
    %cst_40 = arith.constant 1.000000e+00 : f32
    %164 = vector.broadcast %cst_40 : f32 to vector<2x32xf32>
    %165 = arith.subf %164, %156 : vector<2x32xf32>
    %166 = arith.mulf %165, %163 : vector<2x32xf32>
    %167 = arith.mulf %156, %137 : vector<2x32xf32>
    %168 = arith.addf %166, %167 : vector<2x32xf32>
    %169 = vector.extract_strided_slice %9 {offsets = [10, 0], sizes = [2, 32], strides = [1, 1]} : vector<16x32xf32> to vector<2x32xf32>
    %170 = arith.mulf %169, %168 : vector<2x32xf32>
    %cst_41 = arith.constant dense<0.000000e+00> : vector<2xf32>
    %171 = vector.multi_reduction <add>, %170, %cst_41 [1] : vector<2x32xf32> to vector<2xf32>
    %172 = vector.shape_cast %171 : vector<2xf32> to vector<2x1xf32>
    %173 = vector.extract_strided_slice %10 {offsets = [10, 0], sizes = [2, 1], strides = [1, 1]} : vector<16x1xf32> to vector<2x1xf32>
    %174 = arith.addf %172, %173 : vector<2x1xf32>
    %cst_42 = arith.constant dense<0.000000e+00> : vector<2x96xf32>
    %175 = tpu.matmul %168, %0, %cst_42 {dimension_numbers = #tpu.dot_dimension_numbers<[1], [0], [0], [1], [0, 0, 1, 1], [], []>, precision = #tpu.contract_precision<fp32>} : vector<2x32xf32>, vector<32x96xf32>, vector<2x96xf32> -> vector<2x96xf32>
    %176 = vector.extract_strided_slice %8 {offsets = [10, 0], sizes = [2, 64], strides = [1, 1]} : vector<16x96xf32> to vector<2x64xf32>
    %177 = vector.extract_strided_slice %175 {offsets = [0, 0], sizes = [2, 64], strides = [1, 1]} : vector<2x96xf32> to vector<2x64xf32>
    %178 = arith.addf %176, %177 : vector<2x64xf32>
    %cst_43 = arith.constant 5.000000e-01 : f32
    %179 = vector.broadcast %cst_43 : f32 to vector<2x64xf32>
    %180 = arith.mulf %179, %178 : vector<2x64xf32>
    %181 = math.tanh %180 : vector<2x64xf32>
    %cst_44 = arith.constant 5.000000e-01 : f32
    %182 = vector.broadcast %cst_44 : f32 to vector<2x64xf32>
    %183 = arith.mulf %182, %181 : vector<2x64xf32>
    %cst_45 = arith.constant 5.000000e-01 : f32
    %184 = vector.broadcast %cst_45 : f32 to vector<2x64xf32>
    %185 = arith.addf %183, %184 : vector<2x64xf32>
    %186 = vector.extract_strided_slice %185 {offsets = [0, 0], sizes = [2, 32], strides = [1, 1]} : vector<2x64xf32> to vector<2x32xf32>
    %187 = vector.extract_strided_slice %185 {offsets = [0, 32], sizes = [2, 32], strides = [1, 1]} : vector<2x64xf32> to vector<2x32xf32>
    %188 = vector.extract_strided_slice %8 {offsets = [10, 64], sizes = [2, 32], strides = [1, 1]} : vector<16x96xf32> to vector<2x32xf32>
    %189 = vector.extract_strided_slice %175 {offsets = [0, 64], sizes = [2, 32], strides = [1, 1]} : vector<2x96xf32> to vector<2x32xf32>
    %190 = vector.broadcast %1 : vector<1x32xf32> to vector<2x32xf32>
    %191 = arith.addf %189, %190 : vector<2x32xf32>
    %192 = arith.mulf %186, %191 : vector<2x32xf32>
    %193 = arith.addf %188, %192 : vector<2x32xf32>
    %194 = math.tanh %193 : vector<2x32xf32>
    %cst_46 = arith.constant 1.000000e+00 : f32
    %195 = vector.broadcast %cst_46 : f32 to vector<2x32xf32>
    %196 = arith.subf %195, %187 : vector<2x32xf32>
    %197 = arith.mulf %196, %194 : vector<2x32xf32>
    %198 = arith.mulf %187, %168 : vector<2x32xf32>
    %199 = arith.addf %197, %198 : vector<2x32xf32>
    %200 = vector.extract_strided_slice %9 {offsets = [12, 0], sizes = [2, 32], strides = [1, 1]} : vector<16x32xf32> to vector<2x32xf32>
    %201 = arith.mulf %200, %199 : vector<2x32xf32>
    %cst_47 = arith.constant dense<0.000000e+00> : vector<2xf32>
    %202 = vector.multi_reduction <add>, %201, %cst_47 [1] : vector<2x32xf32> to vector<2xf32>
    %203 = vector.shape_cast %202 : vector<2xf32> to vector<2x1xf32>
    %204 = vector.extract_strided_slice %10 {offsets = [12, 0], sizes = [2, 1], strides = [1, 1]} : vector<16x1xf32> to vector<2x1xf32>
    %205 = arith.addf %203, %204 : vector<2x1xf32>
    %cst_48 = arith.constant dense<0.000000e+00> : vector<2x96xf32>
    %206 = tpu.matmul %199, %0, %cst_48 {dimension_numbers = #tpu.dot_dimension_numbers<[1], [0], [0], [1], [0, 0, 1, 1], [], []>, precision = #tpu.contract_precision<fp32>} : vector<2x32xf32>, vector<32x96xf32>, vector<2x96xf32> -> vector<2x96xf32>
    %207 = vector.extract_strided_slice %8 {offsets = [12, 0], sizes = [2, 64], strides = [1, 1]} : vector<16x96xf32> to vector<2x64xf32>
    %208 = vector.extract_strided_slice %206 {offsets = [0, 0], sizes = [2, 64], strides = [1, 1]} : vector<2x96xf32> to vector<2x64xf32>
    %209 = arith.addf %207, %208 : vector<2x64xf32>
    %cst_49 = arith.constant 5.000000e-01 : f32
    %210 = vector.broadcast %cst_49 : f32 to vector<2x64xf32>
    %211 = arith.mulf %210, %209 : vector<2x64xf32>
    %212 = math.tanh %211 : vector<2x64xf32>
    %cst_50 = arith.constant 5.000000e-01 : f32
    %213 = vector.broadcast %cst_50 : f32 to vector<2x64xf32>
    %214 = arith.mulf %213, %212 : vector<2x64xf32>
    %cst_51 = arith.constant 5.000000e-01 : f32
    %215 = vector.broadcast %cst_51 : f32 to vector<2x64xf32>
    %216 = arith.addf %214, %215 : vector<2x64xf32>
    %217 = vector.extract_strided_slice %216 {offsets = [0, 0], sizes = [2, 32], strides = [1, 1]} : vector<2x64xf32> to vector<2x32xf32>
    %218 = vector.extract_strided_slice %216 {offsets = [0, 32], sizes = [2, 32], strides = [1, 1]} : vector<2x64xf32> to vector<2x32xf32>
    %219 = vector.extract_strided_slice %8 {offsets = [12, 64], sizes = [2, 32], strides = [1, 1]} : vector<16x96xf32> to vector<2x32xf32>
    %220 = vector.extract_strided_slice %206 {offsets = [0, 64], sizes = [2, 32], strides = [1, 1]} : vector<2x96xf32> to vector<2x32xf32>
    %221 = vector.broadcast %1 : vector<1x32xf32> to vector<2x32xf32>
    %222 = arith.addf %220, %221 : vector<2x32xf32>
    %223 = arith.mulf %217, %222 : vector<2x32xf32>
    %224 = arith.addf %219, %223 : vector<2x32xf32>
    %225 = math.tanh %224 : vector<2x32xf32>
    %cst_52 = arith.constant 1.000000e+00 : f32
    %226 = vector.broadcast %cst_52 : f32 to vector<2x32xf32>
    %227 = arith.subf %226, %218 : vector<2x32xf32>
    %228 = arith.mulf %227, %225 : vector<2x32xf32>
    %229 = arith.mulf %218, %199 : vector<2x32xf32>
    %230 = arith.addf %228, %229 : vector<2x32xf32>
    %231 = vector.extract_strided_slice %9 {offsets = [14, 0], sizes = [2, 32], strides = [1, 1]} : vector<16x32xf32> to vector<2x32xf32>
    %232 = arith.mulf %231, %230 : vector<2x32xf32>
    %cst_53 = arith.constant dense<0.000000e+00> : vector<2xf32>
    %233 = vector.multi_reduction <add>, %232, %cst_53 [1] : vector<2x32xf32> to vector<2xf32>
    %234 = vector.shape_cast %233 : vector<2xf32> to vector<2x1xf32>
    %235 = vector.extract_strided_slice %10 {offsets = [14, 0], sizes = [2, 1], strides = [1, 1]} : vector<16x1xf32> to vector<2x1xf32>
    %236 = arith.addf %234, %235 : vector<2x1xf32>
    %cst_54 = arith.constant dense<0.000000e+00> : vector<2x96xf32>
    %237 = tpu.matmul %230, %0, %cst_54 {dimension_numbers = #tpu.dot_dimension_numbers<[1], [0], [0], [1], [0, 0, 1, 1], [], []>, precision = #tpu.contract_precision<fp32>} : vector<2x32xf32>, vector<32x96xf32>, vector<2x96xf32> -> vector<2x96xf32>
    %238 = vector.extract_strided_slice %8 {offsets = [14, 0], sizes = [2, 64], strides = [1, 1]} : vector<16x96xf32> to vector<2x64xf32>
    %239 = vector.extract_strided_slice %237 {offsets = [0, 0], sizes = [2, 64], strides = [1, 1]} : vector<2x96xf32> to vector<2x64xf32>
    %240 = arith.addf %238, %239 : vector<2x64xf32>
    %cst_55 = arith.constant 5.000000e-01 : f32
    %241 = vector.broadcast %cst_55 : f32 to vector<2x64xf32>
    %242 = arith.mulf %241, %240 : vector<2x64xf32>
    %243 = math.tanh %242 : vector<2x64xf32>
    %cst_56 = arith.constant 5.000000e-01 : f32
    %244 = vector.broadcast %cst_56 : f32 to vector<2x64xf32>
    %245 = arith.mulf %244, %243 : vector<2x64xf32>
    %cst_57 = arith.constant 5.000000e-01 : f32
    %246 = vector.broadcast %cst_57 : f32 to vector<2x64xf32>
    %247 = arith.addf %245, %246 : vector<2x64xf32>
    %248 = vector.extract_strided_slice %247 {offsets = [0, 0], sizes = [2, 32], strides = [1, 1]} : vector<2x64xf32> to vector<2x32xf32>
    %249 = vector.extract_strided_slice %247 {offsets = [0, 32], sizes = [2, 32], strides = [1, 1]} : vector<2x64xf32> to vector<2x32xf32>
    %250 = vector.extract_strided_slice %8 {offsets = [14, 64], sizes = [2, 32], strides = [1, 1]} : vector<16x96xf32> to vector<2x32xf32>
    %251 = vector.extract_strided_slice %237 {offsets = [0, 64], sizes = [2, 32], strides = [1, 1]} : vector<2x96xf32> to vector<2x32xf32>
    %252 = vector.broadcast %1 : vector<1x32xf32> to vector<2x32xf32>
    %253 = arith.addf %251, %252 : vector<2x32xf32>
    %254 = arith.mulf %248, %253 : vector<2x32xf32>
    %255 = arith.addf %250, %254 : vector<2x32xf32>
    %256 = math.tanh %255 : vector<2x32xf32>
    %cst_58 = arith.constant 1.000000e+00 : f32
    %257 = vector.broadcast %cst_58 : f32 to vector<2x32xf32>
    %258 = arith.subf %257, %249 : vector<2x32xf32>
    %259 = arith.mulf %258, %256 : vector<2x32xf32>
    %260 = arith.mulf %249, %230 : vector<2x32xf32>
    %261 = arith.addf %259, %260 : vector<2x32xf32>
    %c0_59 = arith.constant 0 : index
    %c0_60 = arith.constant 0 : index
    %262 = vector.load %arg7[%c0_59, %c0_60] : memref<2x32xf32, #tpu.memory_space<vmem>>, vector<2x32xf32>
    tpu.vector_store %arg7[%c0_59, %c0_60], %261 {strides = array<i32>} : memref<2x32xf32, #tpu.memory_space<vmem>>, vector<2x32xf32>,
    %263 = tpu.concatenate %19, %50, %81, %112, %143, %174, %205, %236 in 1 : vector<2x1xf32>, vector<2x1xf32>, vector<2x1xf32>, vector<2x1xf32>, vector<2x1xf32>, vector<2x1xf32>, vector<2x1xf32>, vector<2x1xf32> -> vector<2x8xf32>
    %c0_61 = arith.constant 0 : index
    %c0_62 = arith.constant 0 : index
    %264 = vector.load %arg6[%c0_61, %c0_62] : memref<2x8xf32, #tpu.memory_space<vmem>>, vector<2x8xf32>
    tpu.vector_store %arg6[%c0_61, %c0_62], %263 {strides = array<i32>} : memref<2x8xf32, #tpu.memory_space<vmem>>, vector<2x8xf32>,
    return
  }
}

</mosaic_0001>

<llo_original>
// kernel: value_synapse_forward.1
$region0: #{value_synapse_forward.1}
  #allocation0 [shape = 'u32[]', space=smem, size = 0x4, offset = 0x4, fixed_abs, tag = 'smem constant byte address 0x4 - core index']
  #allocation1 [shape = 'u32[144,128]{1,0:T(1,128)}', space=vmem, size = 0x12000, scoped, tag = 'internal scratch']
  %s0 = inlined_call_operand.vmem [shape: f32[16,4], index: 0, kind: input, shape index: {}]
  %s1 = inlined_call_operand.vmem [shape: f32[4,129], index: 1, kind: input, shape index: {}]
  %s2 = inlined_call_operand.vmem [shape: f32[1,129], index: 2, kind: input, shape index: {}]
  %s3 = inlined_call_operand.vmem [shape: f32[32,96], index: 3, kind: input, shape index: {}]
  %s4 = inlined_call_operand.vmem [shape: f32[1,32], index: 4, kind: input, shape index: {}]
  %s5 = inlined_call_operand.vmem [shape: f32[1,32], index: 5, kind: input, shape index: {}]
  %s6 = inlined_call_operand.hbm [shape: f32[2,8], index: 6, kind: output, shape index: {0}]
  %s7 = inlined_call_operand.hbm [shape: f32[2,32], index: 7, kind: output, shape index: {1}]
  %8 = xla_tuple %s6, %s7
  %s9 = sld [smem:[#allocation0]]
  $region42: #{value_synapse_forward.1} parent=0
    _
  %s11 = ssub.s32 1, %s9
  %s12 = scalar_select 0, %s11, %s9
  $region1: #{value_synapse_forward.1} parent=0
    #allocation2 [shape = 'u8[1024]{0}', space=vmem, size = 0x400, scoped, tag = 'output window, operand 0, single buffered']
    #allocation3 [shape = 's32[1]{0}', space=sflag, size = 0x4, scoped, tag = 'scoped memory for value_synapse_forward.1']
    #allocation4 [shape = 'u8[1024]{0}', space=vmem, size = 0x400, scoped, tag = 'output window, operand 1, single buffered']
    #allocation5 [shape = 's32[1]{0}', space=sflag, size = 0x4, scoped, tag = 'scoped memory for value_synapse_forward.1']
    %13 = vsyncpa [#allocation3], 0
    %14 = vsyncpa [#allocation5], 0
    // Predicated region
    $region2: #{value_synapse_forward.1} parent=1 // pred_check
      _
    $region3: #{value_synapse_forward.1} parent=1 // pred_check_branch
      %16 = sbr.rel (0) target = $region5
    $region4: #{value_synapse_forward.1} parent=1 // pred_region
      _
    $region5: #{value_synapse_forward.1} parent=1 // pred_fallthru
      _
    // Predicated region
    $region6: #{value_synapse_forward.1} parent=1 // pred_check
      _
    $region7: #{value_synapse_forward.1} parent=1 // pred_check_branch
      %18 = sbr.rel (0) target = $region9
    $region8: #{value_synapse_forward.1} parent=1 // pred_region
      _
    $region9: #{value_synapse_forward.1} parent=1 // pred_fallthru
      _
    // Predicated region
    $region10: #{value_synapse_forward.1} parent=1 // pred_check
      _
    $region11: #{value_synapse_forward.1} parent=1 // pred_check_branch
      %20 = sbr.rel (0) target = $region13
    $region12: #{value_synapse_forward.1} parent=1 // pred_region
      _
    $region13: #{value_synapse_forward.1} parent=1 // pred_fallthru
      _
    // Predicated region
    $region14: #{value_synapse_forward.1} parent=1 // pred_check
      _
    $region15: #{value_synapse_forward.1} parent=1 // pred_check_branch
      %22 = sbr.rel (0) target = $region17
    $region16: #{value_synapse_forward.1} parent=1 // pred_region
      _
    $region17: #{value_synapse_forward.1} parent=1 // pred_fallthru
      _
    // Predicated region
    $region18: #{value_synapse_forward.1} parent=1 // pred_check
      _
    $region19: #{value_synapse_forward.1} parent=1 // pred_check_branch
      %24 = sbr.rel (0) target = $region21
    $region20: #{value_synapse_forward.1} parent=1 // pred_region
      _
    $region21: #{value_synapse_forward.1} parent=1 // pred_fallthru
      _
    // Predicated region
    $region22: #{value_synapse_forward.1} parent=1 // pred_check
      _
    $region23: #{value_synapse_forward.1} parent=1 // pred_check_branch
      %26 = sbr.rel (0) target = $region25
    $region24: #{value_synapse_forward.1} parent=1 // pred_region
      _
    $region25: #{value_synapse_forward.1} parent=1 // pred_fallthru
      _
    %v27 = vld [vmem:[%s3] sm:$0xff]
    %v28 = vld [vmem:[%s3 + $0x8] sm:$0xff]
    %v29 = vld [vmem:[%s3 + $0x10] sm:$0xff]
    %v30 = vld [vmem:[%s3 + $0x18] sm:$0xff]
    %v31 = vld [vmem:[%s4] sm:$0x1]
    %v32 = vld [vmem:[%s0] sm:$0xff]
    %v33 = vld [vmem:[%s0 + $0x8] sm:$0xff]
    %v34 = vld [vmem:[%s1] sm:$0xff]
    %v35 = vld [vmem:[%s2] sm:$0x3]
    %v37 = vlaneseq
    %v38 = vshrl.u32 %v37, 7
    %v39 = vsub.s32 0, %v38
    %v40 = vrot.slane %v35, %v39
    %v41 = vlaneseq
    %v42 = vshrl.u32 %v41, 7
    %v43 = vsub.s32 1, %v42
    %v44 = vrot.slane %v35, %v43
    %v48 = vcombine.high %v34, %v34
    %vm49 = vcmask 31744
    %v51 = vsel %vm49, %v32, 0
    %v54 = vsel %vm49, %v33, 0
    %vm56 = vcmask 1043456
    %v57 = vsel %vm56, %v34, 0
    %v59 = vsel %vm56, %v48, 0
    %61 = vmatprep.subr.mxu0 0.0
    %62 = vmatpush1.msra.mxu0 0.0
    %63 = vmatprep.subr.mxu0 0.0
    %64 = vmatpush1.msra.mxu0 0.0
    %65 = vmatprep.subr.mxu0 0.0
    %66 = vmatpush1.msra.mxu0 0.0
    %67 = vmatprep.subr.mxu0 0.0
    %68 = vmatpush1.msra.mxu0 0.0
    %69 = vmatprep.subr.mxu0 0.0
    %70 = vmatpush1.msra.mxu0 0.0
    %71 = vmatprep.subr.mxu0 0.0
    %72 = vmatpush1.msra.mxu0 0.0
    %73 = vmatprep.subr.mxu0 0.0
    %74 = vmatpush1.msra.mxu0 0.0
    %75 = vmatprep.subr.mxu0 0.0
    %76 = vmatpush1.msra.mxu0 0.0
    %77 = vmatprep.subr.mxu0 0.0
    %78 = vmatpush1.msra.mxu0 0.0
    %79 = vmatprep.subr.mxu0 0.0
    %80 = vmatpush1.msra.mxu0 0.0
    %81 = vmatprep.subr.mxu0 0.0
    %82 = vmatpush1.msra.mxu0 0.0
    %83 = vmatprep.subr.mxu0 0.0
    %84 = vmatpush1.msra.mxu0 0.0
    %85 = vmatprep.subr.mxu0 0.0
    %86 = vmatpush1.msra.mxu0 0.0
    %87 = vmatprep.subr.mxu0 0.0
    %88 = vmatpush1.msra.mxu0 0.0
    %89 = vmatprep.subr.mxu0 0.0
    %90 = vmatpush1.msra.mxu0 0.0
    %v91 = vand.u32 %v59, 4294901760
    %92 = vmatprep.subr.mxu0 %v91
    %v93 = vand.u32 %v57, 4294901760
    %94 = vmatpush1.msra.mxu0 %v93
    %95 = vmatprep.subr.mxu0 0.0
    %96 = vmatpush2.msra.mxu0 0.0
    %97 = vmatprep.subr.mxu0 0.0
    %98 = vmatpush2.msra.mxu0 0.0
    %99 = vmatprep.subr.mxu0 0.0
    %100 = vmatpush2.msra.mxu0 0.0
    %101 = vmatprep.subr.mxu0 0.0
    %102 = vmatpush2.msra.mxu0 0.0
    %103 = vmatprep.subr.mxu0 0.0
    %104 = vmatpush2.msra.mxu0 0.0
    %105 = vmatprep.subr.mxu0 0.0
    %106 = vmatpush2.msra.mxu0 0.0
    %107 = vmatprep.subr.mxu0 0.0
    %108 = vmatpush2.msra.mxu0 0.0
    %109 = vmatprep.subr.mxu0 0.0
    %110 = vmatpush2.msra.mxu0 0.0
    %111 = vmatprep.subr.mxu0 0.0
    %112 = vmatpush2.msra.mxu0 0.0
    %113 = vmatprep.subr.mxu0 0.0
    %114 = vmatpush2.msra.mxu0 0.0
    %115 = vmatprep.subr.mxu0 0.0
    %116 = vmatpush2.msra.mxu0 0.0
    %117 = vmatprep.subr.mxu0 0.0
    %118 = vmatpush2.msra.mxu0 0.0
    %119 = vmatprep.subr.mxu0 0.0
    %120 = vmatpush2.msra.mxu0 0.0
    %121 = vmatprep.subr.mxu0 0.0
    %122 = vmatpush2.msra.mxu0 0.0
    %123 = vmatprep.subr.mxu0 0.0
    %124 = vmatpush2.msra.mxu0 0.0
    %125 = vmatprep.subr.mxu0 0.0
    %126 = vmatpush2.msra.mxu0 0.0
    %127 = vmatprep.mubr.f32.mxu0 0.0
    %v128 = vand.u32 %v51, 4294901760
    %v129 = vsub.f32 %v51, %v128
    %v130 = vand.u32 %v129, 4294901760
    %v131 = vsub.f32 %v129, %v130
    %v132 = vand.u32 %v131, 4294901760
    %133 = vmatmul.mubr.f32.gmra.mxu0 %v132
    %v134 = vpop.f32.mrf.mxu0
    %v135 = vadd.f32 %v40, %v134
    %v136 = vpop.f32.mrf.mxu0
    %v137 = vadd.f32 %v44, %v136
    %138 = vmatprep.mubr.f32.mxu0 0.0
    %v139 = vand.u32 %v54, 4294901760
    %v140 = vsub.f32 %v54, %v139
    %v141 = vand.u32 %v140, 4294901760
    %v142 = vsub.f32 %v140, %v141
    %v143 = vand.u32 %v142, 4294901760
    %144 = vmatmul.mubr.f32.gmra.mxu0 %v143
    %v145 = vpop.f32.mrf.mxu0
    %v146 = vadd.f32 %v40, %v145
    %v147 = vpop.f32.mrf.mxu0
    %v148 = vadd.f32 %v44, %v147
    %149 = vdwg.mxu0
    %150 = vmatprep.subr.mxu0 0.0
    %151 = vmatpush1.msra.mxu0 0.0
    %152 = vmatprep.subr.mxu0 0.0
    %153 = vmatpush1.msra.mxu0 0.0
    %154 = vmatprep.subr.mxu0 0.0
    %155 = vmatpush1.msra.mxu0 0.0
    %156 = vmatprep.subr.mxu0 0.0
    %157 = vmatpush1.msra.mxu0 0.0
    %158 = vmatprep.subr.mxu0 0.0
    %159 = vmatpush1.msra.mxu0 0.0
    %160 = vmatprep.subr.mxu0 0.0
    %161 = vmatpush1.msra.mxu0 0.0
    %162 = vmatprep.subr.mxu0 0.0
    %163 = vmatpush1.msra.mxu0 0.0
    %164 = vmatprep.subr.mxu0 0.0
    %165 = vmatpush1.msra.mxu0 0.0
    %166 = vmatprep.subr.mxu0 0.0
    %167 = vmatpush1.msra.mxu0 0.0
    %168 = vmatprep.subr.mxu0 0.0
    %169 = vmatpush1.msra.mxu0 0.0
    %170 = vmatprep.subr.mxu0 0.0
    %171 = vmatpush1.msra.mxu0 0.0
    %172 = vmatprep.subr.mxu0 0.0
    %173 = vmatpush1.msra.mxu0 0.0
    %174 = vmatprep.subr.mxu0 0.0
    %175 = vmatpush1.msra.mxu0 0.0
    %176 = vmatprep.subr.mxu0 0.0
    %177 = vmatpush1.msra.mxu0 0.0
    %178 = vmatprep.subr.mxu0 0.0
    %179 = vmatpush1.msra.mxu0 0.0
    %v180 = vand.u32 %v59, 4294901760
    %v181 = vsub.f32 %v59, %v180
    %v182 = vand.u32 %v181, 4294901760
    %v183 = vsub.f32 %v181, %v182
    %v184 = vand.u32 %v183, 4294901760
    %185 = vmatprep.subr.mxu0 %v184
    %v186 = vand.u32 %v57, 4294901760
    %v187 = vsub.f32 %v57, %v186
    %v188 = vand.u32 %v187, 4294901760
    %v189 = vsub.f32 %v187, %v188
    %v190 = vand.u32 %v189, 4294901760
    %191 = vmatpush1.msra.mxu0 %v190
    %192 = vmatprep.subr.mxu0 0.0
    %193 = vmatpush2.msra.mxu0 0.0
    %194 = vmatprep.subr.mxu0 0.0
    %195 = vmatpush2.msra.mxu0 0.0
    %196 = vmatprep.subr.mxu0 0.0
    %197 = vmatpush2.msra.mxu0 0.0
    %198 = vmatprep.subr.mxu0 0.0
    %199 = vmatpush2.msra.mxu0 0.0
    %200 = vmatprep.subr.mxu0 0.0
    %201 = vmatpush2.msra.mxu0 0.0
    %202 = vmatprep.subr.mxu0 0.0
    %203 = vmatpush2.msra.mxu0 0.0
    %204 = vmatprep.subr.mxu0 0.0
    %205 = vmatpush2.msra.mxu0 0.0
    %206 = vmatprep.subr.mxu0 0.0
    %207 = vmatpush2.msra.mxu0 0.0
    %208 = vmatprep.subr.mxu0 0.0
    %209 = vmatpush2.msra.mxu0 0.0
    %210 = vmatprep.subr.mxu0 0.0
    %211 = vmatpush2.msra.mxu0 0.0
    %212 = vmatprep.subr.mxu0 0.0
    %213 = vmatpush2.msra.mxu0 0.0
    %214 = vmatprep.subr.mxu0 0.0
    %215 = vmatpush2.msra.mxu0 0.0
    %216 = vmatprep.subr.mxu0 0.0
    %217 = vmatpush2.msra.mxu0 0.0
    %218 = vmatprep.subr.mxu0 0.0
    %219 = vmatpush2.msra.mxu0 0.0
    %220 = vmatprep.subr.mxu0 0.0
    %221 = vmatpush2.msra.mxu0 0.0
    %222 = vmatprep.subr.mxu0 0.0
    %223 = vmatpush2.msra.mxu0 0.0
    %224 = vmatprep.mubr.f32.mxu0 0.0
    %v225 = vand.u32 %v51, 4294901760
    %226 = vmatmul.mubr.f32.gmra.mxu0 %v225
    %v227 = vpop.f32.mrf.mxu0
    %v228 = vadd.f32 %v135, %v227
    %v229 = vpop.f32.mrf.mxu0
    %v230 = vadd.f32 %v137, %v229
    %231 = vmatprep.mubr.f32.mxu0 0.0
    %v232 = vand.u32 %v54, 4294901760
    %233 = vmatmul.mubr.f32.gmra.mxu0 %v232
    %v234 = vpop.f32.mrf.mxu0
    %v235 = vadd.f32 %v146, %v234
    %v236 = vpop.f32.mrf.mxu0
    %v237 = vadd.f32 %v148, %v236
    %238 = vdwg.mxu0
    %239 = vmatprep.subr.mxu0 0.0
    %240 = vmatpush1.msra.mxu0 0.0
    %241 = vmatprep.subr.mxu0 0.0
    %242 = vmatpush1.msra.mxu0 0.0
    %243 = vmatprep.subr.mxu0 0.0
    %244 = vmatpush1.msra.mxu0 0.0
    %245 = vmatprep.subr.mxu0 0.0
    %246 = vmatpush1.msra.mxu0 0.0
    %247 = vmatprep.subr.mxu0 0.0
    %248 = vmatpush1.msra.mxu0 0.0
    %249 = vmatprep.subr.mxu0 0.0
    %250 = vmatpush1.msra.mxu0 0.0
    %251 = vmatprep.subr.mxu0 0.0
    %252 = vmatpush1.msra.mxu0 0.0
    %253 = vmatprep.subr.mxu0 0.0
    %254 = vmatpush1.msra.mxu0 0.0
    %255 = vmatprep.subr.mxu0 0.0
    %256 = vmatpush1.msra.mxu0 0.0
    %257 = vmatprep.subr.mxu0 0.0
    %258 = vmatpush1.msra.mxu0 0.0
    %259 = vmatprep.subr.mxu0 0.0
    %260 = vmatpush1.msra.mxu0 0.0
    %261 = vmatprep.subr.mxu0 0.0
    %262 = vmatpush1.msra.mxu0 0.0
    %263 = vmatprep.subr.mxu0 0.0
    %264 = vmatpush1.msra.mxu0 0.0
    %265 = vmatprep.subr.mxu0 0.0
    %266 = vmatpush1.msra.mxu0 0.0
    %267 = vmatprep.subr.mxu0 0.0
    %268 = vmatpush1.msra.mxu0 0.0
    %v269 = vand.u32 %v59, 4294901760
    %v270 = vsub.f32 %v59, %v269
    %271 = vmatprep.subr.mxu0 %v270
    %v272 = vand.u32 %v57, 4294901760
    %v273 = vsub.f32 %v57, %v272
    %274 = vmatpush1.msra.mxu0 %v273
    %275 = vmatprep.subr.mxu0 0.0
    %276 = vmatpush2.msra.mxu0 0.0
    %277 = vmatprep.subr.mxu0 0.0
    %278 = vmatpush2.msra.mxu0 0.0
    %279 = vmatprep.subr.mxu0 0.0
    %280 = vmatpush2.msra.mxu0 0.0
    %281 = vmatprep.subr.mxu0 0.0
    %282 = vmatpush2.msra.mxu0 0.0
    %283 = vmatprep.subr.mxu0 0.0
    %284 = vmatpush2.msra.mxu0 0.0
    %285 = vmatprep.subr.mxu0 0.0
    %286 = vmatpush2.msra.mxu0 0.0
    %287 = vmatprep.subr.mxu0 0.0
    %288 = vmatpush2.msra.mxu0 0.0
    %289 = vmatprep.subr.mxu0 0.0
    %290 = vmatpush2.msra.mxu0 0.0
    %291 = vmatprep.subr.mxu0 0.0
    %292 = vmatpush2.msra.mxu0 0.0
    %293 = vmatprep.subr.mxu0 0.0
    %294 = vmatpush2.msra.mxu0 0.0
    %295 = vmatprep.subr.mxu0 0.0
    %296 = vmatpush2.msra.mxu0 0.0
    %297 = vmatprep.subr.mxu0 0.0
    %298 = vmatpush2.msra.mxu0 0.0
    %299 = vmatprep.subr.mxu0 0.0
    %300 = vmatpush2.msra.mxu0 0.0
    %301 = vmatprep.subr.mxu0 0.0
    %302 = vmatpush2.msra.mxu0 0.0
    %303 = vmatprep.subr.mxu0 0.0
    %304 = vmatpush2.msra.mxu0 0.0
    %305 = vmatprep.subr.mxu0 0.0
    %306 = vmatpush2.msra.mxu0 0.0
    %307 = vmatprep.mubr.f32.mxu0 0.0
    %v308 = vand.u32 %v51, 4294901760
    %v309 = vsub.f32 %v51, %v308
    %310 = vmatmul.mubr.f32.gmra.mxu0 %v309
    %v311 = vpop.f32.mrf.mxu0
    %v312 = vadd.f32 %v228, %v311
    %v313 = vpop.f32.mrf.mxu0
    %v314 = vadd.f32 %v230, %v313
    %315 = vmatprep.mubr.f32.mxu0 0.0
    %v316 = vand.u32 %v54, 4294901760
    %v317 = vsub.f32 %v54, %v316
    %318 = vmatmul.mubr.f32.gmra.mxu0 %v317
    %v319 = vpop.f32.mrf.mxu0
    %v320 = vadd.f32 %v235, %v319
    %v321 = vpop.f32.mrf.mxu0
    %v322 = vadd.f32 %v237, %v321
    %323 = vdwg.mxu0
    %324 = vmatprep.subr.mxu0 0.0
    %325 = vmatpush1.msra.mxu0 0.0
    %326 = vmatprep.subr.mxu0 0.0
    %327 = vmatpush1.msra.mxu0 0.0
    %328 = vmatprep.subr.mxu0 0.0
    %329 = vmatpush1.msra.mxu0 0.0
    %330 = vmatprep.subr.mxu0 0.0
    %331 = vmatpush1.msra.mxu0 0.0
    %332 = vmatprep.subr.mxu0 0.0
    %333 = vmatpush1.msra.mxu0 0.0
    %334 = vmatprep.subr.mxu0 0.0
    %335 = vmatpush1.msra.mxu0 0.0
    %336 = vmatprep.subr.mxu0 0.0
    %337 = vmatpush1.msra.mxu0 0.0
    %338 = vmatprep.subr.mxu0 0.0
    %339 = vmatpush1.msra.mxu0 0.0
    %340 = vmatprep.subr.mxu0 0.0
    %341 = vmatpush1.msra.mxu0 0.0
    %342 = vmatprep.subr.mxu0 0.0
    %343 = vmatpush1.msra.mxu0 0.0
    %344 = vmatprep.subr.mxu0 0.0
    %345 = vmatpush1.msra.mxu0 0.0
    %346 = vmatprep.subr.mxu0 0.0
    %347 = vmatpush1.msra.mxu0 0.0
    %348 = vmatprep.subr.mxu0 0.0
    %349 = vmatpush1.msra.mxu0 0.0
    %350 = vmatprep.subr.mxu0 0.0
    %351 = vmatpush1.msra.mxu0 0.0
    %352 = vmatprep.subr.mxu0 0.0
    %353 = vmatpush1.msra.mxu0 0.0
    %v354 = vand.u32 %v59, 4294901760
    %355 = vmatprep.subr.mxu0 %v354
    %v356 = vand.u32 %v57, 4294901760
    %357 = vmatpush1.msra.mxu0 %v356
    %358 = vmatprep.subr.mxu0 0.0
    %359 = vmatpush2.msra.mxu0 0.0
    %360 = vmatprep.subr.mxu0 0.0
    %361 = vmatpush2.msra.mxu0 0.0
    %362 = vmatprep.subr.mxu0 0.0
    %363 = vmatpush2.msra.mxu0 0.0
    %364 = vmatprep.subr.mxu0 0.0
    %365 = vmatpush2.msra.mxu0 0.0
    %366 = vmatprep.subr.mxu0 0.0
    %367 = vmatpush2.msra.mxu0 0.0
    %368 = vmatprep.subr.mxu0 0.0
    %369 = vmatpush2.msra.mxu0 0.0
    %370 = vmatprep.subr.mxu0 0.0
    %371 = vmatpush2.msra.mxu0 0.0
    %372 = vmatprep.subr.mxu0 0.0
    %373 = vmatpush2.msra.mxu0 0.0
    %374 = vmatprep.subr.mxu0 0.0
    %375 = vmatpush2.msra.mxu0 0.0
    %376 = vmatprep.subr.mxu0 0.0
    %377 = vmatpush2.msra.mxu0 0.0
    %378 = vmatprep.subr.mxu0 0.0
    %379 = vmatpush2.msra.mxu0 0.0
    %380 = vmatprep.subr.mxu0 0.0
    %381 = vmatpush2.msra.mxu0 0.0
    %382 = vmatprep.subr.mxu0 0.0
    %383 = vmatpush2.msra.mxu0 0.0
    %384 = vmatprep.subr.mxu0 0.0
    %385 = vmatpush2.msra.mxu0 0.0
    %386 = vmatprep.subr.mxu0 0.0
    %387 = vmatpush2.msra.mxu0 0.0
    %388 = vmatprep.subr.mxu0 0.0
    %389 = vmatpush2.msra.mxu0 0.0
    %390 = vmatprep.mubr.f32.mxu0 0.0
    %v391 = vand.u32 %v51, 4294901760
    %v392 = vsub.f32 %v51, %v391
    %v393 = vand.u32 %v392, 4294901760
    %394 = vmatmul.mubr.f32.gmra.mxu0 %v393
    %v395 = vpop.f32.mrf.mxu0
    %v396 = vadd.f32 %v312, %v395
    %v397 = vpop.f32.mrf.mxu0
    %v398 = vadd.f32 %v314, %v397
    %399 = vmatprep.mubr.f32.mxu0 0.0
    %v400 = vand.u32 %v54, 4294901760
    %v401 = vsub.f32 %v54, %v400
    %v402 = vand.u32 %v401, 4294901760
    %403 = vmatmul.mubr.f32.gmra.mxu0 %v402
    %v404 = vpop.f32.mrf.mxu0
    %v405 = vadd.f32 %v320, %v404
    %v406 = vpop.f32.mrf.mxu0
    %v407 = vadd.f32 %v322, %v406
    %408 = vdwg.mxu0
    %409 = vmatprep.subr.mxu0 0.0
    %410 = vmatpush1.msra.mxu0 0.0
    %411 = vmatprep.subr.mxu0 0.0
    %412 = vmatpush1.msra.mxu0 0.0
    %413 = vmatprep.subr.mxu0 0.0
    %414 = vmatpush1.msra.mxu0 0.0
    %415 = vmatprep.subr.mxu0 0.0
    %416 = vmatpush1.msra.mxu0 0.0
    %417 = vmatprep.subr.mxu0 0.0
    %418 = vmatpush1.msra.mxu0 0.0
    %419 = vmatprep.subr.mxu0 0.0
    %420 = vmatpush1.msra.mxu0 0.0
    %421 = vmatprep.subr.mxu0 0.0
    %422 = vmatpush1.msra.mxu0 0.0
    %423 = vmatprep.subr.mxu0 0.0
    %424 = vmatpush1.msra.mxu0 0.0
    %425 = vmatprep.subr.mxu0 0.0
    %426 = vmatpush1.msra.mxu0 0.0
    %427 = vmatprep.subr.mxu0 0.0
    %428 = vmatpush1.msra.mxu0 0.0
    %429 = vmatprep.subr.mxu0 0.0
    %430 = vmatpush1.msra.mxu0 0.0
    %431 = vmatprep.subr.mxu0 0.0
    %432 = vmatpush1.msra.mxu0 0.0
    %433 = vmatprep.subr.mxu0 0.0
    %434 = vmatpush1.msra.mxu0 0.0
    %435 = vmatprep.subr.mxu0 0.0
    %436 = vmatpush1.msra.mxu0 0.0
    %437 = vmatprep.subr.mxu0 0.0
    %438 = vmatpush1.msra.mxu0 0.0
    %v439 = vand.u32 %v59, 4294901760
    %v440 = vsub.f32 %v59, %v439
    %v441 = vand.u32 %v440, 4294901760
    %442 = vmatprep.subr.mxu0 %v441
    %v443 = vand.u32 %v57, 4294901760
    %v444 = vsub.f32 %v57, %v443
    %v445 = vand.u32 %v444, 4294901760
    %446 = vmatpush1.msra.mxu0 %v445
    %447 = vmatprep.subr.mxu0 0.0
    %448 = vmatpush2.msra.mxu0 0.0
    %449 = vmatprep.subr.mxu0 0.0
    %450 = vmatpush2.msra.mxu0 0.0
    %451 = vmatprep.subr.mxu0 0.0
    %452 = vmatpush2.msra.mxu0 0.0
    %453 = vmatprep.subr.mxu0 0.0
    %454 = vmatpush2.msra.mxu0 0.0
    %455 = vmatprep.subr.mxu0 0.0
    %456 = vmatpush2.msra.mxu0 0.0
    %457 = vmatprep.subr.mxu0 0.0
    %458 = vmatpush2.msra.mxu0 0.0
    %459 = vmatprep.subr.mxu0 0.0
    %460 = vmatpush2.msra.mxu0 0.0
    %461 = vmatprep.subr.mxu0 0.0
    %462 = vmatpush2.msra.mxu0 0.0
    %463 = vmatprep.subr.mxu0 0.0
    %464 = vmatpush2.msra.mxu0 0.0
    %465 = vmatprep.subr.mxu0 0.0
    %466 = vmatpush2.msra.mxu0 0.0
    %467 = vmatprep.subr.mxu0 0.0
    %468 = vmatpush2.msra.mxu0 0.0
    %469 = vmatprep.subr.mxu0 0.0
    %470 = vmatpush2.msra.mxu0 0.0
    %471 = vmatprep.subr.mxu0 0.0
    %472 = vmatpush2.msra.mxu0 0.0
    %473 = vmatprep.subr.mxu0 0.0
    %474 = vmatpush2.msra.mxu0 0.0
    %475 = vmatprep.subr.mxu0 0.0
    %476 = vmatpush2.msra.mxu0 0.0
    %477 = vmatprep.subr.mxu0 0.0
    %478 = vmatpush2.msra.mxu0 0.0
    %479 = vmatprep.mubr.f32.mxu0 0.0
    %v480 = vand.u32 %v51, 4294901760
    %481 = vmatmul.mubr.f32.gmra.mxu0 %v480
    %v482 = vpop.f32.mrf.mxu0
    %v483 = vadd.f32 %v396, %v482
    %v484 = vpop.f32.mrf.mxu0
    %v485 = vadd.f32 %v398, %v484
    %486 = vmatprep.mubr.f32.mxu0 0.0
    %v487 = vand.u32 %v54, 4294901760
    %488 = vmatmul.mubr.f32.gmra.mxu0 %v487
    %v489 = vpop.f32.mrf.mxu0
    %v490 = vadd.f32 %v405, %v489
    %v491 = vpop.f32.mrf.mxu0
    %v492 = vadd.f32 %v407, %v491
    %493 = vdwg.mxu0
    %494 = vmatprep.subr.mxu0 0.0
    %495 = vmatpush1.msra.mxu0 0.0
    %496 = vmatprep.subr.mxu0 0.0
    %497 = vmatpush1.msra.mxu0 0.0
    %498 = vmatprep.subr.mxu0 0.0
    %499 = vmatpush1.msra.mxu0 0.0
    %500 = vmatprep.subr.mxu0 0.0
    %501 = vmatpush1.msra.mxu0 0.0
    %502 = vmatprep.subr.mxu0 0.0
    %503 = vmatpush1.msra.mxu0 0.0
    %504 = vmatprep.subr.mxu0 0.0
    %505 = vmatpush1.msra.mxu0 0.0
    %506 = vmatprep.subr.mxu0 0.0
    %507 = vmatpush1.msra.mxu0 0.0
    %508 = vmatprep.subr.mxu0 0.0
    %509 = vmatpush1.msra.mxu0 0.0
    %510 = vmatprep.subr.mxu0 0.0
    %511 = vmatpush1.msra.mxu0 0.0
    %512 = vmatprep.subr.mxu0 0.0
    %513 = vmatpush1.msra.mxu0 0.0
    %514 = vmatprep.subr.mxu0 0.0
    %515 = vmatpush1.msra.mxu0 0.0
    %516 = vmatprep.subr.mxu0 0.0
    %517 = vmatpush1.msra.mxu0 0.0
    %518 = vmatprep.subr.mxu0 0.0
    %519 = vmatpush1.msra.mxu0 0.0
    %520 = vmatprep.subr.mxu0 0.0
    %521 = vmatpush1.msra.mxu0 0.0
    %522 = vmatprep.subr.mxu0 0.0
    %523 = vmatpush1.msra.mxu0 0.0
    %v524 = vand.u32 %v59, 4294901760
    %525 = vmatprep.subr.mxu0 %v524
    %v526 = vand.u32 %v57, 4294901760
    %527 = vmatpush1.msra.mxu0 %v526
    %528 = vmatprep.subr.mxu0 0.0
    %529 = vmatpush2.msra.mxu0 0.0
    %530 = vmatprep.subr.mxu0 0.0
    %531 = vmatpush2.msra.mxu0 0.0
    %532 = vmatprep.subr.mxu0 0.0
    %533 = vmatpush2.msra.mxu0 0.0
    %534 = vmatprep.subr.mxu0 0.0
    %535 = vmatpush2.msra.mxu0 0.0
    %536 = vmatprep.subr.mxu0 0.0
    %537 = vmatpush2.msra.mxu0 0.0
    %538 = vmatprep.subr.mxu0 0.0
    %539 = vmatpush2.msra.mxu0 0.0
    %540 = vmatprep.subr.mxu0 0.0
    %541 = vmatpush2.msra.mxu0 0.0
    %542 = vmatprep.subr.mxu0 0.0
    %543 = vmatpush2.msra.mxu0 0.0
    %544 = vmatprep.subr.mxu0 0.0
    %545 = vmatpush2.msra.mxu0 0.0
    %546 = vmatprep.subr.mxu0 0.0
    %547 = vmatpush2.msra.mxu0 0.0
    %548 = vmatprep.subr.mxu0 0.0
    %549 = vmatpush2.msra.mxu0 0.0
    %550 = vmatprep.subr.mxu0 0.0
    %551 = vmatpush2.msra.mxu0 0.0
    %552 = vmatprep.subr.mxu0 0.0
    %553 = vmatpush2.msra.mxu0 0.0
    %554 = vmatprep.subr.mxu0 0.0
    %555 = vmatpush2.msra.mxu0 0.0
    %556 = vmatprep.subr.mxu0 0.0
    %557 = vmatpush2.msra.mxu0 0.0
    %558 = vmatprep.subr.mxu0 0.0
    %559 = vmatpush2.msra.mxu0 0.0
    %560 = vmatprep.mubr.f32.mxu0 0.0
    %v561 = vand.u32 %v51, 4294901760
    %562 = vmatmul.mubr.f32.gmra.mxu0 %v561
    %v563 = vpop.f32.mrf.mxu0
    %v564 = vadd.f32 %v483, %v563
    %v565 = vpop.f32.mrf.mxu0
    %v566 = vadd.f32 %v485, %v565
    %567 = vmatprep.mubr.f32.mxu0 0.0
    %v568 = vand.u32 %v54, 4294901760
    %569 = vmatmul.mubr.f32.gmra.mxu0 %v568
    %v570 = vpop.f32.mrf.mxu0
    %v571 = vadd.f32 %v490, %v570
    %v572 = vpop.f32.mrf.mxu0
    %v573 = vadd.f32 %v492, %v572
    %574 = vdwg.mxu0
    %v575 = vld [vmem:[%s5] sm:$0x1]
    %v577 = vlaneseq
    %v578 = vshrl.u32 %v577, 7
    %v579 = vsub.s32 0, %v578
    %v580 = vrot.slane %v575, %v579
    %581 = vrot.lane.b32.xlu0 %v580, 96
    %v582 = vpop.permute.xlu0 %581
    %v584 = vmul.f32 %v564, %v582
    %586 = vrot.lane.b32.xlu0 %v584, 32
    %v587 = vpop.permute.xlu0 %586
    %vm589 = vcmask 254976
    %v590 = vsel %vm589, %v587, 0.0
    %591 = vadd.xlane.f32.xlu0 %v590
    %v592 = vpop.xlane.xlu0 %591
    %v593 = vadd.f32 %v592, %v566
    %vm594 = vcmask 261120
    %v595 = vsel %vm594, %v580, 0
    %597 = vmatprep.subr.mxu0 0.0
    %598 = vmatpush1.msra.mxu0 0.0
    %599 = vmatprep.subr.mxu0 0.0
    %600 = vmatpush1.msra.mxu0 0.0
    %601 = vmatprep.subr.mxu0 0.0
    %602 = vmatpush1.msra.mxu0 0.0
    %603 = vmatprep.subr.mxu0 0.0
    %604 = vmatpush1.msra.mxu0 0.0
    %605 = vmatprep.subr.mxu0 0.0
    %606 = vmatpush1.msra.mxu0 0.0
    %607 = vmatprep.subr.mxu0 0.0
    %608 = vmatpush1.msra.mxu0 0.0
    %609 = vmatprep.subr.mxu0 0.0
    %610 = vmatpush1.msra.mxu0 0.0
    %611 = vmatprep.subr.mxu0 0.0
    %612 = vmatpush1.msra.mxu0 0.0
    %613 = vmatprep.subr.mxu0 0.0
    %614 = vmatpush1.msra.mxu0 0.0
    %615 = vmatprep.subr.mxu0 0.0
    %616 = vmatpush1.msra.mxu0 0.0
    %617 = vmatprep.subr.mxu0 0.0
    %618 = vmatpush1.msra.mxu0 0.0
    %619 = vmatprep.subr.mxu0 0.0
    %620 = vmatpush1.msra.mxu0 0.0
    %621 = vmatprep.subr.mxu0 0.0
    %v622 = vand.u32 %v30, 4294901760
    %623 = vmatpush1.msra.mxu0 %v622
    %624 = vmatprep.subr.mxu0 0.0
    %v625 = vand.u32 %v29, 4294901760
    %626 = vmatpush1.msra.mxu0 %v625
    %627 = vmatprep.subr.mxu0 0.0
    %v628 = vand.u32 %v28, 4294901760
    %629 = vmatpush1.msra.mxu0 %v628
    %630 = vmatprep.subr.mxu0 0.0
    %v631 = vand.u32 %v27, 4294901760
    %632 = vmatpush1.msra.mxu0 %v631
    %633 = vmatprep.subr.mxu0 0.0
    %634 = vmatpush2.msra.mxu0 0.0
    %635 = vmatprep.subr.mxu0 0.0
    %636 = vmatpush2.msra.mxu0 0.0
    %637 = vmatprep.subr.mxu0 0.0
    %638 = vmatpush2.msra.mxu0 0.0
    %639 = vmatprep.subr.mxu0 0.0
    %640 = vmatpush2.msra.mxu0 0.0
    %641 = vmatprep.subr.mxu0 0.0
    %642 = vmatpush2.msra.mxu0 0.0
    %643 = vmatprep.subr.mxu0 0.0
    %644 = vmatpush2.msra.mxu0 0.0
    %645 = vmatprep.subr.mxu0 0.0
    %646 = vmatpush2.msra.mxu0 0.0
    %647 = vmatprep.subr.mxu0 0.0
    %648 = vmatpush2.msra.mxu0 0.0
    %649 = vmatprep.subr.mxu0 0.0
    %650 = vmatpush2.msra.mxu0 0.0
    %651 = vmatprep.subr.mxu0 0.0
    %652 = vmatpush2.msra.mxu0 0.0
    %653 = vmatprep.subr.mxu0 0.0
    %654 = vmatpush2.msra.mxu0 0.0
    %655 = vmatprep.subr.mxu0 0.0
    %656 = vmatpush2.msra.mxu0 0.0
    %657 = vmatprep.subr.mxu0 0.0
    %658 = vmatpush2.msra.mxu0 0.0
    %659 = vmatprep.subr.mxu0 0.0
    %660 = vmatpush2.msra.mxu0 0.0
    %661 = vmatprep.subr.mxu0 0.0
    %662 = vmatpush2.msra.mxu0 0.0
    %663 = vmatprep.subr.mxu0 0.0
    %664 = vmatpush2.msra.mxu0 0.0
    %665 = vmatprep.mubr.f32.mxu0 0.0
    %v666 = vand.u32 %v595, 4294901760
    %v667 = vsub.f32 %v595, %v666
    %v668 = vand.u32 %v667, 4294901760
    %v669 = vsub.f32 %v667, %v668
    %v670 = vand.u32 %v669, 4294901760
    %671 = vmatmul.mubr.f32.gmra.mxu0 %v670
    %v672 = vpop.f32.mrf.mxu0
    %v673 = vadd.f32 0.0, %v672
    %v674 = vpop.f32.mrf.mxu0
    %675 = vdwg.mxu0
    %676 = vmatprep.subr.mxu0 0.0
    %677 = vmatpush1.msra.mxu0 0.0
    %678 = vmatprep.subr.mxu0 0.0
    %679 = vmatpush1.msra.mxu0 0.0
    %680 = vmatprep.subr.mxu0 0.0
    %681 = vmatpush1.msra.mxu0 0.0
    %682 = vmatprep.subr.mxu0 0.0
    %683 = vmatpush1.msra.mxu0 0.0
    %684 = vmatprep.subr.mxu0 0.0
    %685 = vmatpush1.msra.mxu0 0.0
    %686 = vmatprep.subr.mxu0 0.0
    %687 = vmatpush1.msra.mxu0 0.0
    %688 = vmatprep.subr.mxu0 0.0
    %689 = vmatpush1.msra.mxu0 0.0
    %690 = vmatprep.subr.mxu0 0.0
    %691 = vmatpush1.msra.mxu0 0.0
    %692 = vmatprep.subr.mxu0 0.0
    %693 = vmatpush1.msra.mxu0 0.0
    %694 = vmatprep.subr.mxu0 0.0
    %695 = vmatpush1.msra.mxu0 0.0
    %696 = vmatprep.subr.mxu0 0.0
    %697 = vmatpush1.msra.mxu0 0.0
    %698 = vmatprep.subr.mxu0 0.0
    %699 = vmatpush1.msra.mxu0 0.0
    %700 = vmatprep.subr.mxu0 0.0
    %v701 = vand.u32 %v30, 4294901760
    %v702 = vsub.f32 %v30, %v701
    %v703 = vand.u32 %v702, 4294901760
    %v704 = vsub.f32 %v702, %v703
    %v705 = vand.u32 %v704, 4294901760
    %706 = vmatpush1.msra.mxu0 %v705
    %707 = vmatprep.subr.mxu0 0.0
    %v708 = vand.u32 %v29, 4294901760
    %v709 = vsub.f32 %v29, %v708
    %v710 = vand.u32 %v709, 4294901760
    %v711 = vsub.f32 %v709, %v710
    %v712 = vand.u32 %v711, 4294901760
    %713 = vmatpush1.msra.mxu0 %v712
    %714 = vmatprep.subr.mxu0 0.0
    %v715 = vand.u32 %v28, 4294901760
    %v716 = vsub.f32 %v28, %v715
    %v717 = vand.u32 %v716, 4294901760
    %v718 = vsub.f32 %v716, %v717
    %v719 = vand.u32 %v718, 4294901760
    %720 = vmatpush1.msra.mxu0 %v719
    %721 = vmatprep.subr.mxu0 0.0
    %v722 = vand.u32 %v27, 4294901760
    %v723 = vsub.f32 %v27, %v722
    %v724 = vand.u32 %v723, 4294901760
    %v725 = vsub.f32 %v723, %v724
    %v726 = vand.u32 %v725, 4294901760
    %727 = vmatpush1.msra.mxu0 %v726
    %728 = vmatprep.subr.mxu0 0.0
    %729 = vmatpush2.msra.mxu0 0.0
    %730 = vmatprep.subr.mxu0 0.0
    %731 = vmatpush2.msra.mxu0 0.0
    %732 = vmatprep.subr.mxu0 0.0
    %733 = vmatpush2.msra.mxu0 0.0
    %734 = vmatprep.subr.mxu0 0.0
    %735 = vmatpush2.msra.mxu0 0.0
    %736 = vmatprep.subr.mxu0 0.0
    %737 = vmatpush2.msra.mxu0 0.0
    %738 = vmatprep.subr.mxu0 0.0
    %739 = vmatpush2.msra.mxu0 0.0
    %740 = vmatprep.subr.mxu0 0.0
    %741 = vmatpush2.msra.mxu0 0.0
    %742 = vmatprep.subr.mxu0 0.0
    %743 = vmatpush2.msra.mxu0 0.0
    %744 = vmatprep.subr.mxu0 0.0
    %745 = vmatpush2.msra.mxu0 0.0
    %746 = vmatprep.subr.mxu0 0.0
    %747 = vmatpush2.msra.mxu0 0.0
    %748 = vmatprep.subr.mxu0 0.0
    %749 = vmatpush2.msra.mxu0 0.0
    %750 = vmatprep.subr.mxu0 0.0
    %751 = vmatpush2.msra.mxu0 0.0
    %752 = vmatprep.subr.mxu0 0.0
    %753 = vmatpush2.msra.mxu0 0.0
    %754 = vmatprep.subr.mxu0 0.0
    %755 = vmatpush2.msra.mxu0 0.0
    %756 = vmatprep.subr.mxu0 0.0
    %757 = vmatpush2.msra.mxu0 0.0
    %758 = vmatprep.subr.mxu0 0.0
    %759 = vmatpush2.msra.mxu0 0.0
    %760 = vmatprep.mubr.f32.mxu0 0.0
    %v761 = vand.u32 %v595, 4294901760
    %762 = vmatmul.mubr.f32.gmra.mxu0 %v761
    %v763 = vpop.f32.mrf.mxu0
    %v764 = vadd.f32 %v673, %v763
    %v765 = vpop.f32.mrf.mxu0
    %766 = vdwg.mxu0
    %767 = vmatprep.subr.mxu0 0.0
    %768 = vmatpush1.msra.mxu0 0.0
    %769 = vmatprep.subr.mxu0 0.0
    %770 = vmatpush1.msra.mxu0 0.0
    %771 = vmatprep.subr.mxu0 0.0
    %772 = vmatpush1.msra.mxu0 0.0
    %773 = vmatprep.subr.mxu0 0.0
    %774 = vmatpush1.msra.mxu0 0.0
    %775 = vmatprep.subr.mxu0 0.0
    %776 = vmatpush1.msra.mxu0 0.0
    %777 = vmatprep.subr.mxu0 0.0
    %778 = vmatpush1.msra.mxu0 0.0
    %779 = vmatprep.subr.mxu0 0.0
    %780 = vmatpush1.msra.mxu0 0.0
    %781 = vmatprep.subr.mxu0 0.0
    %782 = vmatpush1.msra.mxu0 0.0
    %783 = vmatprep.subr.mxu0 0.0
    %784 = vmatpush1.msra.mxu0 0.0
    %785 = vmatprep.subr.mxu0 0.0
    %786 = vmatpush1.msra.mxu0 0.0
    %787 = vmatprep.subr.mxu0 0.0
    %788 = vmatpush1.msra.mxu0 0.0
    %789 = vmatprep.subr.mxu0 0.0
    %790 = vmatpush1.msra.mxu0 0.0
    %791 = vmatprep.subr.mxu0 0.0
    %v792 = vand.u32 %v30, 4294901760
    %v793 = vsub.f32 %v30, %v792
    %794 = vmatpush1.msra.mxu0 %v793
    %795 = vmatprep.subr.mxu0 0.0
    %v796 = vand.u32 %v29, 4294901760
    %v797 = vsub.f32 %v29, %v796
    %798 = vmatpush1.msra.mxu0 %v797
    %799 = vmatprep.subr.mxu0 0.0
    %v800 = vand.u32 %v28, 4294901760
    %v801 = vsub.f32 %v28, %v800
    %802 = vmatpush1.msra.mxu0 %v801
    %803 = vmatprep.subr.mxu0 0.0
    %v804 = vand.u32 %v27, 4294901760
    %v805 = vsub.f32 %v27, %v804
    %806 = vmatpush1.msra.mxu0 %v805
    %807 = vmatprep.subr.mxu0 0.0
    %808 = vmatpush2.msra.mxu0 0.0
    %809 = vmatprep.subr.mxu0 0.0
    %810 = vmatpush2.msra.mxu0 0.0
    %811 = vmatprep.subr.mxu0 0.0
    %812 = vmatpush2.msra.mxu0 0.0
    %813 = vmatprep.subr.mxu0 0.0
    %814 = vmatpush2.msra.mxu0 0.0
    %815 = vmatprep.subr.mxu0 0.0
    %816 = vmatpush2.msra.mxu0 0.0
    %817 = vmatprep.subr.mxu0 0.0
    %818 = vmatpush2.msra.mxu0 0.0
    %819 = vmatprep.subr.mxu0 0.0
    %820 = vmatpush2.msra.mxu0 0.0
    %821 = vmatprep.subr.mxu0 0.0
    %822 = vmatpush2.msra.mxu0 0.0
    %823 = vmatprep.subr.mxu0 0.0
    %824 = vmatpush2.msra.mxu0 0.0
    %825 = vmatprep.subr.mxu0 0.0
    %826 = vmatpush2.msra.mxu0 0.0
    %827 = vmatprep.subr.mxu0 0.0
    %828 = vmatpush2.msra.mxu0 0.0
    %829 = vmatprep.subr.mxu0 0.0
    %830 = vmatpush2.msra.mxu0 0.0
    %831 = vmatprep.subr.mxu0 0.0
    %832 = vmatpush2.msra.mxu0 0.0
    %833 = vmatprep.subr.mxu0 0.0
    %834 = vmatpush2.msra.mxu0 0.0
    %835 = vmatprep.subr.mxu0 0.0
    %836 = vmatpush2.msra.mxu0 0.0
    %837 = vmatprep.subr.mxu0 0.0
    %838 = vmatpush2.msra.mxu0 0.0
    %839 = vmatprep.mubr.f32.mxu0 0.0
    %v840 = vand.u32 %v595, 4294901760
    %v841 = vsub.f32 %v595, %v840
    %842 = vmatmul.mubr.f32.gmra.mxu0 %v841
    %v843 = vpop.f32.mrf.mxu0
    %v844 = vadd.f32 %v764, %v843
    %v845 = vpop.f32.mrf.mxu0
    %846 = vdwg.mxu0
    %847 = vmatprep.subr.mxu0 0.0
    %848 = vmatpush1.msra.mxu0 0.0
    %849 = vmatprep.subr.mxu0 0.0
    %850 = vmatpush1.msra.mxu0 0.0
    %851 = vmatprep.subr.mxu0 0.0
    %852 = vmatpush1.msra.mxu0 0.0
    %853 = vmatprep.subr.mxu0 0.0
    %854 = vmatpush1.msra.mxu0 0.0
    %855 = vmatprep.subr.mxu0 0.0
    %856 = vmatpush1.msra.mxu0 0.0
    %857 = vmatprep.subr.mxu0 0.0
    %858 = vmatpush1.msra.mxu0 0.0
    %859 = vmatprep.subr.mxu0 0.0
    %860 = vmatpush1.msra.mxu0 0.0
    %861 = vmatprep.subr.mxu0 0.0
    %862 = vmatpush1.msra.mxu0 0.0
    %863 = vmatprep.subr.mxu0 0.0
    %864 = vmatpush1.msra.mxu0 0.0
    %865 = vmatprep.subr.mxu0 0.0
    %866 = vmatpush1.msra.mxu0 0.0
    %867 = vmatprep.subr.mxu0 0.0
    %868 = vmatpush1.msra.mxu0 0.0
    %869 = vmatprep.subr.mxu0 0.0
    %870 = vmatpush1.msra.mxu0 0.0
    %871 = vmatprep.subr.mxu0 0.0
    %v872 = vand.u32 %v30, 4294901760
    %873 = vmatpush1.msra.mxu0 %v872
    %874 = vmatprep.subr.mxu0 0.0
    %v875 = vand.u32 %v29, 4294901760
    %876 = vmatpush1.msra.mxu0 %v875
    %877 = vmatprep.subr.mxu0 0.0
    %v878 = vand.u32 %v28, 4294901760
    %879 = vmatpush1.msra.mxu0 %v878
    %880 = vmatprep.subr.mxu0 0.0
    %v881 = vand.u32 %v27, 4294901760
    %882 = vmatpush1.msra.mxu0 %v881
    %883 = vmatprep.subr.mxu0 0.0
    %884 = vmatpush2.msra.mxu0 0.0
    %885 = vmatprep.subr.mxu0 0.0
    %886 = vmatpush2.msra.mxu0 0.0
    %887 = vmatprep.subr.mxu0 0.0
    %888 = vmatpush2.msra.mxu0 0.0
    %889 = vmatprep.subr.mxu0 0.0
    %890 = vmatpush2.msra.mxu0 0.0
    %891 = vmatprep.subr.mxu0 0.0
    %892 = vmatpush2.msra.mxu0 0.0
    %893 = vmatprep.subr.mxu0 0.0
    %894 = vmatpush2.msra.mxu0 0.0
    %895 = vmatprep.subr.mxu0 0.0
    %896 = vmatpush2.msra.mxu0 0.0
    %897 = vmatprep.subr.mxu0 0.0
    %898 = vmatpush2.msra.mxu0 0.0
    %899 = vmatprep.subr.mxu0 0.0
    %900 = vmatpush2.msra.mxu0 0.0
    %901 = vmatprep.subr.mxu0 0.0
    %902 = vmatpush2.msra.mxu0 0.0
    %903 = vmatprep.subr.mxu0 0.0
    %904 = vmatpush2.msra.mxu0 0.0
    %905 = vmatprep.subr.mxu0 0.0
    %906 = vmatpush2.msra.mxu0 0.0
    %907 = vmatprep.subr.mxu0 0.0
    %908 = vmatpush2.msra.mxu0 0.0
    %909 = vmatprep.subr.mxu0 0.0
    %910 = vmatpush2.msra.mxu0 0.0
    %911 = vmatprep.subr.mxu0 0.0
    %912 = vmatpush2.msra.mxu0 0.0
    %913 = vmatprep.subr.mxu0 0.0
    %914 = vmatpush2.msra.mxu0 0.0
    %915 = vmatprep.mubr.f32.mxu0 0.0
    %v916 = vand.u32 %v595, 4294901760
    %v917 = vsub.f32 %v595, %v916
    %v918 = vand.u32 %v917, 4294901760
    %919 = vmatmul.mubr.f32.gmra.mxu0 %v918
    %v920 = vpop.f32.mrf.mxu0
    %v921 = vadd.f32 %v844, %v920
    %v922 = vpop.f32.mrf.mxu0
    %923 = vdwg.mxu0
    %924 = vmatprep.subr.mxu0 0.0
    %925 = vmatpush1.msra.mxu0 0.0
    %926 = vmatprep.subr.mxu0 0.0
    %927 = vmatpush1.msra.mxu0 0.0
    %928 = vmatprep.subr.mxu0 0.0
    %929 = vmatpush1.msra.mxu0 0.0
    %930 = vmatprep.subr.mxu0 0.0
    %931 = vmatpush1.msra.mxu0 0.0
    %932 = vmatprep.subr.mxu0 0.0
    %933 = vmatpush1.msra.mxu0 0.0
    %934 = vmatprep.subr.mxu0 0.0
    %935 = vmatpush1.msra.mxu0 0.0
    %936 = vmatprep.subr.mxu0 0.0
    %937 = vmatpush1.msra.mxu0 0.0
    %938 = vmatprep.subr.mxu0 0.0
    %939 = vmatpush1.msra.mxu0 0.0
    %940 = vmatprep.subr.mxu0 0.0
    %941 = vmatpush1.msra.mxu0 0.0
    %942 = vmatprep.subr.mxu0 0.0
    %943 = vmatpush1.msra.mxu0 0.0
    %944 = vmatprep.subr.mxu0 0.0
    %945 = vmatpush1.msra.mxu0 0.0
    %946 = vmatprep.subr.mxu0 0.0
    %947 = vmatpush1.msra.mxu0 0.0
    %948 = vmatprep.subr.mxu0 0.0
    %v949 = vand.u32 %v30, 4294901760
    %v950 = vsub.f32 %v30, %v949
    %v951 = vand.u32 %v950, 4294901760
    %952 = vmatpush1.msra.mxu0 %v951
    %953 = vmatprep.subr.mxu0 0.0
    %v954 = vand.u32 %v29, 4294901760
    %v955 = vsub.f32 %v29, %v954
    %v956 = vand.u32 %v955, 4294901760
    %957 = vmatpush1.msra.mxu0 %v956
    %958 = vmatprep.subr.mxu0 0.0
    %v959 = vand.u32 %v28, 4294901760
    %v960 = vsub.f32 %v28, %v959
    %v961 = vand.u32 %v960, 4294901760
    %962 = vmatpush1.msra.mxu0 %v961
    %963 = vmatprep.subr.mxu0 0.0
    %v964 = vand.u32 %v27, 4294901760
    %v965 = vsub.f32 %v27, %v964
    %v966 = vand.u32 %v965, 4294901760
    %967 = vmatpush1.msra.mxu0 %v966
    %968 = vmatprep.subr.mxu0 0.0
    %969 = vmatpush2.msra.mxu0 0.0
    %970 = vmatprep.subr.mxu0 0.0
    %971 = vmatpush2.msra.mxu0 0.0
    %972 = vmatprep.subr.mxu0 0.0
    %973 = vmatpush2.msra.mxu0 0.0
    %974 = vmatprep.subr.mxu0 0.0
    %975 = vmatpush2.msra.mxu0 0.0
    %976 = vmatprep.subr.mxu0 0.0
    %977 = vmatpush2.msra.mxu0 0.0
    %978 = vmatprep.subr.mxu0 0.0
    %979 = vmatpush2.msra.mxu0 0.0
    %980 = vmatprep.subr.mxu0 0.0
    %981 = vmatpush2.msra.mxu0 0.0
    %982 = vmatprep.subr.mxu0 0.0
    %983 = vmatpush2.msra.mxu0 0.0
    %984 = vmatprep.subr.mxu0 0.0
    %985 = vmatpush2.msra.mxu0 0.0
    %986 = vmatprep.subr.mxu0 0.0
    %987 = vmatpush2.msra.mxu0 0.0
    %988 = vmatprep.subr.mxu0 0.0
    %989 = vmatpush2.msra.mxu0 0.0
    %990 = vmatprep.subr.mxu0 0.0
    %991 = vmatpush2.msra.mxu0 0.0
    %992 = vmatprep.subr.mxu0 0.0
    %993 = vmatpush2.msra.mxu0 0.0
    %994 = vmatprep.subr.mxu0 0.0
    %995 = vmatpush2.msra.mxu0 0.0
    %996 = vmatprep.subr.mxu0 0.0
    %997 = vmatpush2.msra.mxu0 0.0
    %998 = vmatprep.subr.mxu0 0.0
    %999 = vmatpush2.msra.mxu0 0.0
    %1000 = vmatprep.mubr.f32.mxu0 0.0
    %v1001 = vand.u32 %v595, 4294901760
    %1002 = vmatmul.mubr.f32.gmra.mxu0 %v1001
    %v1003 = vpop.f32.mrf.mxu0
    %v1004 = vadd.f32 %v921, %v1003
    %v1005 = vpop.f32.mrf.mxu0
    %1006 = vdwg.mxu0
    %1007 = vmatprep.subr.mxu0 0.0
    %1008 = vmatpush1.msra.mxu0 0.0
    %1009 = vmatprep.subr.mxu0 0.0
    %1010 = vmatpush1.msra.mxu0 0.0
    %1011 = vmatprep.subr.mxu0 0.0
    %1012 = vmatpush1.msra.mxu0 0.0
    %1013 = vmatprep.subr.mxu0 0.0
    %1014 = vmatpush1.msra.mxu0 0.0
    %1015 = vmatprep.subr.mxu0 0.0
    %1016 = vmatpush1.msra.mxu0 0.0
    %1017 = vmatprep.subr.mxu0 0.0
    %1018 = vmatpush1.msra.mxu0 0.0
    %1019 = vmatprep.subr.mxu0 0.0
    %1020 = vmatpush1.msra.mxu0 0.0
    %1021 = vmatprep.subr.mxu0 0.0
    %1022 = vmatpush1.msra.mxu0 0.0
    %1023 = vmatprep.subr.mxu0 0.0
    %1024 = vmatpush1.msra.mxu0 0.0
    %1025 = vmatprep.subr.mxu0 0.0
    %1026 = vmatpush1.msra.mxu0 0.0
    %1027 = vmatprep.subr.mxu0 0.0
    %1028 = vmatpush1.msra.mxu0 0.0
    %1029 = vmatprep.subr.mxu0 0.0
    %1030 = vmatpush1.msra.mxu0 0.0
    %1031 = vmatprep.subr.mxu0 0.0
    %v1032 = vand.u32 %v30, 4294901760
    %1033 = vmatpush1.msra.mxu0 %v1032
    %1034 = vmatprep.subr.mxu0 0.0
    %v1035 = vand.u32 %v29, 4294901760
    %1036 = vmatpush1.msra.mxu0 %v1035
    %1037 = vmatprep.subr.mxu0 0.0
    %v1038 = vand.u32 %v28, 4294901760
    %1039 = vmatpush1.msra.mxu0 %v1038
    %1040 = vmatprep.subr.mxu0 0.0
    %v1041 = vand.u32 %v27, 4294901760
    %1042 = vmatpush1.msra.mxu0 %v1041
    %1043 = vmatprep.subr.mxu0 0.0
    %1044 = vmatpush2.msra.mxu0 0.0
    %1045 = vmatprep.subr.mxu0 0.0
    %1046 = vmatpush2.msra.mxu0 0.0
    %1047 = vmatprep.subr.mxu0 0.0
    %1048 = vmatpush2.msra.mxu0 0.0
    %1049 = vmatprep.subr.mxu0 0.0
    %1050 = vmatpush2.msra.mxu0 0.0
    %1051 = vmatprep.subr.mxu0 0.0
    %1052 = vmatpush2.msra.mxu0 0.0
    %1053 = vmatprep.subr.mxu0 0.0
    %1054 = vmatpush2.msra.mxu0 0.0
    %1055 = vmatprep.subr.mxu0 0.0
    %1056 = vmatpush2.msra.mxu0 0.0
    %1057 = vmatprep.subr.mxu0 0.0
    %1058 = vmatpush2.msra.mxu0 0.0
    %1059 = vmatprep.subr.mxu0 0.0
    %1060 = vmatpush2.msra.mxu0 0.0
    %1061 = vmatprep.subr.mxu0 0.0
    %1062 = vmatpush2.msra.mxu0 0.0
    %1063 = vmatprep.subr.mxu0 0.0
    %1064 = vmatpush2.msra.mxu0 0.0
    %1065 = vmatprep.subr.mxu0 0.0
    %1066 = vmatpush2.msra.mxu0 0.0
    %1067 = vmatprep.subr.mxu0 0.0
    %1068 = vmatpush2.msra.mxu0 0.0
    %1069 = vmatprep.subr.mxu0 0.0
    %1070 = vmatpush2.msra.mxu0 0.0
    %1071 = vmatprep.subr.mxu0 0.0
    %1072 = vmatpush2.msra.mxu0 0.0
    %1073 = vmatprep.subr.mxu0 0.0
    %1074 = vmatpush2.msra.mxu0 0.0
    %1075 = vmatprep.mubr.f32.mxu0 0.0
    %v1076 = vand.u32 %v595, 4294901760
    %1077 = vmatmul.mubr.f32.gmra.mxu0 %v1076
    %v1078 = vpop.f32.mrf.mxu0
    %v1079 = vadd.f32 %v1004, %v1078
    %v1080 = vpop.f32.mrf.mxu0
    %1081 = vdwg.mxu0
    %v1082 = vadd.f32 %v564, %v1079
    %v1083 = vmul.f32 %v1082, 0.5
    %v1084 = vtanh.pop %v1083
    %v1085 = vmul.f32 %v1084, 0.5
    %v1086 = vadd.f32 %v1085, 0.5
    %v1088 = vlaneseq
    %v1089 = vshrl.u32 %v1088, 7
    %v1090 = vsub.s32 0, %v1089
    %v1091 = vrot.slane %v31, %v1090
    %1092 = vrot.lane.b32.xlu0 %v1091, 64
    %v1093 = vpop.permute.xlu0 %1092
    %v1095 = vadd.f32 %v1079, %v1093
    %1097 = vrot.lane.b32.xlu0 %v1095, 64
    %v1098 = vpop.permute.xlu0 %1097
    %v1100 = vmul.f32 %v1086, %v1098
    %1102 = vrot.lane.b32.xlu0 %v1100, 64
    %v1103 = vpop.permute.xlu0 %1102
    %v1105 = vadd.f32 %v564, %v1103
    %v1106 = vtanh.pop %v1105
    %v1107 = vsub.f32 1.0, %v1086
    %1109 = vrot.lane.b32.xlu0 %v1106, 96
    %v1110 = vpop.permute.xlu0 %1109
    %v1112 = vmul.f32 %v1107, %v1110
    %1113 = vrot.lane.b32.xlu0 %v580, 32
    %v1114 = vpop.permute.xlu0 %1113
    %v1116 = vmul.f32 %v1086, %v1114
    %v1117 = vadd.f32 %v1112, %v1116
    %v1119 = vrot.slane %v1117, 6
    %1120 = vrot.lane.b32.xlu0 %v1119, 64
    %v1121 = vpop.permute.xlu0 %1120
    %v1123 = vmul.f32 %v564, %v1121
    %1125 = vrot.lane.b32.xlu0 %v1123, 32
    %v1126 = vpop.permute.xlu0 %1125
    %vm1128 = vcmask 257026
    %v1129 = vsel %vm1128, %v1126, 0.0
    %1130 = vadd.xlane.f32.xlu0 %v1129
    %v1131 = vpop.xlane.xlu0 %1130
    %v1132 = vadd.f32 %v1131, %v566
    %1133 = vrot.lane.b32.xlu0 %v1117, 96
    %v1134 = vpop.permute.xlu0 %1133
    %v1135 = vsel %vm594, %v1134, 0
    %1137 = vmatprep.subr.mxu0 0.0
    %1138 = vmatpush1.msra.mxu0 0.0
    %1139 = vmatprep.subr.mxu0 0.0
    %1140 = vmatpush1.msra.mxu0 0.0
    %1141 = vmatprep.subr.mxu0 0.0
    %1142 = vmatpush1.msra.mxu0 0.0
    %1143 = vmatprep.subr.mxu0 0.0
    %1144 = vmatpush1.msra.mxu0 0.0
    %1145 = vmatprep.subr.mxu0 0.0
    %1146 = vmatpush1.msra.mxu0 0.0
    %1147 = vmatprep.subr.mxu0 0.0
    %1148 = vmatpush1.msra.mxu0 0.0
    %1149 = vmatprep.subr.mxu0 0.0
    %1150 = vmatpush1.msra.mxu0 0.0
    %1151 = vmatprep.subr.mxu0 0.0
    %1152 = vmatpush1.msra.mxu0 0.0
    %1153 = vmatprep.subr.mxu0 0.0
    %1154 = vmatpush1.msra.mxu0 0.0
    %1155 = vmatprep.subr.mxu0 0.0
    %1156 = vmatpush1.msra.mxu0 0.0
    %1157 = vmatprep.subr.mxu0 0.0
    %1158 = vmatpush1.msra.mxu0 0.0
    %1159 = vmatprep.subr.mxu0 0.0
    %1160 = vmatpush1.msra.mxu0 0.0
    %1161 = vmatprep.subr.mxu0 0.0
    %v1162 = vand.u32 %v30, 4294901760
    %1163 = vmatpush1.msra.mxu0 %v1162
    %1164 = vmatprep.subr.mxu0 0.0
    %v1165 = vand.u32 %v29, 4294901760
    %1166 = vmatpush1.msra.mxu0 %v1165
    %1167 = vmatprep.subr.mxu0 0.0
    %v1168 = vand.u32 %v28, 4294901760
    %1169 = vmatpush1.msra.mxu0 %v1168
    %1170 = vmatprep.subr.mxu0 0.0
    %v1171 = vand.u32 %v27, 4294901760
    %1172 = vmatpush1.msra.mxu0 %v1171
    %1173 = vmatprep.subr.mxu0 0.0
    %1174 = vmatpush2.msra.mxu0 0.0
    %1175 = vmatprep.subr.mxu0 0.0
    %1176 = vmatpush2.msra.mxu0 0.0
    %1177 = vmatprep.subr.mxu0 0.0
    %1178 = vmatpush2.msra.mxu0 0.0
    %1179 = vmatprep.subr.mxu0 0.0
    %1180 = vmatpush2.msra.mxu0 0.0
    %1181 = vmatprep.subr.mxu0 0.0
    %1182 = vmatpush2.msra.mxu0 0.0
    %1183 = vmatprep.subr.mxu0 0.0
    %1184 = vmatpush2.msra.mxu0 0.0
    %1185 = vmatprep.subr.mxu0 0.0
    %1186 = vmatpush2.msra.mxu0 0.0
    %1187 = vmatprep.subr.mxu0 0.0
    %1188 = vmatpush2.msra.mxu0 0.0
    %1189 = vmatprep.subr.mxu0 0.0
    %1190 = vmatpush2.msra.mxu0 0.0
    %1191 = vmatprep.subr.mxu0 0.0
    %1192 = vmatpush2.msra.mxu0 0.0
    %1193 = vmatprep.subr.mxu0 0.0
    %1194 = vmatpush2.msra.mxu0 0.0
    %1195 = vmatprep.subr.mxu0 0.0
    %1196 = vmatpush2.msra.mxu0 0.0
    %1197 = vmatprep.subr.mxu0 0.0
    %1198 = vmatpush2.msra.mxu0 0.0
    %1199 = vmatprep.subr.mxu0 0.0
    %1200 = vmatpush2.msra.mxu0 0.0
    %1201 = vmatprep.subr.mxu0 0.0
    %1202 = vmatpush2.msra.mxu0 0.0
    %1203 = vmatprep.subr.mxu0 0.0
    %1204 = vmatpush2.msra.mxu0 0.0
    %1205 = vmatprep.mubr.f32.mxu0 0.0
    %v1206 = vand.u32 %v1135, 4294901760
    %v1207 = vsub.f32 %v1135, %v1206
    %v1208 = vand.u32 %v1207, 4294901760
    %v1209 = vsub.f32 %v1207, %v1208
    %v1210 = vand.u32 %v1209, 4294901760
    %1211 = vmatmul.mubr.f32.gmra.mxu0 %v1210
    %v1212 = vpop.f32.mrf.mxu0
    %v1213 = vadd.f32 0.0, %v1212
    %v1214 = vpop.f32.mrf.mxu0
    %1215 = vdwg.mxu0
    %1216 = vmatprep.subr.mxu0 0.0
    %1217 = vmatpush1.msra.mxu0 0.0
    %1218 = vmatprep.subr.mxu0 0.0
    %1219 = vmatpush1.msra.mxu0 0.0
    %1220 = vmatprep.subr.mxu0 0.0
    %1221 = vmatpush1.msra.mxu0 0.0
    %1222 = vmatprep.subr.mxu0 0.0
    %1223 = vmatpush1.msra.mxu0 0.0
    %1224 = vmatprep.subr.mxu0 0.0
    %1225 = vmatpush1.msra.mxu0 0.0
    %1226 = vmatprep.subr.mxu0 0.0
    %1227 = vmatpush1.msra.mxu0 0.0
    %1228 = vmatprep.subr.mxu0 0.0
    %1229 = vmatpush1.msra.mxu0 0.0
    %1230 = vmatprep.subr.mxu0 0.0
    %1231 = vmatpush1.msra.mxu0 0.0
    %1232 = vmatprep.subr.mxu0 0.0
    %1233 = vmatpush1.msra.mxu0 0.0
    %1234 = vmatprep.subr.mxu0 0.0
    %1235 = vmatpush1.msra.mxu0 0.0
    %1236 = vmatprep.subr.mxu0 0.0
    %1237 = vmatpush1.msra.mxu0 0.0
    %1238 = vmatprep.subr.mxu0 0.0
    %1239 = vmatpush1.msra.mxu0 0.0
    %1240 = vmatprep.subr.mxu0 0.0
    %v1241 = vand.u32 %v30, 4294901760
    %v1242 = vsub.f32 %v30, %v1241
    %v1243 = vand.u32 %v1242, 4294901760
    %v1244 = vsub.f32 %v1242, %v1243
    %v1245 = vand.u32 %v1244, 4294901760
    %1246 = vmatpush1.msra.mxu0 %v1245
    %1247 = vmatprep.subr.mxu0 0.0
    %v1248 = vand.u32 %v29, 4294901760
    %v1249 = vsub.f32 %v29, %v1248
    %v1250 = vand.u32 %v1249, 4294901760
    %v1251 = vsub.f32 %v1249, %v1250
    %v1252 = vand.u32 %v1251, 4294901760
    %1253 = vmatpush1.msra.mxu0 %v1252
    %1254 = vmatprep.subr.mxu0 0.0
    %v1255 = vand.u32 %v28, 4294901760
    %v1256 = vsub.f32 %v28, %v1255
    %v1257 = vand.u32 %v1256, 4294901760
    %v1258 = vsub.f32 %v1256, %v1257
    %v1259 = vand.u32 %v1258, 4294901760
    %1260 = vmatpush1.msra.mxu0 %v1259
    %1261 = vmatprep.subr.mxu0 0.0
    %v1262 = vand.u32 %v27, 4294901760
    %v1263 = vsub.f32 %v27, %v1262
    %v1264 = vand.u32 %v1263, 4294901760
    %v1265 = vsub.f32 %v1263, %v1264
    %v1266 = vand.u32 %v1265, 4294901760
    %1267 = vmatpush1.msra.mxu0 %v1266
    %1268 = vmatprep.subr.mxu0 0.0
    %1269 = vmatpush2.msra.mxu0 0.0
    %1270 = vmatprep.subr.mxu0 0.0
    %1271 = vmatpush2.msra.mxu0 0.0
    %1272 = vmatprep.subr.mxu0 0.0
    %1273 = vmatpush2.msra.mxu0 0.0
    %1274 = vmatprep.subr.mxu0 0.0
    %1275 = vmatpush2.msra.mxu0 0.0
    %1276 = vmatprep.subr.mxu0 0.0
    %1277 = vmatpush2.msra.mxu0 0.0
    %1278 = vmatprep.subr.mxu0 0.0
    %1279 = vmatpush2.msra.mxu0 0.0
    %1280 = vmatprep.subr.mxu0 0.0
    %1281 = vmatpush2.msra.mxu0 0.0
    %1282 = vmatprep.subr.mxu0 0.0
    %1283 = vmatpush2.msra.mxu0 0.0
    %1284 = vmatprep.subr.mxu0 0.0
    %1285 = vmatpush2.msra.mxu0 0.0
    %1286 = vmatprep.subr.mxu0 0.0
    %1287 = vmatpush2.msra.mxu0 0.0
    %1288 = vmatprep.subr.mxu0 0.0
    %1289 = vmatpush2.msra.mxu0 0.0
    %1290 = vmatprep.subr.mxu0 0.0
    %1291 = vmatpush2.msra.mxu0 0.0
    %1292 = vmatprep.subr.mxu0 0.0
    %1293 = vmatpush2.msra.mxu0 0.0
    %1294 = vmatprep.subr.mxu0 0.0
    %1295 = vmatpush2.msra.mxu0 0.0
    %1296 = vmatprep.subr.mxu0 0.0
    %1297 = vmatpush2.msra.mxu0 0.0
    %1298 = vmatprep.subr.mxu0 0.0
    %1299 = vmatpush2.msra.mxu0 0.0
    %1300 = vmatprep.mubr.f32.mxu0 0.0
    %v1301 = vand.u32 %v1135, 4294901760
    %1302 = vmatmul.mubr.f32.gmra.mxu0 %v1301
    %v1303 = vpop.f32.mrf.mxu0
    %v1304 = vadd.f32 %v1213, %v1303
    %v1305 = vpop.f32.mrf.mxu0
    %1306 = vdwg.mxu0
    %1307 = vmatprep.subr.mxu0 0.0
    %1308 = vmatpush1.msra.mxu0 0.0
    %1309 = vmatprep.subr.mxu0 0.0
    %1310 = vmatpush1.msra.mxu0 0.0
    %1311 = vmatprep.subr.mxu0 0.0
    %1312 = vmatpush1.msra.mxu0 0.0
    %1313 = vmatprep.subr.mxu0 0.0
    %1314 = vmatpush1.msra.mxu0 0.0
    %1315 = vmatprep.subr.mxu0 0.0
    %1316 = vmatpush1.msra.mxu0 0.0
    %1317 = vmatprep.subr.mxu0 0.0
    %1318 = vmatpush1.msra.mxu0 0.0
    %1319 = vmatprep.subr.mxu0 0.0
    %1320 = vmatpush1.msra.mxu0 0.0
    %1321 = vmatprep.subr.mxu0 0.0
    %1322 = vmatpush1.msra.mxu0 0.0
    %1323 = vmatprep.subr.mxu0 0.0
    %1324 = vmatpush1.msra.mxu0 0.0
    %1325 = vmatprep.subr.mxu0 0.0
    %1326 = vmatpush1.msra.mxu0 0.0
    %1327 = vmatprep.subr.mxu0 0.0
    %1328 = vmatpush1.msra.mxu0 0.0
    %1329 = vmatprep.subr.mxu0 0.0
    %1330 = vmatpush1.msra.mxu0 0.0
    %1331 = vmatprep.subr.mxu0 0.0
    %v1332 = vand.u32 %v30, 4294901760
    %v1333 = vsub.f32 %v30, %v1332
    %1334 = vmatpush1.msra.mxu0 %v1333
    %1335 = vmatprep.subr.mxu0 0.0
    %v1336 = vand.u32 %v29, 4294901760
    %v1337 = vsub.f32 %v29, %v1336
    %1338 = vmatpush1.msra.mxu0 %v1337
    %1339 = vmatprep.subr.mxu0 0.0
    %v1340 = vand.u32 %v28, 4294901760
    %v1341 = vsub.f32 %v28, %v1340
    %1342 = vmatpush1.msra.mxu0 %v1341
    %1343 = vmatprep.subr.mxu0 0.0
    %v1344 = vand.u32 %v27, 4294901760
    %v1345 = vsub.f32 %v27, %v1344
    %1346 = vmatpush1.msra.mxu0 %v1345
    %1347 = vmatprep.subr.mxu0 0.0
    %1348 = vmatpush2.msra.mxu0 0.0
    %1349 = vmatprep.subr.mxu0 0.0
    %1350 = vmatpush2.msra.mxu0 0.0
    %1351 = vmatprep.subr.mxu0 0.0
    %1352 = vmatpush2.msra.mxu0 0.0
    %1353 = vmatprep.subr.mxu0 0.0
    %1354 = vmatpush2.msra.mxu0 0.0
    %1355 = vmatprep.subr.mxu0 0.0
    %1356 = vmatpush2.msra.mxu0 0.0
    %1357 = vmatprep.subr.mxu0 0.0
    %1358 = vmatpush2.msra.mxu0 0.0
    %1359 = vmatprep.subr.mxu0 0.0
    %1360 = vmatpush2.msra.mxu0 0.0
    %1361 = vmatprep.subr.mxu0 0.0
    %1362 = vmatpush2.msra.mxu0 0.0
    %1363 = vmatprep.subr.mxu0 0.0
    %1364 = vmatpush2.msra.mxu0 0.0
    %1365 = vmatprep.subr.mxu0 0.0
    %1366 = vmatpush2.msra.mxu0 0.0
    %1367 = vmatprep.subr.mxu0 0.0
    %1368 = vmatpush2.msra.mxu0 0.0
    %1369 = vmatprep.subr.mxu0 0.0
    %1370 = vmatpush2.msra.mxu0 0.0
    %1371 = vmatprep.subr.mxu0 0.0
    %1372 = vmatpush2.msra.mxu0 0.0
    %1373 = vmatprep.subr.mxu0 0.0
    %1374 = vmatpush2.msra.mxu0 0.0
    %1375 = vmatprep.subr.mxu0 0.0
    %1376 = vmatpush2.msra.mxu0 0.0
    %1377 = vmatprep.subr.mxu0 0.0
    %1378 = vmatpush2.msra.mxu0 0.0
    %1379 = vmatprep.mubr.f32.mxu0 0.0
    %v1380 = vand.u32 %v1135, 4294901760
    %v1381 = vsub.f32 %v1135, %v1380
    %1382 = vmatmul.mubr.f32.gmra.mxu0 %v1381
    %v1383 = vpop.f32.mrf.mxu0
    %v1384 = vadd.f32 %v1304, %v1383
    %v1385 = vpop.f32.mrf.mxu0
    %1386 = vdwg.mxu0
    %1387 = vmatprep.subr.mxu0 0.0
    %1388 = vmatpush1.msra.mxu0 0.0
    %1389 = vmatprep.subr.mxu0 0.0
    %1390 = vmatpush1.msra.mxu0 0.0
    %1391 = vmatprep.subr.mxu0 0.0
    %1392 = vmatpush1.msra.mxu0 0.0
    %1393 = vmatprep.subr.mxu0 0.0
    %1394 = vmatpush1.msra.mxu0 0.0
    %1395 = vmatprep.subr.mxu0 0.0
    %1396 = vmatpush1.msra.mxu0 0.0
    %1397 = vmatprep.subr.mxu0 0.0
    %1398 = vmatpush1.msra.mxu0 0.0
    %1399 = vmatprep.subr.mxu0 0.0
    %1400 = vmatpush1.msra.mxu0 0.0
    %1401 = vmatprep.subr.mxu0 0.0
    %1402 = vmatpush1.msra.mxu0 0.0
    %1403 = vmatprep.subr.mxu0 0.0
    %1404 = vmatpush1.msra.mxu0 0.0
    %1405 = vmatprep.subr.mxu0 0.0
    %1406 = vmatpush1.msra.mxu0 0.0
    %1407 = vmatprep.subr.mxu0 0.0
    %1408 = vmatpush1.msra.mxu0 0.0
    %1409 = vmatprep.subr.mxu0 0.0
    %1410 = vmatpush1.msra.mxu0 0.0
    %1411 = vmatprep.subr.mxu0 0.0
    %v1412 = vand.u32 %v30, 4294901760
    %1413 = vmatpush1.msra.mxu0 %v1412
    %1414 = vmatprep.subr.mxu0 0.0
    %v1415 = vand.u32 %v29, 4294901760
    %1416 = vmatpush1.msra.mxu0 %v1415
    %1417 = vmatprep.subr.mxu0 0.0
    %v1418 = vand.u32 %v28, 4294901760
    %1419 = vmatpush1.msra.mxu0 %v1418
    %1420 = vmatprep.subr.mxu0 0.0
    %v1421 = vand.u32 %v27, 4294901760
    %1422 = vmatpush1.msra.mxu0 %v1421
    %1423 = vmatprep.subr.mxu0 0.0
    %1424 = vmatpush2.msra.mxu0 0.0
    %1425 = vmatprep.subr.mxu0 0.0
    %1426 = vmatpush2.msra.mxu0 0.0
    %1427 = vmatprep.subr.mxu0 0.0
    %1428 = vmatpush2.msra.mxu0 0.0
    %1429 = vmatprep.subr.mxu0 0.0
    %1430 = vmatpush2.msra.mxu0 0.0
    %1431 = vmatprep.subr.mxu0 0.0
    %1432 = vmatpush2.msra.mxu0 0.0
    %1433 = vmatprep.subr.mxu0 0.0
    %1434 = vmatpush2.msra.mxu0 0.0
    %1435 = vmatprep.subr.mxu0 0.0
    %1436 = vmatpush2.msra.mxu0 0.0
    %1437 = vmatprep.subr.mxu0 0.0
    %1438 = vmatpush2.msra.mxu0 0.0
    %1439 = vmatprep.subr.mxu0 0.0
    %1440 = vmatpush2.msra.mxu0 0.0
    %1441 = vmatprep.subr.mxu0 0.0
    %1442 = vmatpush2.msra.mxu0 0.0
    %1443 = vmatprep.subr.mxu0 0.0
    %1444 = vmatpush2.msra.mxu0 0.0
    %1445 = vmatprep.subr.mxu0 0.0
    %1446 = vmatpush2.msra.mxu0 0.0
    %1447 = vmatprep.subr.mxu0 0.0
    %1448 = vmatpush2.msra.mxu0 0.0
    %1449 = vmatprep.subr.mxu0 0.0
    %1450 = vmatpush2.msra.mxu0 0.0
    %1451 = vmatprep.subr.mxu0 0.0
    %1452 = vmatpush2.msra.mxu0 0.0
    %1453 = vmatprep.subr.mxu0 0.0
    %1454 = vmatpush2.msra.mxu0 0.0
    %1455 = vmatprep.mubr.f32.mxu0 0.0
    %v1456 = vand.u32 %v1135, 4294901760
    %v1457 = vsub.f32 %v1135, %v1456
    %v1458 = vand.u32 %v1457, 4294901760
    %1459 = vmatmul.mubr.f32.gmra.mxu0 %v1458
    %v1460 = vpop.f32.mrf.mxu0
    %v1461 = vadd.f32 %v1384, %v1460
    %v1462 = vpop.f32.mrf.mxu0
    %1463 = vdwg.mxu0
    %1464 = vmatprep.subr.mxu0 0.0
    %1465 = vmatpush1.msra.mxu0 0.0
    %1466 = vmatprep.subr.mxu0 0.0
    %1467 = vmatpush1.msra.mxu0 0.0
    %1468 = vmatprep.subr.mxu0 0.0
    %1469 = vmatpush1.msra.mxu0 0.0
    %1470 = vmatprep.subr.mxu0 0.0
    %1471 = vmatpush1.msra.mxu0 0.0
    %1472 = vmatprep.subr.mxu0 0.0
    %1473 = vmatpush1.msra.mxu0 0.0
    %1474 = vmatprep.subr.mxu0 0.0
    %1475 = vmatpush1.msra.mxu0 0.0
    %1476 = vmatprep.subr.mxu0 0.0
    %1477 = vmatpush1.msra.mxu0 0.0
    %1478 = vmatprep.subr.mxu0 0.0
    %1479 = vmatpush1.msra.mxu0 0.0
    %1480 = vmatprep.subr.mxu0 0.0
    %1481 = vmatpush1.msra.mxu0 0.0
    %1482 = vmatprep.subr.mxu0 0.0
    %1483 = vmatpush1.msra.mxu0 0.0
    %1484 = vmatprep.subr.mxu0 0.0
    %1485 = vmatpush1.msra.mxu0 0.0
    %1486 = vmatprep.subr.mxu0 0.0
    %1487 = vmatpush1.msra.mxu0 0.0
    %1488 = vmatprep.subr.mxu0 0.0
    %v1489 = vand.u32 %v30, 4294901760
    %v1490 = vsub.f32 %v30, %v1489
    %v1491 = vand.u32 %v1490, 4294901760
    %1492 = vmatpush1.msra.mxu0 %v1491
    %1493 = vmatprep.subr.mxu0 0.0
    %v1494 = vand.u32 %v29, 4294901760
    %v1495 = vsub.f32 %v29, %v1494
    %v1496 = vand.u32 %v1495, 4294901760
    %1497 = vmatpush1.msra.mxu0 %v1496
    %1498 = vmatprep.subr.mxu0 0.0
    %v1499 = vand.u32 %v28, 4294901760
    %v1500 = vsub.f32 %v28, %v1499
    %v1501 = vand.u32 %v1500, 4294901760
    %1502 = vmatpush1.msra.mxu0 %v1501
    %1503 = vmatprep.subr.mxu0 0.0
    %v1504 = vand.u32 %v27, 4294901760
    %v1505 = vsub.f32 %v27, %v1504
    %v1506 = vand.u32 %v1505, 4294901760
    %1507 = vmatpush1.msra.mxu0 %v1506
    %1508 = vmatprep.subr.mxu0 0.0
    %1509 = vmatpush2.msra.mxu0 0.0
    %1510 = vmatprep.subr.mxu0 0.0
    %1511 = vmatpush2.msra.mxu0 0.0
    %1512 = vmatprep.subr.mxu0 0.0
    %1513 = vmatpush2.msra.mxu0 0.0
    %1514 = vmatprep.subr.mxu0 0.0
    %1515 = vmatpush2.msra.mxu0 0.0
    %1516 = vmatprep.subr.mxu0 0.0
    %1517 = vmatpush2.msra.mxu0 0.0
    %1518 = vmatprep.subr.mxu0 0.0
    %1519 = vmatpush2.msra.mxu0 0.0
    %1520 = vmatprep.subr.mxu0 0.0
    %1521 = vmatpush2.msra.mxu0 0.0
    %1522 = vmatprep.subr.mxu0 0.0
    %1523 = vmatpush2.msra.mxu0 0.0
    %1524 = vmatprep.subr.mxu0 0.0
    %1525 = vmatpush2.msra.mxu0 0.0
    %1526 = vmatprep.subr.mxu0 0.0
    %1527 = vmatpush2.msra.mxu0 0.0
    %1528 = vmatprep.subr.mxu0 0.0
    %1529 = vmatpush2.msra.mxu0 0.0
    %1530 = vmatprep.subr.mxu0 0.0
    %1531 = vmatpush2.msra.mxu0 0.0
    %1532 = vmatprep.subr.mxu0 0.0
    %1533 = vmatpush2.msra.mxu0 0.0
    %1534 = vmatprep.subr.mxu0 0.0
    %1535 = vmatpush2.msra.mxu0 0.0
    %1536 = vmatprep.subr.mxu0 0.0
    %1537 = vmatpush2.msra.mxu0 0.0
    %1538 = vmatprep.subr.mxu0 0.0
    %1539 = vmatpush2.msra.mxu0 0.0
    %1540 = vmatprep.mubr.f32.mxu0 0.0
    %v1541 = vand.u32 %v1135, 4294901760
    %1542 = vmatmul.mubr.f32.gmra.mxu0 %v1541
    %v1543 = vpop.f32.mrf.mxu0
    %v1544 = vadd.f32 %v1461, %v1543
    %v1545 = vpop.f32.mrf.mxu0
    %1546 = vdwg.mxu0
    %1547 = vmatprep.subr.mxu0 0.0
    %1548 = vmatpush1.msra.mxu0 0.0
    %1549 = vmatprep.subr.mxu0 0.0
    %1550 = vmatpush1.msra.mxu0 0.0
    %1551 = vmatprep.subr.mxu0 0.0
    %1552 = vmatpush1.msra.mxu0 0.0
    %1553 = vmatprep.subr.mxu0 0.0
    %1554 = vmatpush1.msra.mxu0 0.0
    %1555 = vmatprep.subr.mxu0 0.0
    %1556 = vmatpush1.msra.mxu0 0.0
    %1557 = vmatprep.subr.mxu0 0.0
    %1558 = vmatpush1.msra.mxu0 0.0
    %1559 = vmatprep.subr.mxu0 0.0
    %1560 = vmatpush1.msra.mxu0 0.0
    %1561 = vmatprep.subr.mxu0 0.0
    %1562 = vmatpush1.msra.mxu0 0.0
    %1563 = vmatprep.subr.mxu0 0.0
    %1564 = vmatpush1.msra.mxu0 0.0
    %1565 = vmatprep.subr.mxu0 0.0
    %1566 = vmatpush1.msra.mxu0 0.0
    %1567 = vmatprep.subr.mxu0 0.0
    %1568 = vmatpush1.msra.mxu0 0.0
    %1569 = vmatprep.subr.mxu0 0.0
    %1570 = vmatpush1.msra.mxu0 0.0
    %1571 = vmatprep.subr.mxu0 0.0
    %v1572 = vand.u32 %v30, 4294901760
    %1573 = vmatpush1.msra.mxu0 %v1572
    %1574 = vmatprep.subr.mxu0 0.0
    %v1575 = vand.u32 %v29, 4294901760
    %1576 = vmatpush1.msra.mxu0 %v1575
    %1577 = vmatprep.subr.mxu0 0.0
    %v1578 = vand.u32 %v28, 4294901760
    %1579 = vmatpush1.msra.mxu0 %v1578
    %1580 = vmatprep.subr.mxu0 0.0
    %v1581 = vand.u32 %v27, 4294901760
    %1582 = vmatpush1.msra.mxu0 %v1581
    %1583 = vmatprep.subr.mxu0 0.0
    %1584 = vmatpush2.msra.mxu0 0.0
    %1585 = vmatprep.subr.mxu0 0.0
    %1586 = vmatpush2.msra.mxu0 0.0
    %1587 = vmatprep.subr.mxu0 0.0
    %1588 = vmatpush2.msra.mxu0 0.0
    %1589 = vmatprep.subr.mxu0 0.0
    %1590 = vmatpush2.msra.mxu0 0.0
    %1591 = vmatprep.subr.mxu0 0.0
    %1592 = vmatpush2.msra.mxu0 0.0
    %1593 = vmatprep.subr.mxu0 0.0
    %1594 = vmatpush2.msra.mxu0 0.0
    %1595 = vmatprep.subr.mxu0 0.0
    %1596 = vmatpush2.msra.mxu0 0.0
    %1597 = vmatprep.subr.mxu0 0.0
    %1598 = vmatpush2.msra.mxu0 0.0
    %1599 = vmatprep.subr.mxu0 0.0
    %1600 = vmatpush2.msra.mxu0 0.0
    %1601 = vmatprep.subr.mxu0 0.0
    %1602 = vmatpush2.msra.mxu0 0.0
    %1603 = vmatprep.subr.mxu0 0.0
    %1604 = vmatpush2.msra.mxu0 0.0
    %1605 = vmatprep.subr.mxu0 0.0
    %1606 = vmatpush2.msra.mxu0 0.0
    %1607 = vmatprep.subr.mxu0 0.0
    %1608 = vmatpush2.msra.mxu0 0.0
    %1609 = vmatprep.subr.mxu0 0.0
    %1610 = vmatpush2.msra.mxu0 0.0
    %1611 = vmatprep.subr.mxu0 0.0
    %1612 = vmatpush2.msra.mxu0 0.0
    %1613 = vmatprep.subr.mxu0 0.0
    %1614 = vmatpush2.msra.mxu0 0.0
    %1615 = vmatprep.mubr.f32.mxu0 0.0
    %v1616 = vand.u32 %v1135, 4294901760
    %1617 = vmatmul.mubr.f32.gmra.mxu0 %v1616
    %v1618 = vpop.f32.mrf.mxu0
    %v1619 = vadd.f32 %v1544, %v1618
    %v1620 = vpop.f32.mrf.mxu0
    %1621 = vdwg.mxu0
    %v1623 = vrot.slane %v1619, 6
    %v1625 = vadd.f32 %v564, %v1623
    %v1626 = vmul.f32 %v1625, 0.5
    %v1627 = vtanh.pop %v1626
    %v1628 = vmul.f32 %v1627, 0.5
    %v1629 = vadd.f32 %v1628, 0.5
    %v1630 = vadd.f32 %v1619, %v1093
    %v1632 = vrot.slane %v1630, 6
    %1633 = vrot.lane.b32.xlu0 %v1632, 64
    %v1634 = vpop.permute.xlu0 %1633
    %v1636 = vmul.f32 %v1629, %v1634
    %1638 = vrot.lane.b32.xlu0 %v1636, 64
    %v1639 = vpop.permute.xlu0 %1638
    %v1641 = vadd.f32 %v564, %v1639
    %v1642 = vtanh.pop %v1641
    %v1643 = vsub.f32 1.0, %v1629
    %1645 = vrot.lane.b32.xlu0 %v1642, 96
    %v1646 = vpop.permute.xlu0 %1645
    %v1648 = vmul.f32 %v1643, %v1646
    %v1650 = vmul.f32 %v1629, %v1119
    %v1651 = vadd.f32 %v1648, %v1650
    %v1653 = vrot.slane %v1651, 6
    %1654 = vrot.lane.b32.xlu0 %v1653, 64
    %v1655 = vpop.permute.xlu0 %1654
    %v1657 = vmul.f32 %v564, %v1655
    %1659 = vrot.lane.b32.xlu0 %v1657, 32
    %v1660 = vpop.permute.xlu0 %1659
    %vm1662 = vcmask 259076
    %v1663 = vsel %vm1662, %v1660, 0.0
    %1664 = vadd.xlane.f32.xlu0 %v1663
    %v1665 = vpop.xlane.xlu0 %1664
    %v1666 = vadd.f32 %v1665, %v566
    %v1667 = vrot.slane %v1651, 2
    %1668 = vrot.lane.b32.xlu0 %v1667, 96
    %v1669 = vpop.permute.xlu0 %1668
    %v1670 = vsel %vm594, %v1669, 0
    %1672 = vmatprep.subr.mxu0 0.0
    %1673 = vmatpush1.msra.mxu0 0.0
    %1674 = vmatprep.subr.mxu0 0.0
    %1675 = vmatpush1.msra.mxu0 0.0
    %1676 = vmatprep.subr.mxu0 0.0
    %1677 = vmatpush1.msra.mxu0 0.0
    %1678 = vmatprep.subr.mxu0 0.0
    %1679 = vmatpush1.msra.mxu0 0.0
    %1680 = vmatprep.subr.mxu0 0.0
    %1681 = vmatpush1.msra.mxu0 0.0
    %1682 = vmatprep.subr.mxu0 0.0
    %1683 = vmatpush1.msra.mxu0 0.0
    %1684 = vmatprep.subr.mxu0 0.0
    %1685 = vmatpush1.msra.mxu0 0.0
    %1686 = vmatprep.subr.mxu0 0.0
    %1687 = vmatpush1.msra.mxu0 0.0
    %1688 = vmatprep.subr.mxu0 0.0
    %1689 = vmatpush1.msra.mxu0 0.0
    %1690 = vmatprep.subr.mxu0 0.0
    %1691 = vmatpush1.msra.mxu0 0.0
    %1692 = vmatprep.subr.mxu0 0.0
    %1693 = vmatpush1.msra.mxu0 0.0
    %1694 = vmatprep.subr.mxu0 0.0
    %1695 = vmatpush1.msra.mxu0 0.0
    %1696 = vmatprep.subr.mxu0 0.0
    %v1697 = vand.u32 %v30, 4294901760
    %1698 = vmatpush1.msra.mxu0 %v1697
    %1699 = vmatprep.subr.mxu0 0.0
    %v1700 = vand.u32 %v29, 4294901760
    %1701 = vmatpush1.msra.mxu0 %v1700
    %1702 = vmatprep.subr.mxu0 0.0
    %v1703 = vand.u32 %v28, 4294901760
    %1704 = vmatpush1.msra.mxu0 %v1703
    %1705 = vmatprep.subr.mxu0 0.0
    %v1706 = vand.u32 %v27, 4294901760
    %1707 = vmatpush1.msra.mxu0 %v1706
    %1708 = vmatprep.subr.mxu0 0.0
    %1709 = vmatpush2.msra.mxu0 0.0
    %1710 = vmatprep.subr.mxu0 0.0
    %1711 = vmatpush2.msra.mxu0 0.0
    %1712 = vmatprep.subr.mxu0 0.0
    %1713 = vmatpush2.msra.mxu0 0.0
    %1714 = vmatprep.subr.mxu0 0.0
    %1715 = vmatpush2.msra.mxu0 0.0
    %1716 = vmatprep.subr.mxu0 0.0
    %1717 = vmatpush2.msra.mxu0 0.0
    %1718 = vmatprep.subr.mxu0 0.0
    %1719 = vmatpush2.msra.mxu0 0.0
    %1720 = vmatprep.subr.mxu0 0.0
    %1721 = vmatpush2.msra.mxu0 0.0
    %1722 = vmatprep.subr.mxu0 0.0
    %1723 = vmatpush2.msra.mxu0 0.0
    %1724 = vmatprep.subr.mxu0 0.0
    %1725 = vmatpush2.msra.mxu0 0.0
    %1726 = vmatprep.subr.mxu0 0.0
    %1727 = vmatpush2.msra.mxu0 0.0
    %1728 = vmatprep.subr.mxu0 0.0
    %1729 = vmatpush2.msra.mxu0 0.0
    %1730 = vmatprep.subr.mxu0 0.0
    %1731 = vmatpush2.msra.mxu0 0.0
    %1732 = vmatprep.subr.mxu0 0.0
    %1733 = vmatpush2.msra.mxu0 0.0
    %1734 = vmatprep.subr.mxu0 0.0
    %1735 = vmatpush2.msra.mxu0 0.0
    %1736 = vmatprep.subr.mxu0 0.0
    %1737 = vmatpush2.msra.mxu0 0.0
    %1738 = vmatprep.subr.mxu0 0.0
    %1739 = vmatpush2.msra.mxu0 0.0
    %1740 = vmatprep.mubr.f32.mxu0 0.0
    %v1741 = vand.u32 %v1670, 4294901760
    %v1742 = vsub.f32 %v1670, %v1741
    %v1743 = vand.u32 %v1742, 4294901760
    %v1744 = vsub.f32 %v1742, %v1743
    %v1745 = vand.u32 %v1744, 4294901760
    %1746 = vmatmul.mubr.f32.gmra.mxu0 %v1745
    %v1747 = vpop.f32.mrf.mxu0
    %v1748 = vadd.f32 0.0, %v1747
    %v1749 = vpop.f32.mrf.mxu0
    %1750 = vdwg.mxu0
    %1751 = vmatprep.subr.mxu0 0.0
    %1752 = vmatpush1.msra.mxu0 0.0
    %1753 = vmatprep.subr.mxu0 0.0
    %1754 = vmatpush1.msra.mxu0 0.0
    %1755 = vmatprep.subr.mxu0 0.0
    %1756 = vmatpush1.msra.mxu0 0.0
    %1757 = vmatprep.subr.mxu0 0.0
    %1758 = vmatpush1.msra.mxu0 0.0
    %1759 = vmatprep.subr.mxu0 0.0
    %1760 = vmatpush1.msra.mxu0 0.0
    %1761 = vmatprep.subr.mxu0 0.0
    %1762 = vmatpush1.msra.mxu0 0.0
    %1763 = vmatprep.subr.mxu0 0.0
    %1764 = vmatpush1.msra.mxu0 0.0
    %1765 = vmatprep.subr.mxu0 0.0
    %1766 = vmatpush1.msra.mxu0 0.0
    %1767 = vmatprep.subr.mxu0 0.0
    %1768 = vmatpush1.msra.mxu0 0.0
    %1769 = vmatprep.subr.mxu0 0.0
    %1770 = vmatpush1.msra.mxu0 0.0
    %1771 = vmatprep.subr.mxu0 0.0
    %1772 = vmatpush1.msra.mxu0 0.0
    %1773 = vmatprep.subr.mxu0 0.0
    %1774 = vmatpush1.msra.mxu0 0.0
    %1775 = vmatprep.subr.mxu0 0.0
    %v1776 = vand.u32 %v30, 4294901760
    %v1777 = vsub.f32 %v30, %v1776
    %v1778 = vand.u32 %v1777, 4294901760
    %v1779 = vsub.f32 %v1777, %v1778
    %v1780 = vand.u32 %v1779, 4294901760
    %1781 = vmatpush1.msra.mxu0 %v1780
    %1782 = vmatprep.subr.mxu0 0.0
    %v1783 = vand.u32 %v29, 4294901760
    %v1784 = vsub.f32 %v29, %v1783
    %v1785 = vand.u32 %v1784, 4294901760
    %v1786 = vsub.f32 %v1784, %v1785
    %v1787 = vand.u32 %v1786, 4294901760
    %1788 = vmatpush1.msra.mxu0 %v1787
    %1789 = vmatprep.subr.mxu0 0.0
    %v1790 = vand.u32 %v28, 4294901760
    %v1791 = vsub.f32 %v28, %v1790
    %v1792 = vand.u32 %v1791, 4294901760
    %v1793 = vsub.f32 %v1791, %v1792
    %v1794 = vand.u32 %v1793, 4294901760
    %1795 = vmatpush1.msra.mxu0 %v1794
    %1796 = vmatprep.subr.mxu0 0.0
    %v1797 = vand.u32 %v27, 4294901760
    %v1798 = vsub.f32 %v27, %v1797
    %v1799 = vand.u32 %v1798, 4294901760
    %v1800 = vsub.f32 %v1798, %v1799
    %v1801 = vand.u32 %v1800, 4294901760
    %1802 = vmatpush1.msra.mxu0 %v1801
    %1803 = vmatprep.subr.mxu0 0.0
    %1804 = vmatpush2.msra.mxu0 0.0
    %1805 = vmatprep.subr.mxu0 0.0
    %1806 = vmatpush2.msra.mxu0 0.0
    %1807 = vmatprep.subr.mxu0 0.0
    %1808 = vmatpush2.msra.mxu0 0.0
    %1809 = vmatprep.subr.mxu0 0.0
    %1810 = vmatpush2.msra.mxu0 0.0
    %1811 = vmatprep.subr.mxu0 0.0
    %1812 = vmatpush2.msra.mxu0 0.0
    %1813 = vmatprep.subr.mxu0 0.0
    %1814 = vmatpush2.msra.mxu0 0.0
    %1815 = vmatprep.subr.mxu0 0.0
    %1816 = vmatpush2.msra.mxu0 0.0
    %1817 = vmatprep.subr.mxu0 0.0
    %1818 = vmatpush2.msra.mxu0 0.0
    %1819 = vmatprep.subr.mxu0 0.0
    %1820 = vmatpush2.msra.mxu0 0.0
    %1821 = vmatprep.subr.mxu0 0.0
    %1822 = vmatpush2.msra.mxu0 0.0
    %1823 = vmatprep.subr.mxu0 0.0
    %1824 = vmatpush2.msra.mxu0 0.0
    %1825 = vmatprep.subr.mxu0 0.0
    %1826 = vmatpush2.msra.mxu0 0.0
    %1827 = vmatprep.subr.mxu0 0.0
    %1828 = vmatpush2.msra.mxu0 0.0
    %1829 = vmatprep.subr.mxu0 0.0
    %1830 = vmatpush2.msra.mxu0 0.0
    %1831 = vmatprep.subr.mxu0 0.0
    %1832 = vmatpush2.msra.mxu0 0.0
    %1833 = vmatprep.subr.mxu0 0.0
    %1834 = vmatpush2.msra.mxu0 0.0
    %1835 = vmatprep.mubr.f32.mxu0 0.0
    %v1836 = vand.u32 %v1670, 4294901760
    %1837 = vmatmul.mubr.f32.gmra.mxu0 %v1836
    %v1838 = vpop.f32.mrf.mxu0
    %v1839 = vadd.f32 %v1748, %v1838
    %v1840 = vpop.f32.mrf.mxu0
    %1841 = vdwg.mxu0
    %1842 = vmatprep.subr.mxu0 0.0
    %1843 = vmatpush1.msra.mxu0 0.0
    %1844 = vmatprep.subr.mxu0 0.0
    %1845 = vmatpush1.msra.mxu0 0.0
    %1846 = vmatprep.subr.mxu0 0.0
    %1847 = vmatpush1.msra.mxu0 0.0
    %1848 = vmatprep.subr.mxu0 0.0
    %1849 = vmatpush1.msra.mxu0 0.0
    %1850 = vmatprep.subr.mxu0 0.0
    %1851 = vmatpush1.msra.mxu0 0.0
    %1852 = vmatprep.subr.mxu0 0.0
    %1853 = vmatpush1.msra.mxu0 0.0
    %1854 = vmatprep.subr.mxu0 0.0
    %1855 = vmatpush1.msra.mxu0 0.0
    %1856 = vmatprep.subr.mxu0 0.0
    %1857 = vmatpush1.msra.mxu0 0.0
    %1858 = vmatprep.subr.mxu0 0.0
    %1859 = vmatpush1.msra.mxu0 0.0
    %1860 = vmatprep.subr.mxu0 0.0
    %1861 = vmatpush1.msra.mxu0 0.0
    %1862 = vmatprep.subr.mxu0 0.0
    %1863 = vmatpush1.msra.mxu0 0.0
    %1864 = vmatprep.subr.mxu0 0.0
    %1865 = vmatpush1.msra.mxu0 0.0
    %1866 = vmatprep.subr.mxu0 0.0
    %v1867 = vand.u32 %v30, 4294901760
    %v1868 = vsub.f32 %v30, %v1867
    %1869 = vmatpush1.msra.mxu0 %v1868
    %1870 = vmatprep.subr.mxu0 0.0
    %v1871 = vand.u32 %v29, 4294901760
    %v1872 = vsub.f32 %v29, %v1871
    %1873 = vmatpush1.msra.mxu0 %v1872
    %1874 = vmatprep.subr.mxu0 0.0
    %v1875 = vand.u32 %v28, 4294901760
    %v1876 = vsub.f32 %v28, %v1875
    %1877 = vmatpush1.msra.mxu0 %v1876
    %1878 = vmatprep.subr.mxu0 0.0
    %v1879 = vand.u32 %v27, 4294901760
    %v1880 = vsub.f32 %v27, %v1879
    %1881 = vmatpush1.msra.mxu0 %v1880
    %1882 = vmatprep.subr.mxu0 0.0
    %1883 = vmatpush2.msra.mxu0 0.0
    %1884 = vmatprep.subr.mxu0 0.0
    %1885 = vmatpush2.msra.mxu0 0.0
    %1886 = vmatprep.subr.mxu0 0.0
    %1887 = vmatpush2.msra.mxu0 0.0
    %1888 = vmatprep.subr.mxu0 0.0
    %1889 = vmatpush2.msra.mxu0 0.0
    %1890 = vmatprep.subr.mxu0 0.0
    %1891 = vmatpush2.msra.mxu0 0.0
    %1892 = vmatprep.subr.mxu0 0.0
    %1893 = vmatpush2.msra.mxu0 0.0
    %1894 = vmatprep.subr.mxu0 0.0
    %1895 = vmatpush2.msra.mxu0 0.0
    %1896 = vmatprep.subr.mxu0 0.0
    %1897 = vmatpush2.msra.mxu0 0.0
    %1898 = vmatprep.subr.mxu0 0.0
    %1899 = vmatpush2.msra.mxu0 0.0
    %1900 = vmatprep.subr.mxu0 0.0
    %1901 = vmatpush2.msra.mxu0 0.0
    %1902 = vmatprep.subr.mxu0 0.0
    %1903 = vmatpush2.msra.mxu0 0.0
    %1904 = vmatprep.subr.mxu0 0.0
    %1905 = vmatpush2.msra.mxu0 0.0
    %1906 = vmatprep.subr.mxu0 0.0
    %1907 = vmatpush2.msra.mxu0 0.0
    %1908 = vmatprep.subr.mxu0 0.0
    %1909 = vmatpush2.msra.mxu0 0.0
    %1910 = vmatprep.subr.mxu0 0.0
    %1911 = vmatpush2.msra.mxu0 0.0
    %1912 = vmatprep.subr.mxu0 0.0
    %1913 = vmatpush2.msra.mxu0 0.0
    %1914 = vmatprep.mubr.f32.mxu0 0.0
    %v1915 = vand.u32 %v1670, 4294901760
    %v1916 = vsub.f32 %v1670, %v1915
    %1917 = vmatmul.mubr.f32.gmra.mxu0 %v1916
    %v1918 = vpop.f32.mrf.mxu0
    %v1919 = vadd.f32 %v1839, %v1918
    %v1920 = vpop.f32.mrf.mxu0
    %1921 = vdwg.mxu0
    %1922 = vmatprep.subr.mxu0 0.0
    %1923 = vmatpush1.msra.mxu0 0.0
    %1924 = vmatprep.subr.mxu0 0.0
    %1925 = vmatpush1.msra.mxu0 0.0
    %1926 = vmatprep.subr.mxu0 0.0
    %1927 = vmatpush1.msra.mxu0 0.0
    %1928 = vmatprep.subr.mxu0 0.0
    %1929 = vmatpush1.msra.mxu0 0.0
    %1930 = vmatprep.subr.mxu0 0.0
    %1931 = vmatpush1.msra.mxu0 0.0
    %1932 = vmatprep.subr.mxu0 0.0
    %1933 = vmatpush1.msra.mxu0 0.0
    %1934 = vmatprep.subr.mxu0 0.0
    %1935 = vmatpush1.msra.mxu0 0.0
    %1936 = vmatprep.subr.mxu0 0.0
    %1937 = vmatpush1.msra.mxu0 0.0
    %1938 = vmatprep.subr.mxu0 0.0
    %1939 = vmatpush1.msra.mxu0 0.0
    %1940 = vmatprep.subr.mxu0 0.0
    %1941 = vmatpush1.msra.mxu0 0.0
    %1942 = vmatprep.subr.mxu0 0.0
    %1943 = vmatpush1.msra.mxu0 0.0
    %1944 = vmatprep.subr.mxu0 0.0
    %1945 = vmatpush1.msra.mxu0 0.0
    %1946 = vmatprep.subr.mxu0 0.0
    %v1947 = vand.u32 %v30, 4294901760
    %1948 = vmatpush1.msra.mxu0 %v1947
    %1949 = vmatprep.subr.mxu0 0.0
    %v1950 = vand.u32 %v29, 4294901760
    %1951 = vmatpush1.msra.mxu0 %v1950
    %1952 = vmatprep.subr.mxu0 0.0
    %v1953 = vand.u32 %v28, 4294901760
    %1954 = vmatpush1.msra.mxu0 %v1953
    %1955 = vmatprep.subr.mxu0 0.0
    %v1956 = vand.u32 %v27, 4294901760
    %1957 = vmatpush1.msra.mxu0 %v1956
    %1958 = vmatprep.subr.mxu0 0.0
    %1959 = vmatpush2.msra.mxu0 0.0
    %1960 = vmatprep.subr.mxu0 0.0
    %1961 = vmatpush2.msra.mxu0 0.0
    %1962 = vmatprep.subr.mxu0 0.0
    %1963 = vmatpush2.msra.mxu0 0.0
    %1964 = vmatprep.subr.mxu0 0.0
    %1965 = vmatpush2.msra.mxu0 0.0
    %1966 = vmatprep.subr.mxu0 0.0
    %1967 = vmatpush2.msra.mxu0 0.0
    %1968 = vmatprep.subr.mxu0 0.0
    %1969 = vmatpush2.msra.mxu0 0.0
    %1970 = vmatprep.subr.mxu0 0.0
    %1971 = vmatpush2.msra.mxu0 0.0
    %1972 = vmatprep.subr.mxu0 0.0
    %1973 = vmatpush2.msra.mxu0 0.0
    %1974 = vmatprep.subr.mxu0 0.0
    %1975 = vmatpush2.msra.mxu0 0.0
    %1976 = vmatprep.subr.mxu0 0.0
    %1977 = vmatpush2.msra.mxu0 0.0
    %1978 = vmatprep.subr.mxu0 0.0
    %1979 = vmatpush2.msra.mxu0 0.0
    %1980 = vmatprep.subr.mxu0 0.0
    %1981 = vmatpush2.msra.mxu0 0.0
    %1982 = vmatprep.subr.mxu0 0.0
    %1983 = vmatpush2.msra.mxu0 0.0
    %1984 = vmatprep.subr.mxu0 0.0
    %1985 = vmatpush2.msra.mxu0 0.0
    %1986 = vmatprep.subr.mxu0 0.0
    %1987 = vmatpush2.msra.mxu0 0.0
    %1988 = vmatprep.subr.mxu0 0.0
    %1989 = vmatpush2.msra.mxu0 0.0
    %1990 = vmatprep.mubr.f32.mxu0 0.0
    %v1991 = vand.u32 %v1670, 4294901760
    %v1992 = vsub.f32 %v1670, %v1991
    %v1993 = vand.u32 %v1992, 4294901760
    %1994 = vmatmul.mubr.f32.gmra.mxu0 %v1993
    %v1995 = vpop.f32.mrf.mxu0
    %v1996 = vadd.f32 %v1919, %v1995
    %v1997 = vpop.f32.mrf.mxu0
    %1998 = vdwg.mxu0
    %1999 = vmatprep.subr.mxu0 0.0
    %2000 = vmatpush1.msra.mxu0 0.0
    %2001 = vmatprep.subr.mxu0 0.0
    %2002 = vmatpush1.msra.mxu0 0.0
    %2003 = vmatprep.subr.mxu0 0.0
    %2004 = vmatpush1.msra.mxu0 0.0
    %2005 = vmatprep.subr.mxu0 0.0
    %2006 = vmatpush1.msra.mxu0 0.0
    %2007 = vmatprep.subr.mxu0 0.0
    %2008 = vmatpush1.msra.mxu0 0.0
    %2009 = vmatprep.subr.mxu0 0.0
    %2010 = vmatpush1.msra.mxu0 0.0
    %2011 = vmatprep.subr.mxu0 0.0
    %2012 = vmatpush1.msra.mxu0 0.0
    %2013 = vmatprep.subr.mxu0 0.0
    %2014 = vmatpush1.msra.mxu0 0.0
    %2015 = vmatprep.subr.mxu0 0.0
    %2016 = vmatpush1.msra.mxu0 0.0
    %2017 = vmatprep.subr.mxu0 0.0
    %2018 = vmatpush1.msra.mxu0 0.0
    %2019 = vmatprep.subr.mxu0 0.0
    %2020 = vmatpush1.msra.mxu0 0.0
    %2021 = vmatprep.subr.mxu0 0.0
    %2022 = vmatpush1.msra.mxu0 0.0
    %2023 = vmatprep.subr.mxu0 0.0
    %v2024 = vand.u32 %v30, 4294901760
    %v2025 = vsub.f32 %v30, %v2024
    %v2026 = vand.u32 %v2025, 4294901760
    %2027 = vmatpush1.msra.mxu0 %v2026
    %2028 = vmatprep.subr.mxu0 0.0
    %v2029 = vand.u32 %v29, 4294901760
    %v2030 = vsub.f32 %v29, %v2029
    %v2031 = vand.u32 %v2030, 4294901760
    %2032 = vmatpush1.msra.mxu0 %v2031
    %2033 = vmatprep.subr.mxu0 0.0
    %v2034 = vand.u32 %v28, 4294901760
    %v2035 = vsub.f32 %v28, %v2034
    %v2036 = vand.u32 %v2035, 4294901760
    %2037 = vmatpush1.msra.mxu0 %v2036
    %2038 = vmatprep.subr.mxu0 0.0
    %v2039 = vand.u32 %v27, 4294901760
    %v2040 = vsub.f32 %v27, %v2039
    %v2041 = vand.u32 %v2040, 4294901760
    %2042 = vmatpush1.msra.mxu0 %v2041
    %2043 = vmatprep.subr.mxu0 0.0
    %2044 = vmatpush2.msra.mxu0 0.0
    %2045 = vmatprep.subr.mxu0 0.0
    %2046 = vmatpush2.msra.mxu0 0.0
    %2047 = vmatprep.subr.mxu0 0.0
    %2048 = vmatpush2.msra.mxu0 0.0
    %2049 = vmatprep.subr.mxu0 0.0
    %2050 = vmatpush2.msra.mxu0 0.0
    %2051 = vmatprep.subr.mxu0 0.0
    %2052 = vmatpush2.msra.mxu0 0.0
    %2053 = vmatprep.subr.mxu0 0.0
    %2054 = vmatpush2.msra.mxu0 0.0
    %2055 = vmatprep.subr.mxu0 0.0
    %2056 = vmatpush2.msra.mxu0 0.0
    %2057 = vmatprep.subr.mxu0 0.0
    %2058 = vmatpush2.msra.mxu0 0.0
    %2059 = vmatprep.subr.mxu0 0.0
    %2060 = vmatpush2.msra.mxu0 0.0
    %2061 = vmatprep.subr.mxu0 0.0
    %2062 = vmatpush2.msra.mxu0 0.0
    %2063 = vmatprep.subr.mxu0 0.0
    %2064 = vmatpush2.msra.mxu0 0.0
    %2065 = vmatprep.subr.mxu0 0.0
    %2066 = vmatpush2.msra.mxu0 0.0
    %2067 = vmatprep.subr.mxu0 0.0
    %2068 = vmatpush2.msra.mxu0 0.0
    %2069 = vmatprep.subr.mxu0 0.0
    %2070 = vmatpush2.msra.mxu0 0.0
    %2071 = vmatprep.subr.mxu0 0.0
    %2072 = vmatpush2.msra.mxu0 0.0
    %2073 = vmatprep.subr.mxu0 0.0
    %2074 = vmatpush2.msra.mxu0 0.0
    %2075 = vmatprep.mubr.f32.mxu0 0.0
    %v2076 = vand.u32 %v1670, 4294901760
    %2077 = vmatmul.mubr.f32.gmra.mxu0 %v2076
    %v2078 = vpop.f32.mrf.mxu0
    %v2079 = vadd.f32 %v1996, %v2078
    %v2080 = vpop.f32.mrf.mxu0
    %2081 = vdwg.mxu0
    %2082 = vmatprep.subr.mxu0 0.0
    %2083 = vmatpush1.msra.mxu0 0.0
    %2084 = vmatprep.subr.mxu0 0.0
    %2085 = vmatpush1.msra.mxu0 0.0
    %2086 = vmatprep.subr.mxu0 0.0
    %2087 = vmatpush1.msra.mxu0 0.0
    %2088 = vmatprep.subr.mxu0 0.0
    %2089 = vmatpush1.msra.mxu0 0.0
    %2090 = vmatprep.subr.mxu0 0.0
    %2091 = vmatpush1.msra.mxu0 0.0
    %2092 = vmatprep.subr.mxu0 0.0
    %2093 = vmatpush1.msra.mxu0 0.0
    %2094 = vmatprep.subr.mxu0 0.0
    %2095 = vmatpush1.msra.mxu0 0.0
    %2096 = vmatprep.subr.mxu0 0.0
    %2097 = vmatpush1.msra.mxu0 0.0
    %2098 = vmatprep.subr.mxu0 0.0
    %2099 = vmatpush1.msra.mxu0 0.0
    %2100 = vmatprep.subr.mxu0 0.0
    %2101 = vmatpush1.msra.mxu0 0.0
    %2102 = vmatprep.subr.mxu0 0.0
    %2103 = vmatpush1.msra.mxu0 0.0
    %2104 = vmatprep.subr.mxu0 0.0
    %2105 = vmatpush1.msra.mxu0 0.0
    %2106 = vmatprep.subr.mxu0 0.0
    %v2107 = vand.u32 %v30, 4294901760
    %2108 = vmatpush1.msra.mxu0 %v2107
    %2109 = vmatprep.subr.mxu0 0.0
    %v2110 = vand.u32 %v29, 4294901760
    %2111 = vmatpush1.msra.mxu0 %v2110
    %2112 = vmatprep.subr.mxu0 0.0
    %v2113 = vand.u32 %v28, 4294901760
    %2114 = vmatpush1.msra.mxu0 %v2113
    %2115 = vmatprep.subr.mxu0 0.0
    %v2116 = vand.u32 %v27, 4294901760
    %2117 = vmatpush1.msra.mxu0 %v2116
    %2118 = vmatprep.subr.mxu0 0.0
    %2119 = vmatpush2.msra.mxu0 0.0
    %2120 = vmatprep.subr.mxu0 0.0
    %2121 = vmatpush2.msra.mxu0 0.0
    %2122 = vmatprep.subr.mxu0 0.0
    %2123 = vmatpush2.msra.mxu0 0.0
    %2124 = vmatprep.subr.mxu0 0.0
    %2125 = vmatpush2.msra.mxu0 0.0
    %2126 = vmatprep.subr.mxu0 0.0
    %2127 = vmatpush2.msra.mxu0 0.0
    %2128 = vmatprep.subr.mxu0 0.0
    %2129 = vmatpush2.msra.mxu0 0.0
    %2130 = vmatprep.subr.mxu0 0.0
    %2131 = vmatpush2.msra.mxu0 0.0
    %2132 = vmatprep.subr.mxu0 0.0
    %2133 = vmatpush2.msra.mxu0 0.0
    %2134 = vmatprep.subr.mxu0 0.0
    %2135 = vmatpush2.msra.mxu0 0.0
    %2136 = vmatprep.subr.mxu0 0.0
    %2137 = vmatpush2.msra.mxu0 0.0
    %2138 = vmatprep.subr.mxu0 0.0
    %2139 = vmatpush2.msra.mxu0 0.0
    %2140 = vmatprep.subr.mxu0 0.0
    %2141 = vmatpush2.msra.mxu0 0.0
    %2142 = vmatprep.subr.mxu0 0.0
    %2143 = vmatpush2.msra.mxu0 0.0
    %2144 = vmatprep.subr.mxu0 0.0
    %2145 = vmatpush2.msra.mxu0 0.0
    %2146 = vmatprep.subr.mxu0 0.0
    %2147 = vmatpush2.msra.mxu0 0.0
    %2148 = vmatprep.subr.mxu0 0.0
    %2149 = vmatpush2.msra.mxu0 0.0
    %2150 = vmatprep.mubr.f32.mxu0 0.0
    %v2151 = vand.u32 %v1670, 4294901760
    %2152 = vmatmul.mubr.f32.gmra.mxu0 %v2151
    %v2153 = vpop.f32.mrf.mxu0
    %v2154 = vadd.f32 %v2079, %v2153
    %v2155 = vpop.f32.mrf.mxu0
    %2156 = vdwg.mxu0
    %v2158 = vrot.slane %v2154, 4
    %v2160 = vadd.f32 %v564, %v2158
    %v2161 = vmul.f32 %v2160, 0.5
    %v2162 = vtanh.pop %v2161
    %v2163 = vmul.f32 %v2162, 0.5
    %v2164 = vadd.f32 %v2163, 0.5
    %v2165 = vadd.f32 %v2154, %v1093
    %v2167 = vrot.slane %v2165, 4
    %2168 = vrot.lane.b32.xlu0 %v2167, 64
    %v2169 = vpop.permute.xlu0 %2168
    %v2171 = vmul.f32 %v2164, %v2169
    %2173 = vrot.lane.b32.xlu0 %v2171, 64
    %v2174 = vpop.permute.xlu0 %2173
    %v2176 = vadd.f32 %v564, %v2174
    %v2177 = vtanh.pop %v2176
    %v2178 = vsub.f32 1.0, %v2164
    %2180 = vrot.lane.b32.xlu0 %v2177, 96
    %v2181 = vpop.permute.xlu0 %2180
    %v2183 = vmul.f32 %v2178, %v2181
    %v2185 = vmul.f32 %v2164, %v1653
    %v2186 = vadd.f32 %v2183, %v2185
    %v2188 = vrot.slane %v2186, 6
    %2189 = vrot.lane.b32.xlu0 %v2188, 64
    %v2190 = vpop.permute.xlu0 %2189
    %v2192 = vmul.f32 %v564, %v2190
    %2194 = vrot.lane.b32.xlu0 %v2192, 32
    %v2195 = vpop.permute.xlu0 %2194
    %vm2197 = vcmask 261126
    %v2198 = vsel %vm2197, %v2195, 0.0
    %2199 = vadd.xlane.f32.xlu0 %v2198
    %v2200 = vpop.xlane.xlu0 %2199
    %v2201 = vadd.f32 %v2200, %v566
    %v2202 = vrot.slane %v2186, 4
    %2203 = vrot.lane.b32.xlu0 %v2202, 96
    %v2204 = vpop.permute.xlu0 %2203
    %v2205 = vsel %vm594, %v2204, 0
    %2207 = vmatprep.subr.mxu0 0.0
    %2208 = vmatpush1.msra.mxu0 0.0
    %2209 = vmatprep.subr.mxu0 0.0
    %2210 = vmatpush1.msra.mxu0 0.0
    %2211 = vmatprep.subr.mxu0 0.0
    %2212 = vmatpush1.msra.mxu0 0.0
    %2213 = vmatprep.subr.mxu0 0.0
    %2214 = vmatpush1.msra.mxu0 0.0
    %2215 = vmatprep.subr.mxu0 0.0
    %2216 = vmatpush1.msra.mxu0 0.0
    %2217 = vmatprep.subr.mxu0 0.0
    %2218 = vmatpush1.msra.mxu0 0.0
    %2219 = vmatprep.subr.mxu0 0.0
    %2220 = vmatpush1.msra.mxu0 0.0
    %2221 = vmatprep.subr.mxu0 0.0
    %2222 = vmatpush1.msra.mxu0 0.0
    %2223 = vmatprep.subr.mxu0 0.0
    %2224 = vmatpush1.msra.mxu0 0.0
    %2225 = vmatprep.subr.mxu0 0.0
    %2226 = vmatpush1.msra.mxu0 0.0
    %2227 = vmatprep.subr.mxu0 0.0
    %2228 = vmatpush1.msra.mxu0 0.0
    %2229 = vmatprep.subr.mxu0 0.0
    %2230 = vmatpush1.msra.mxu0 0.0
    %2231 = vmatprep.subr.mxu0 0.0
    %v2232 = vand.u32 %v30, 4294901760
    %2233 = vmatpush1.msra.mxu0 %v2232
    %2234 = vmatprep.subr.mxu0 0.0
    %v2235 = vand.u32 %v29, 4294901760
    %2236 = vmatpush1.msra.mxu0 %v2235
    %2237 = vmatprep.subr.mxu0 0.0
    %v2238 = vand.u32 %v28, 4294901760
    %2239 = vmatpush1.msra.mxu0 %v2238
    %2240 = vmatprep.subr.mxu0 0.0
    %v2241 = vand.u32 %v27, 4294901760
    %2242 = vmatpush1.msra.mxu0 %v2241
    %2243 = vmatprep.subr.mxu0 0.0
    %2244 = vmatpush2.msra.mxu0 0.0
    %2245 = vmatprep.subr.mxu0 0.0
    %2246 = vmatpush2.msra.mxu0 0.0
    %2247 = vmatprep.subr.mxu0 0.0
    %2248 = vmatpush2.msra.mxu0 0.0
    %2249 = vmatprep.subr.mxu0 0.0
    %2250 = vmatpush2.msra.mxu0 0.0
    %2251 = vmatprep.subr.mxu0 0.0
    %2252 = vmatpush2.msra.mxu0 0.0
    %2253 = vmatprep.subr.mxu0 0.0
    %2254 = vmatpush2.msra.mxu0 0.0
    %2255 = vmatprep.subr.mxu0 0.0
    %2256 = vmatpush2.msra.mxu0 0.0
    %2257 = vmatprep.subr.mxu0 0.0
    %2258 = vmatpush2.msra.mxu0 0.0
    %2259 = vmatprep.subr.mxu0 0.0
    %2260 = vmatpush2.msra.mxu0 0.0
    %2261 = vmatprep.subr.mxu0 0.0
    %2262 = vmatpush2.msra.mxu0 0.0
    %2263 = vmatprep.subr.mxu0 0.0
    %2264 = vmatpush2.msra.mxu0 0.0
    %2265 = vmatprep.subr.mxu0 0.0
    %2266 = vmatpush2.msra.mxu0 0.0
    %2267 = vmatprep.subr.mxu0 0.0
    %2268 = vmatpush2.msra.mxu0 0.0
    %2269 = vmatprep.subr.mxu0 0.0
    %2270 = vmatpush2.msra.mxu0 0.0
    %2271 = vmatprep.subr.mxu0 0.0
    %2272 = vmatpush2.msra.mxu0 0.0
    %2273 = vmatprep.subr.mxu0 0.0
    %2274 = vmatpush2.msra.mxu0 0.0
    %2275 = vmatprep.mubr.f32.mxu0 0.0
    %v2276 = vand.u32 %v2205, 4294901760
    %v2277 = vsub.f32 %v2205, %v2276
    %v2278 = vand.u32 %v2277, 4294901760
    %v2279 = vsub.f32 %v2277, %v2278
    %v2280 = vand.u32 %v2279, 4294901760
    %2281 = vmatmul.mubr.f32.gmra.mxu0 %v2280
    %v2282 = vpop.f32.mrf.mxu0
    %v2283 = vadd.f32 0.0, %v2282
    %v2284 = vpop.f32.mrf.mxu0
    %2285 = vdwg.mxu0
    %2286 = vmatprep.subr.mxu0 0.0
    %2287 = vmatpush1.msra.mxu0 0.0
    %2288 = vmatprep.subr.mxu0 0.0
    %2289 = vmatpush1.msra.mxu0 0.0
    %2290 = vmatprep.subr.mxu0 0.0
    %2291 = vmatpush1.msra.mxu0 0.0
    %2292 = vmatprep.subr.mxu0 0.0
    %2293 = vmatpush1.msra.mxu0 0.0
    %2294 = vmatprep.subr.mxu0 0.0
    %2295 = vmatpush1.msra.mxu0 0.0
    %2296 = vmatprep.subr.mxu0 0.0
    %2297 = vmatpush1.msra.mxu0 0.0
    %2298 = vmatprep.subr.mxu0 0.0
    %2299 = vmatpush1.msra.mxu0 0.0
    %2300 = vmatprep.subr.mxu0 0.0
    %2301 = vmatpush1.msra.mxu0 0.0
    %2302 = vmatprep.subr.mxu0 0.0
    %2303 = vmatpush1.msra.mxu0 0.0
    %2304 = vmatprep.subr.mxu0 0.0
    %2305 = vmatpush1.msra.mxu0 0.0
    %2306 = vmatprep.subr.mxu0 0.0
    %2307 = vmatpush1.msra.mxu0 0.0
    %2308 = vmatprep.subr.mxu0 0.0
    %2309 = vmatpush1.msra.mxu0 0.0
    %2310 = vmatprep.subr.mxu0 0.0
    %v2311 = vand.u32 %v30, 4294901760
    %v2312 = vsub.f32 %v30, %v2311
    %v2313 = vand.u32 %v2312, 4294901760
    %v2314 = vsub.f32 %v2312, %v2313
    %v2315 = vand.u32 %v2314, 4294901760
    %2316 = vmatpush1.msra.mxu0 %v2315
    %2317 = vmatprep.subr.mxu0 0.0
    %v2318 = vand.u32 %v29, 4294901760
    %v2319 = vsub.f32 %v29, %v2318
    %v2320 = vand.u32 %v2319, 4294901760
    %v2321 = vsub.f32 %v2319, %v2320
    %v2322 = vand.u32 %v2321, 4294901760
    %2323 = vmatpush1.msra.mxu0 %v2322
    %2324 = vmatprep.subr.mxu0 0.0
    %v2325 = vand.u32 %v28, 4294901760
    %v2326 = vsub.f32 %v28, %v2325
    %v2327 = vand.u32 %v2326, 4294901760
    %v2328 = vsub.f32 %v2326, %v2327
    %v2329 = vand.u32 %v2328, 4294901760
    %2330 = vmatpush1.msra.mxu0 %v2329
    %2331 = vmatprep.subr.mxu0 0.0
    %v2332 = vand.u32 %v27, 4294901760
    %v2333 = vsub.f32 %v27, %v2332
    %v2334 = vand.u32 %v2333, 4294901760
    %v2335 = vsub.f32 %v2333, %v2334
    %v2336 = vand.u32 %v2335, 4294901760
    %2337 = vmatpush1.msra.mxu0 %v2336
    %2338 = vmatprep.subr.mxu0 0.0
    %2339 = vmatpush2.msra.mxu0 0.0
    %2340 = vmatprep.subr.mxu0 0.0
    %2341 = vmatpush2.msra.mxu0 0.0
    %2342 = vmatprep.subr.mxu0 0.0
    %2343 = vmatpush2.msra.mxu0 0.0
    %2344 = vmatprep.subr.mxu0 0.0
    %2345 = vmatpush2.msra.mxu0 0.0
    %2346 = vmatprep.subr.mxu0 0.0
    %2347 = vmatpush2.msra.mxu0 0.0
    %2348 = vmatprep.subr.mxu0 0.0
    %2349 = vmatpush2.msra.mxu0 0.0
    %2350 = vmatprep.subr.mxu0 0.0
    %2351 = vmatpush2.msra.mxu0 0.0
    %2352 = vmatprep.subr.mxu0 0.0
    %2353 = vmatpush2.msra.mxu0 0.0
    %2354 = vmatprep.subr.mxu0 0.0
    %2355 = vmatpush2.msra.mxu0 0.0
    %2356 = vmatprep.subr.mxu0 0.0
    %2357 = vmatpush2.msra.mxu0 0.0
    %2358 = vmatprep.subr.mxu0 0.0
    %2359 = vmatpush2.msra.mxu0 0.0
    %2360 = vmatprep.subr.mxu0 0.0
    %2361 = vmatpush2.msra.mxu0 0.0
    %2362 = vmatprep.subr.mxu0 0.0
    %2363 = vmatpush2.msra.mxu0 0.0
    %2364 = vmatprep.subr.mxu0 0.0
    %2365 = vmatpush2.msra.mxu0 0.0
    %2366 = vmatprep.subr.mxu0 0.0
    %2367 = vmatpush2.msra.mxu0 0.0
    %2368 = vmatprep.subr.mxu0 0.0
    %2369 = vmatpush2.msra.mxu0 0.0
    %2370 = vmatprep.mubr.f32.mxu0 0.0
    %v2371 = vand.u32 %v2205, 4294901760
    %2372 = vmatmul.mubr.f32.gmra.mxu0 %v2371
    %v2373 = vpop.f32.mrf.mxu0
    %v2374 = vadd.f32 %v2283, %v2373
    %v2375 = vpop.f32.mrf.mxu0
    %2376 = vdwg.mxu0
    %2377 = vmatprep.subr.mxu0 0.0
    %2378 = vmatpush1.msra.mxu0 0.0
    %2379 = vmatprep.subr.mxu0 0.0
    %2380 = vmatpush1.msra.mxu0 0.0
    %2381 = vmatprep.subr.mxu0 0.0
    %2382 = vmatpush1.msra.mxu0 0.0
    %2383 = vmatprep.subr.mxu0 0.0
    %2384 = vmatpush1.msra.mxu0 0.0
    %2385 = vmatprep.subr.mxu0 0.0
    %2386 = vmatpush1.msra.mxu0 0.0
    %2387 = vmatprep.subr.mxu0 0.0
    %2388 = vmatpush1.msra.mxu0 0.0
    %2389 = vmatprep.subr.mxu0 0.0
    %2390 = vmatpush1.msra.mxu0 0.0
    %2391 = vmatprep.subr.mxu0 0.0
    %2392 = vmatpush1.msra.mxu0 0.0
    %2393 = vmatprep.subr.mxu0 0.0
    %2394 = vmatpush1.msra.mxu0 0.0
    %2395 = vmatprep.subr.mxu0 0.0
    %2396 = vmatpush1.msra.mxu0 0.0
    %2397 = vmatprep.subr.mxu0 0.0
    %2398 = vmatpush1.msra.mxu0 0.0
    %2399 = vmatprep.subr.mxu0 0.0
    %2400 = vmatpush1.msra.mxu0 0.0
    %2401 = vmatprep.subr.mxu0 0.0
    %v2402 = vand.u32 %v30, 4294901760
    %v2403 = vsub.f32 %v30, %v2402
    %2404 = vmatpush1.msra.mxu0 %v2403
    %2405 = vmatprep.subr.mxu0 0.0
    %v2406 = vand.u32 %v29, 4294901760
    %v2407 = vsub.f32 %v29, %v2406
    %2408 = vmatpush1.msra.mxu0 %v2407
    %2409 = vmatprep.subr.mxu0 0.0
    %v2410 = vand.u32 %v28, 4294901760
    %v2411 = vsub.f32 %v28, %v2410
    %2412 = vmatpush1.msra.mxu0 %v2411
    %2413 = vmatprep.subr.mxu0 0.0
    %v2414 = vand.u32 %v27, 4294901760
    %v2415 = vsub.f32 %v27, %v2414
    %2416 = vmatpush1.msra.mxu0 %v2415
    %2417 = vmatprep.subr.mxu0 0.0
    %2418 = vmatpush2.msra.mxu0 0.0
    %2419 = vmatprep.subr.mxu0 0.0
    %2420 = vmatpush2.msra.mxu0 0.0
    %2421 = vmatprep.subr.mxu0 0.0
    %2422 = vmatpush2.msra.mxu0 0.0
    %2423 = vmatprep.subr.mxu0 0.0
    %2424 = vmatpush2.msra.mxu0 0.0
    %2425 = vmatprep.subr.mxu0 0.0
    %2426 = vmatpush2.msra.mxu0 0.0
    %2427 = vmatprep.subr.mxu0 0.0
    %2428 = vmatpush2.msra.mxu0 0.0
    %2429 = vmatprep.subr.mxu0 0.0
    %2430 = vmatpush2.msra.mxu0 0.0
    %2431 = vmatprep.subr.mxu0 0.0
    %2432 = vmatpush2.msra.mxu0 0.0
    %2433 = vmatprep.subr.mxu0 0.0
    %2434 = vmatpush2.msra.mxu0 0.0
    %2435 = vmatprep.subr.mxu0 0.0
    %2436 = vmatpush2.msra.mxu0 0.0
    %2437 = vmatprep.subr.mxu0 0.0
    %2438 = vmatpush2.msra.mxu0 0.0
    %2439 = vmatprep.subr.mxu0 0.0
    %2440 = vmatpush2.msra.mxu0 0.0
    %2441 = vmatprep.subr.mxu0 0.0
    %2442 = vmatpush2.msra.mxu0 0.0
    %2443 = vmatprep.subr.mxu0 0.0
    %2444 = vmatpush2.msra.mxu0 0.0
    %2445 = vmatprep.subr.mxu0 0.0
    %2446 = vmatpush2.msra.mxu0 0.0
    %2447 = vmatprep.subr.mxu0 0.0
    %2448 = vmatpush2.msra.mxu0 0.0
    %2449 = vmatprep.mubr.f32.mxu0 0.0
    %v2450 = vand.u32 %v2205, 4294901760
    %v2451 = vsub.f32 %v2205, %v2450
    %2452 = vmatmul.mubr.f32.gmra.mxu0 %v2451
    %v2453 = vpop.f32.mrf.mxu0
    %v2454 = vadd.f32 %v2374, %v2453
    %v2455 = vpop.f32.mrf.mxu0
    %2456 = vdwg.mxu0
    %2457 = vmatprep.subr.mxu0 0.0
    %2458 = vmatpush1.msra.mxu0 0.0
    %2459 = vmatprep.subr.mxu0 0.0
    %2460 = vmatpush1.msra.mxu0 0.0
    %2461 = vmatprep.subr.mxu0 0.0
    %2462 = vmatpush1.msra.mxu0 0.0
    %2463 = vmatprep.subr.mxu0 0.0
    %2464 = vmatpush1.msra.mxu0 0.0
    %2465 = vmatprep.subr.mxu0 0.0
    %2466 = vmatpush1.msra.mxu0 0.0
    %2467 = vmatprep.subr.mxu0 0.0
    %2468 = vmatpush1.msra.mxu0 0.0
    %2469 = vmatprep.subr.mxu0 0.0
    %2470 = vmatpush1.msra.mxu0 0.0
    %2471 = vmatprep.subr.mxu0 0.0
    %2472 = vmatpush1.msra.mxu0 0.0
    %2473 = vmatprep.subr.mxu0 0.0
    %2474 = vmatpush1.msra.mxu0 0.0
    %2475 = vmatprep.subr.mxu0 0.0
    %2476 = vmatpush1.msra.mxu0 0.0
    %2477 = vmatprep.subr.mxu0 0.0
    %2478 = vmatpush1.msra.mxu0 0.0
    %2479 = vmatprep.subr.mxu0 0.0
    %2480 = vmatpush1.msra.mxu0 0.0
    %2481 = vmatprep.subr.mxu0 0.0
    %v2482 = vand.u32 %v30, 4294901760
    %2483 = vmatpush1.msra.mxu0 %v2482
    %2484 = vmatprep.subr.mxu0 0.0
    %v2485 = vand.u32 %v29, 4294901760
    %2486 = vmatpush1.msra.mxu0 %v2485
    %2487 = vmatprep.subr.mxu0 0.0
    %v2488 = vand.u32 %v28, 4294901760
    %2489 = vmatpush1.msra.mxu0 %v2488
    %2490 = vmatprep.subr.mxu0 0.0
    %v2491 = vand.u32 %v27, 4294901760
    %2492 = vmatpush1.msra.mxu0 %v2491
    %2493 = vmatprep.subr.mxu0 0.0
    %2494 = vmatpush2.msra.mxu0 0.0
    %2495 = vmatprep.subr.mxu0 0.0
    %2496 = vmatpush2.msra.mxu0 0.0
    %2497 = vmatprep.subr.mxu0 0.0
    %2498 = vmatpush2.msra.mxu0 0.0
    %2499 = vmatprep.subr.mxu0 0.0
    %2500 = vmatpush2.msra.mxu0 0.0
    %2501 = vmatprep.subr.mxu0 0.0
    %2502 = vmatpush2.msra.mxu0 0.0
    %2503 = vmatprep.subr.mxu0 0.0
    %2504 = vmatpush2.msra.mxu0 0.0
    %2505 = vmatprep.subr.mxu0 0.0
    %2506 = vmatpush2.msra.mxu0 0.0
    %2507 = vmatprep.subr.mxu0 0.0
    %2508 = vmatpush2.msra.mxu0 0.0
    %2509 = vmatprep.subr.mxu0 0.0
    %2510 = vmatpush2.msra.mxu0 0.0
    %2511 = vmatprep.subr.mxu0 0.0
    %2512 = vmatpush2.msra.mxu0 0.0
    %2513 = vmatprep.subr.mxu0 0.0
    %2514 = vmatpush2.msra.mxu0 0.0
    %2515 = vmatprep.subr.mxu0 0.0
    %2516 = vmatpush2.msra.mxu0 0.0
    %2517 = vmatprep.subr.mxu0 0.0
    %2518 = vmatpush2.msra.mxu0 0.0
    %2519 = vmatprep.subr.mxu0 0.0
    %2520 = vmatpush2.msra.mxu0 0.0
    %2521 = vmatprep.subr.mxu0 0.0
    %2522 = vmatpush2.msra.mxu0 0.0
    %2523 = vmatprep.subr.mxu0 0.0
    %2524 = vmatpush2.msra.mxu0 0.0
    %2525 = vmatprep.mubr.f32.mxu0 0.0
    %v2526 = vand.u32 %v2205, 4294901760
    %v2527 = vsub.f32 %v2205, %v2526
    %v2528 = vand.u32 %v2527, 4294901760
    %2529 = vmatmul.mubr.f32.gmra.mxu0 %v2528
    %v2530 = vpop.f32.mrf.mxu0
    %v2531 = vadd.f32 %v2454, %v2530
    %v2532 = vpop.f32.mrf.mxu0
    %2533 = vdwg.mxu0
    %2534 = vmatprep.subr.mxu0 0.0
    %2535 = vmatpush1.msra.mxu0 0.0
    %2536 = vmatprep.subr.mxu0 0.0
    %2537 = vmatpush1.msra.mxu0 0.0
    %2538 = vmatprep.subr.mxu0 0.0
    %2539 = vmatpush1.msra.mxu0 0.0
    %2540 = vmatprep.subr.mxu0 0.0
    %2541 = vmatpush1.msra.mxu0 0.0
    %2542 = vmatprep.subr.mxu0 0.0
    %2543 = vmatpush1.msra.mxu0 0.0
    %2544 = vmatprep.subr.mxu0 0.0
    %2545 = vmatpush1.msra.mxu0 0.0
    %2546 = vmatprep.subr.mxu0 0.0
    %2547 = vmatpush1.msra.mxu0 0.0
    %2548 = vmatprep.subr.mxu0 0.0
    %2549 = vmatpush1.msra.mxu0 0.0
    %2550 = vmatprep.subr.mxu0 0.0
    %2551 = vmatpush1.msra.mxu0 0.0
    %2552 = vmatprep.subr.mxu0 0.0
    %2553 = vmatpush1.msra.mxu0 0.0
    %2554 = vmatprep.subr.mxu0 0.0
    %2555 = vmatpush1.msra.mxu0 0.0
    %2556 = vmatprep.subr.mxu0 0.0
    %2557 = vmatpush1.msra.mxu0 0.0
    %2558 = vmatprep.subr.mxu0 0.0
    %v2559 = vand.u32 %v30, 4294901760
    %v2560 = vsub.f32 %v30, %v2559
    %v2561 = vand.u32 %v2560, 4294901760
    %2562 = vmatpush1.msra.mxu0 %v2561
    %2563 = vmatprep.subr.mxu0 0.0
    %v2564 = vand.u32 %v29, 4294901760
    %v2565 = vsub.f32 %v29, %v2564
    %v2566 = vand.u32 %v2565, 4294901760
    %2567 = vmatpush1.msra.mxu0 %v2566
    %2568 = vmatprep.subr.mxu0 0.0
    %v2569 = vand.u32 %v28, 4294901760
    %v2570 = vsub.f32 %v28, %v2569
    %v2571 = vand.u32 %v2570, 4294901760
    %2572 = vmatpush1.msra.mxu0 %v2571
    %2573 = vmatprep.subr.mxu0 0.0
    %v2574 = vand.u32 %v27, 4294901760
    %v2575 = vsub.f32 %v27, %v2574
    %v2576 = vand.u32 %v2575, 4294901760
    %2577 = vmatpush1.msra.mxu0 %v2576
    %2578 = vmatprep.subr.mxu0 0.0
    %2579 = vmatpush2.msra.mxu0 0.0
    %2580 = vmatprep.subr.mxu0 0.0
    %2581 = vmatpush2.msra.mxu0 0.0
    %2582 = vmatprep.subr.mxu0 0.0
    %2583 = vmatpush2.msra.mxu0 0.0
    %2584 = vmatprep.subr.mxu0 0.0
    %2585 = vmatpush2.msra.mxu0 0.0
    %2586 = vmatprep.subr.mxu0 0.0
    %2587 = vmatpush2.msra.mxu0 0.0
    %2588 = vmatprep.subr.mxu0 0.0
    %2589 = vmatpush2.msra.mxu0 0.0
    %2590 = vmatprep.subr.mxu0 0.0
    %2591 = vmatpush2.msra.mxu0 0.0
    %2592 = vmatprep.subr.mxu0 0.0
    %2593 = vmatpush2.msra.mxu0 0.0
    %2594 = vmatprep.subr.mxu0 0.0
    %2595 = vmatpush2.msra.mxu0 0.0
    %2596 = vmatprep.subr.mxu0 0.0
    %2597 = vmatpush2.msra.mxu0 0.0
    %2598 = vmatprep.subr.mxu0 0.0
    %2599 = vmatpush2.msra.mxu0 0.0
    %2600 = vmatprep.subr.mxu0 0.0
    %2601 = vmatpush2.msra.mxu0 0.0
    %2602 = vmatprep.subr.mxu0 0.0
    %2603 = vmatpush2.msra.mxu0 0.0
    %2604 = vmatprep.subr.mxu0 0.0
    %2605 = vmatpush2.msra.mxu0 0.0
    %2606 = vmatprep.subr.mxu0 0.0
    %2607 = vmatpush2.msra.mxu0 0.0
    %2608 = vmatprep.subr.mxu0 0.0
    %2609 = vmatpush2.msra.mxu0 0.0
    %2610 = vmatprep.mubr.f32.mxu0 0.0
    %v2611 = vand.u32 %v2205, 4294901760
    %2612 = vmatmul.mubr.f32.gmra.mxu0 %v2611
    %v2613 = vpop.f32.mrf.mxu0
    %v2614 = vadd.f32 %v2531, %v2613
    %v2615 = vpop.f32.mrf.mxu0
    %2616 = vdwg.mxu0
    %2617 = vmatprep.subr.mxu0 0.0
    %2618 = vmatpush1.msra.mxu0 0.0
    %2619 = vmatprep.subr.mxu0 0.0
    %2620 = vmatpush1.msra.mxu0 0.0
    %2621 = vmatprep.subr.mxu0 0.0
    %2622 = vmatpush1.msra.mxu0 0.0
    %2623 = vmatprep.subr.mxu0 0.0
    %2624 = vmatpush1.msra.mxu0 0.0
    %2625 = vmatprep.subr.mxu0 0.0
    %2626 = vmatpush1.msra.mxu0 0.0
    %2627 = vmatprep.subr.mxu0 0.0
    %2628 = vmatpush1.msra.mxu0 0.0
    %2629 = vmatprep.subr.mxu0 0.0
    %2630 = vmatpush1.msra.mxu0 0.0
    %2631 = vmatprep.subr.mxu0 0.0
    %2632 = vmatpush1.msra.mxu0 0.0
    %2633 = vmatprep.subr.mxu0 0.0
    %2634 = vmatpush1.msra.mxu0 0.0
    %2635 = vmatprep.subr.mxu0 0.0
    %2636 = vmatpush1.msra.mxu0 0.0
    %2637 = vmatprep.subr.mxu0 0.0
    %2638 = vmatpush1.msra.mxu0 0.0
    %2639 = vmatprep.subr.mxu0 0.0
    %2640 = vmatpush1.msra.mxu0 0.0
    %2641 = vmatprep.subr.mxu0 0.0
    %v2642 = vand.u32 %v30, 4294901760
    %2643 = vmatpush1.msra.mxu0 %v2642
    %2644 = vmatprep.subr.mxu0 0.0
    %v2645 = vand.u32 %v29, 4294901760
    %2646 = vmatpush1.msra.mxu0 %v2645
    %2647 = vmatprep.subr.mxu0 0.0
    %v2648 = vand.u32 %v28, 4294901760
    %2649 = vmatpush1.msra.mxu0 %v2648
    %2650 = vmatprep.subr.mxu0 0.0
    %v2651 = vand.u32 %v27, 4294901760
    %2652 = vmatpush1.msra.mxu0 %v2651
    %2653 = vmatprep.subr.mxu0 0.0
    %2654 = vmatpush2.msra.mxu0 0.0
    %2655 = vmatprep.subr.mxu0 0.0
    %2656 = vmatpush2.msra.mxu0 0.0
    %2657 = vmatprep.subr.mxu0 0.0
    %2658 = vmatpush2.msra.mxu0 0.0
    %2659 = vmatprep.subr.mxu0 0.0
    %2660 = vmatpush2.msra.mxu0 0.0
    %2661 = vmatprep.subr.mxu0 0.0
    %2662 = vmatpush2.msra.mxu0 0.0
    %2663 = vmatprep.subr.mxu0 0.0
    %2664 = vmatpush2.msra.mxu0 0.0
    %2665 = vmatprep.subr.mxu0 0.0
    %2666 = vmatpush2.msra.mxu0 0.0
    %2667 = vmatprep.subr.mxu0 0.0
    %2668 = vmatpush2.msra.mxu0 0.0
    %2669 = vmatprep.subr.mxu0 0.0
    %2670 = vmatpush2.msra.mxu0 0.0
    %2671 = vmatprep.subr.mxu0 0.0
    %2672 = vmatpush2.msra.mxu0 0.0
    %2673 = vmatprep.subr.mxu0 0.0
    %2674 = vmatpush2.msra.mxu0 0.0
    %2675 = vmatprep.subr.mxu0 0.0
    %2676 = vmatpush2.msra.mxu0 0.0
    %2677 = vmatprep.subr.mxu0 0.0
    %2678 = vmatpush2.msra.mxu0 0.0
    %2679 = vmatprep.subr.mxu0 0.0
    %2680 = vmatpush2.msra.mxu0 0.0
    %2681 = vmatprep.subr.mxu0 0.0
    %2682 = vmatpush2.msra.mxu0 0.0
    %2683 = vmatprep.subr.mxu0 0.0
    %2684 = vmatpush2.msra.mxu0 0.0
    %2685 = vmatprep.mubr.f32.mxu0 0.0
    %v2686 = vand.u32 %v2205, 4294901760
    %2687 = vmatmul.mubr.f32.gmra.mxu0 %v2686
    %v2688 = vpop.f32.mrf.mxu0
    %v2689 = vadd.f32 %v2614, %v2688
    %v2690 = vpop.f32.mrf.mxu0
    %2691 = vdwg.mxu0
    %v2693 = vrot.slane %v2689, 2
    %v2695 = vadd.f32 %v564, %v2693
    %v2696 = vmul.f32 %v2695, 0.5
    %v2697 = vtanh.pop %v2696
    %v2698 = vmul.f32 %v2697, 0.5
    %v2699 = vadd.f32 %v2698, 0.5
    %v2700 = vadd.f32 %v2689, %v1093
    %v2702 = vrot.slane %v2700, 2
    %2703 = vrot.lane.b32.xlu0 %v2702, 64
    %v2704 = vpop.permute.xlu0 %2703
    %v2706 = vmul.f32 %v2699, %v2704
    %2708 = vrot.lane.b32.xlu0 %v2706, 64
    %v2709 = vpop.permute.xlu0 %2708
    %v2711 = vadd.f32 %v564, %v2709
    %v2712 = vtanh.pop %v2711
    %v2713 = vsub.f32 1.0, %v2699
    %2715 = vrot.lane.b32.xlu0 %v2712, 96
    %v2716 = vpop.permute.xlu0 %2715
    %v2718 = vmul.f32 %v2713, %v2716
    %v2720 = vmul.f32 %v2699, %v2188
    %v2721 = vadd.f32 %v2718, %v2720
    %v2723 = vrot.slane %v2721, 6
    %2724 = vrot.lane.b32.xlu0 %v2723, 64
    %v2725 = vpop.permute.xlu0 %2724
    %v2727 = vmul.f32 %v571, %v2725
    %2729 = vrot.lane.b32.xlu0 %v2727, 32
    %v2730 = vpop.permute.xlu0 %2729
    %v2732 = vsel %vm589, %v2730, 0.0
    %2733 = vadd.xlane.f32.xlu0 %v2732
    %v2734 = vpop.xlane.xlu0 %2733
    %v2735 = vadd.f32 %v2734, %v573
    %2736 = vrot.lane.b32.xlu0 %v2723, 96
    %v2737 = vpop.permute.xlu0 %2736
    %v2738 = vsel %vm594, %v2737, 0
    %2740 = vmatprep.subr.mxu0 0.0
    %2741 = vmatpush1.msra.mxu0 0.0
    %2742 = vmatprep.subr.mxu0 0.0
    %2743 = vmatpush1.msra.mxu0 0.0
    %2744 = vmatprep.subr.mxu0 0.0
    %2745 = vmatpush1.msra.mxu0 0.0
    %2746 = vmatprep.subr.mxu0 0.0
    %2747 = vmatpush1.msra.mxu0 0.0
    %2748 = vmatprep.subr.mxu0 0.0
    %2749 = vmatpush1.msra.mxu0 0.0
    %2750 = vmatprep.subr.mxu0 0.0
    %2751 = vmatpush1.msra.mxu0 0.0
    %2752 = vmatprep.subr.mxu0 0.0
    %2753 = vmatpush1.msra.mxu0 0.0
    %2754 = vmatprep.subr.mxu0 0.0
    %2755 = vmatpush1.msra.mxu0 0.0
    %2756 = vmatprep.subr.mxu0 0.0
    %2757 = vmatpush1.msra.mxu0 0.0
    %2758 = vmatprep.subr.mxu0 0.0
    %2759 = vmatpush1.msra.mxu0 0.0
    %2760 = vmatprep.subr.mxu0 0.0
    %2761 = vmatpush1.msra.mxu0 0.0
    %2762 = vmatprep.subr.mxu0 0.0
    %2763 = vmatpush1.msra.mxu0 0.0
    %2764 = vmatprep.subr.mxu0 0.0
    %v2765 = vand.u32 %v30, 4294901760
    %2766 = vmatpush1.msra.mxu0 %v2765
    %2767 = vmatprep.subr.mxu0 0.0
    %v2768 = vand.u32 %v29, 4294901760
    %2769 = vmatpush1.msra.mxu0 %v2768
    %2770 = vmatprep.subr.mxu0 0.0
    %v2771 = vand.u32 %v28, 4294901760
    %2772 = vmatpush1.msra.mxu0 %v2771
    %2773 = vmatprep.subr.mxu0 0.0
    %v2774 = vand.u32 %v27, 4294901760
    %2775 = vmatpush1.msra.mxu0 %v2774
    %2776 = vmatprep.subr.mxu0 0.0
    %2777 = vmatpush2.msra.mxu0 0.0
    %2778 = vmatprep.subr.mxu0 0.0
    %2779 = vmatpush2.msra.mxu0 0.0
    %2780 = vmatprep.subr.mxu0 0.0
    %2781 = vmatpush2.msra.mxu0 0.0
    %2782 = vmatprep.subr.mxu0 0.0
    %2783 = vmatpush2.msra.mxu0 0.0
    %2784 = vmatprep.subr.mxu0 0.0
    %2785 = vmatpush2.msra.mxu0 0.0
    %2786 = vmatprep.subr.mxu0 0.0
    %2787 = vmatpush2.msra.mxu0 0.0
    %2788 = vmatprep.subr.mxu0 0.0
    %2789 = vmatpush2.msra.mxu0 0.0
    %2790 = vmatprep.subr.mxu0 0.0
    %2791 = vmatpush2.msra.mxu0 0.0
    %2792 = vmatprep.subr.mxu0 0.0
    %2793 = vmatpush2.msra.mxu0 0.0
    %2794 = vmatprep.subr.mxu0 0.0
    %2795 = vmatpush2.msra.mxu0 0.0
    %2796 = vmatprep.subr.mxu0 0.0
    %2797 = vmatpush2.msra.mxu0 0.0
    %2798 = vmatprep.subr.mxu0 0.0
    %2799 = vmatpush2.msra.mxu0 0.0
    %2800 = vmatprep.subr.mxu0 0.0
    %2801 = vmatpush2.msra.mxu0 0.0
    %2802 = vmatprep.subr.mxu0 0.0
    %2803 = vmatpush2.msra.mxu0 0.0
    %2804 = vmatprep.subr.mxu0 0.0
    %2805 = vmatpush2.msra.mxu0 0.0
    %2806 = vmatprep.subr.mxu0 0.0
    %2807 = vmatpush2.msra.mxu0 0.0
    %2808 = vmatprep.mubr.f32.mxu0 0.0
    %v2809 = vand.u32 %v2738, 4294901760
    %v2810 = vsub.f32 %v2738, %v2809
    %v2811 = vand.u32 %v2810, 4294901760
    %v2812 = vsub.f32 %v2810, %v2811
    %v2813 = vand.u32 %v2812, 4294901760
    %2814 = vmatmul.mubr.f32.gmra.mxu0 %v2813
    %v2815 = vpop.f32.mrf.mxu0
    %v2816 = vadd.f32 0.0, %v2815
    %v2817 = vpop.f32.mrf.mxu0
    %2818 = vdwg.mxu0
    %2819 = vmatprep.subr.mxu0 0.0
    %2820 = vmatpush1.msra.mxu0 0.0
    %2821 = vmatprep.subr.mxu0 0.0
    %2822 = vmatpush1.msra.mxu0 0.0
    %2823 = vmatprep.subr.mxu0 0.0
    %2824 = vmatpush1.msra.mxu0 0.0
    %2825 = vmatprep.subr.mxu0 0.0
    %2826 = vmatpush1.msra.mxu0 0.0
    %2827 = vmatprep.subr.mxu0 0.0
    %2828 = vmatpush1.msra.mxu0 0.0
    %2829 = vmatprep.subr.mxu0 0.0
    %2830 = vmatpush1.msra.mxu0 0.0
    %2831 = vmatprep.subr.mxu0 0.0
    %2832 = vmatpush1.msra.mxu0 0.0
    %2833 = vmatprep.subr.mxu0 0.0
    %2834 = vmatpush1.msra.mxu0 0.0
    %2835 = vmatprep.subr.mxu0 0.0
    %2836 = vmatpush1.msra.mxu0 0.0
    %2837 = vmatprep.subr.mxu0 0.0
    %2838 = vmatpush1.msra.mxu0 0.0
    %2839 = vmatprep.subr.mxu0 0.0
    %2840 = vmatpush1.msra.mxu0 0.0
    %2841 = vmatprep.subr.mxu0 0.0
    %2842 = vmatpush1.msra.mxu0 0.0
    %2843 = vmatprep.subr.mxu0 0.0
    %v2844 = vand.u32 %v30, 4294901760
    %v2845 = vsub.f32 %v30, %v2844
    %v2846 = vand.u32 %v2845, 4294901760
    %v2847 = vsub.f32 %v2845, %v2846
    %v2848 = vand.u32 %v2847, 4294901760
    %2849 = vmatpush1.msra.mxu0 %v2848
    %2850 = vmatprep.subr.mxu0 0.0
    %v2851 = vand.u32 %v29, 4294901760
    %v2852 = vsub.f32 %v29, %v2851
    %v2853 = vand.u32 %v2852, 4294901760
    %v2854 = vsub.f32 %v2852, %v2853
    %v2855 = vand.u32 %v2854, 4294901760
    %2856 = vmatpush1.msra.mxu0 %v2855
    %2857 = vmatprep.subr.mxu0 0.0
    %v2858 = vand.u32 %v28, 4294901760
    %v2859 = vsub.f32 %v28, %v2858
    %v2860 = vand.u32 %v2859, 4294901760
    %v2861 = vsub.f32 %v2859, %v2860
    %v2862 = vand.u32 %v2861, 4294901760
    %2863 = vmatpush1.msra.mxu0 %v2862
    %2864 = vmatprep.subr.mxu0 0.0
    %v2865 = vand.u32 %v27, 4294901760
    %v2866 = vsub.f32 %v27, %v2865
    %v2867 = vand.u32 %v2866, 4294901760
    %v2868 = vsub.f32 %v2866, %v2867
    %v2869 = vand.u32 %v2868, 4294901760
    %2870 = vmatpush1.msra.mxu0 %v2869
    %2871 = vmatprep.subr.mxu0 0.0
    %2872 = vmatpush2.msra.mxu0 0.0
    %2873 = vmatprep.subr.mxu0 0.0
    %2874 = vmatpush2.msra.mxu0 0.0
    %2875 = vmatprep.subr.mxu0 0.0
    %2876 = vmatpush2.msra.mxu0 0.0
    %2877 = vmatprep.subr.mxu0 0.0
    %2878 = vmatpush2.msra.mxu0 0.0
    %2879 = vmatprep.subr.mxu0 0.0
    %2880 = vmatpush2.msra.mxu0 0.0
    %2881 = vmatprep.subr.mxu0 0.0
    %2882 = vmatpush2.msra.mxu0 0.0
    %2883 = vmatprep.subr.mxu0 0.0
    %2884 = vmatpush2.msra.mxu0 0.0
    %2885 = vmatprep.subr.mxu0 0.0
    %2886 = vmatpush2.msra.mxu0 0.0
    %2887 = vmatprep.subr.mxu0 0.0
    %2888 = vmatpush2.msra.mxu0 0.0
    %2889 = vmatprep.subr.mxu0 0.0
    %2890 = vmatpush2.msra.mxu0 0.0
    %2891 = vmatprep.subr.mxu0 0.0
    %2892 = vmatpush2.msra.mxu0 0.0
    %2893 = vmatprep.subr.mxu0 0.0
    %2894 = vmatpush2.msra.mxu0 0.0
    %2895 = vmatprep.subr.mxu0 0.0
    %2896 = vmatpush2.msra.mxu0 0.0
    %2897 = vmatprep.subr.mxu0 0.0
    %2898 = vmatpush2.msra.mxu0 0.0
    %2899 = vmatprep.subr.mxu0 0.0
    %2900 = vmatpush2.msra.mxu0 0.0
    %2901 = vmatprep.subr.mxu0 0.0
    %2902 = vmatpush2.msra.mxu0 0.0
    %2903 = vmatprep.mubr.f32.mxu0 0.0
    %v2904 = vand.u32 %v2738, 4294901760
    %2905 = vmatmul.mubr.f32.gmra.mxu0 %v2904
    %v2906 = vpop.f32.mrf.mxu0
    %v2907 = vadd.f32 %v2816, %v2906
    %v2908 = vpop.f32.mrf.mxu0
    %2909 = vdwg.mxu0
    %2910 = vmatprep.subr.mxu0 0.0
    %2911 = vmatpush1.msra.mxu0 0.0
    %2912 = vmatprep.subr.mxu0 0.0
    %2913 = vmatpush1.msra.mxu0 0.0
    %2914 = vmatprep.subr.mxu0 0.0
    %2915 = vmatpush1.msra.mxu0 0.0
    %2916 = vmatprep.subr.mxu0 0.0
    %2917 = vmatpush1.msra.mxu0 0.0
    %2918 = vmatprep.subr.mxu0 0.0
    %2919 = vmatpush1.msra.mxu0 0.0
    %2920 = vmatprep.subr.mxu0 0.0
    %2921 = vmatpush1.msra.mxu0 0.0
    %2922 = vmatprep.subr.mxu0 0.0
    %2923 = vmatpush1.msra.mxu0 0.0
    %2924 = vmatprep.subr.mxu0 0.0
    %2925 = vmatpush1.msra.mxu0 0.0
    %2926 = vmatprep.subr.mxu0 0.0
    %2927 = vmatpush1.msra.mxu0 0.0
    %2928 = vmatprep.subr.mxu0 0.0
    %2929 = vmatpush1.msra.mxu0 0.0
    %2930 = vmatprep.subr.mxu0 0.0
    %2931 = vmatpush1.msra.mxu0 0.0
    %2932 = vmatprep.subr.mxu0 0.0
    %2933 = vmatpush1.msra.mxu0 0.0
    %2934 = vmatprep.subr.mxu0 0.0
    %v2935 = vand.u32 %v30, 4294901760
    %v2936 = vsub.f32 %v30, %v2935
    %2937 = vmatpush1.msra.mxu0 %v2936
    %2938 = vmatprep.subr.mxu0 0.0
    %v2939 = vand.u32 %v29, 4294901760
    %v2940 = vsub.f32 %v29, %v2939
    %2941 = vmatpush1.msra.mxu0 %v2940
    %2942 = vmatprep.subr.mxu0 0.0
    %v2943 = vand.u32 %v28, 4294901760
    %v2944 = vsub.f32 %v28, %v2943
    %2945 = vmatpush1.msra.mxu0 %v2944
    %2946 = vmatprep.subr.mxu0 0.0
    %v2947 = vand.u32 %v27, 4294901760
    %v2948 = vsub.f32 %v27, %v2947
    %2949 = vmatpush1.msra.mxu0 %v2948
    %2950 = vmatprep.subr.mxu0 0.0
    %2951 = vmatpush2.msra.mxu0 0.0
    %2952 = vmatprep.subr.mxu0 0.0
    %2953 = vmatpush2.msra.mxu0 0.0
    %2954 = vmatprep.subr.mxu0 0.0
    %2955 = vmatpush2.msra.mxu0 0.0
    %2956 = vmatprep.subr.mxu0 0.0
    %2957 = vmatpush2.msra.mxu0 0.0
    %2958 = vmatprep.subr.mxu0 0.0
    %2959 = vmatpush2.msra.mxu0 0.0
    %2960 = vmatprep.subr.mxu0 0.0
    %2961 = vmatpush2.msra.mxu0 0.0
    %2962 = vmatprep.subr.mxu0 0.0
    %2963 = vmatpush2.msra.mxu0 0.0
    %2964 = vmatprep.subr.mxu0 0.0
    %2965 = vmatpush2.msra.mxu0 0.0
    %2966 = vmatprep.subr.mxu0 0.0
    %2967 = vmatpush2.msra.mxu0 0.0
    %2968 = vmatprep.subr.mxu0 0.0
    %2969 = vmatpush2.msra.mxu0 0.0
    %2970 = vmatprep.subr.mxu0 0.0
    %2971 = vmatpush2.msra.mxu0 0.0
    %2972 = vmatprep.subr.mxu0 0.0
    %2973 = vmatpush2.msra.mxu0 0.0
    %2974 = vmatprep.subr.mxu0 0.0
    %2975 = vmatpush2.msra.mxu0 0.0
    %2976 = vmatprep.subr.mxu0 0.0
    %2977 = vmatpush2.msra.mxu0 0.0
    %2978 = vmatprep.subr.mxu0 0.0
    %2979 = vmatpush2.msra.mxu0 0.0
    %2980 = vmatprep.subr.mxu0 0.0
    %2981 = vmatpush2.msra.mxu0 0.0
    %2982 = vmatprep.mubr.f32.mxu0 0.0
    %v2983 = vand.u32 %v2738, 4294901760
    %v2984 = vsub.f32 %v2738, %v2983
    %2985 = vmatmul.mubr.f32.gmra.mxu0 %v2984
    %v2986 = vpop.f32.mrf.mxu0
    %v2987 = vadd.f32 %v2907, %v2986
    %v2988 = vpop.f32.mrf.mxu0
    %2989 = vdwg.mxu0
    %2990 = vmatprep.subr.mxu0 0.0
    %2991 = vmatpush1.msra.mxu0 0.0
    %2992 = vmatprep.subr.mxu0 0.0
    %2993 = vmatpush1.msra.mxu0 0.0
    %2994 = vmatprep.subr.mxu0 0.0
    %2995 = vmatpush1.msra.mxu0 0.0
    %2996 = vmatprep.subr.mxu0 0.0
    %2997 = vmatpush1.msra.mxu0 0.0
    %2998 = vmatprep.subr.mxu0 0.0
    %2999 = vmatpush1.msra.mxu0 0.0
    %3000 = vmatprep.subr.mxu0 0.0
    %3001 = vmatpush1.msra.mxu0 0.0
    %3002 = vmatprep.subr.mxu0 0.0
    %3003 = vmatpush1.msra.mxu0 0.0
    %3004 = vmatprep.subr.mxu0 0.0
    %3005 = vmatpush1.msra.mxu0 0.0
    %3006 = vmatprep.subr.mxu0 0.0
    %3007 = vmatpush1.msra.mxu0 0.0
    %3008 = vmatprep.subr.mxu0 0.0
    %3009 = vmatpush1.msra.mxu0 0.0
    %3010 = vmatprep.subr.mxu0 0.0
    %3011 = vmatpush1.msra.mxu0 0.0
    %3012 = vmatprep.subr.mxu0 0.0
    %3013 = vmatpush1.msra.mxu0 0.0
    %3014 = vmatprep.subr.mxu0 0.0
    %v3015 = vand.u32 %v30, 4294901760
    %3016 = vmatpush1.msra.mxu0 %v3015
    %3017 = vmatprep.subr.mxu0 0.0
    %v3018 = vand.u32 %v29, 4294901760
    %3019 = vmatpush1.msra.mxu0 %v3018
    %3020 = vmatprep.subr.mxu0 0.0
    %v3021 = vand.u32 %v28, 4294901760
    %3022 = vmatpush1.msra.mxu0 %v3021
    %3023 = vmatprep.subr.mxu0 0.0
    %v3024 = vand.u32 %v27, 4294901760
    %3025 = vmatpush1.msra.mxu0 %v3024
    %3026 = vmatprep.subr.mxu0 0.0
    %3027 = vmatpush2.msra.mxu0 0.0
    %3028 = vmatprep.subr.mxu0 0.0
    %3029 = vmatpush2.msra.mxu0 0.0
    %3030 = vmatprep.subr.mxu0 0.0
    %3031 = vmatpush2.msra.mxu0 0.0
    %3032 = vmatprep.subr.mxu0 0.0
    %3033 = vmatpush2.msra.mxu0 0.0
    %3034 = vmatprep.subr.mxu0 0.0
    %3035 = vmatpush2.msra.mxu0 0.0
    %3036 = vmatprep.subr.mxu0 0.0
    %3037 = vmatpush2.msra.mxu0 0.0
    %3038 = vmatprep.subr.mxu0 0.0
    %3039 = vmatpush2.msra.mxu0 0.0
    %3040 = vmatprep.subr.mxu0 0.0
    %3041 = vmatpush2.msra.mxu0 0.0
    %3042 = vmatprep.subr.mxu0 0.0
    %3043 = vmatpush2.msra.mxu0 0.0
    %3044 = vmatprep.subr.mxu0 0.0
    %3045 = vmatpush2.msra.mxu0 0.0
    %3046 = vmatprep.subr.mxu0 0.0
    %3047 = vmatpush2.msra.mxu0 0.0
    %3048 = vmatprep.subr.mxu0 0.0
    %3049 = vmatpush2.msra.mxu0 0.0
    %3050 = vmatprep.subr.mxu0 0.0
    %3051 = vmatpush2.msra.mxu0 0.0
    %3052 = vmatprep.subr.mxu0 0.0
    %3053 = vmatpush2.msra.mxu0 0.0
    %3054 = vmatprep.subr.mxu0 0.0
    %3055 = vmatpush2.msra.mxu0 0.0
    %3056 = vmatprep.subr.mxu0 0.0
    %3057 = vmatpush2.msra.mxu0 0.0
    %3058 = vmatprep.mubr.f32.mxu0 0.0
    %v3059 = vand.u32 %v2738, 4294901760
    %v3060 = vsub.f32 %v2738, %v3059
    %v3061 = vand.u32 %v3060, 4294901760
    %3062 = vmatmul.mubr.f32.gmra.mxu0 %v3061
    %v3063 = vpop.f32.mrf.mxu0
    %v3064 = vadd.f32 %v2987, %v3063
    %v3065 = vpop.f32.mrf.mxu0
    %3066 = vdwg.mxu0
    %3067 = vmatprep.subr.mxu0 0.0
    %3068 = vmatpush1.msra.mxu0 0.0
    %3069 = vmatprep.subr.mxu0 0.0
    %3070 = vmatpush1.msra.mxu0 0.0
    %3071 = vmatprep.subr.mxu0 0.0
    %3072 = vmatpush1.msra.mxu0 0.0
    %3073 = vmatprep.subr.mxu0 0.0
    %3074 = vmatpush1.msra.mxu0 0.0
    %3075 = vmatprep.subr.mxu0 0.0
    %3076 = vmatpush1.msra.mxu0 0.0
    %3077 = vmatprep.subr.mxu0 0.0
    %3078 = vmatpush1.msra.mxu0 0.0
    %3079 = vmatprep.subr.mxu0 0.0
    %3080 = vmatpush1.msra.mxu0 0.0
    %3081 = vmatprep.subr.mxu0 0.0
    %3082 = vmatpush1.msra.mxu0 0.0
    %3083 = vmatprep.subr.mxu0 0.0
    %3084 = vmatpush1.msra.mxu0 0.0
    %3085 = vmatprep.subr.mxu0 0.0
    %3086 = vmatpush1.msra.mxu0 0.0
    %3087 = vmatprep.subr.mxu0 0.0
    %3088 = vmatpush1.msra.mxu0 0.0
    %3089 = vmatprep.subr.mxu0 0.0
    %3090 = vmatpush1.msra.mxu0 0.0
    %3091 = vmatprep.subr.mxu0 0.0
    %v3092 = vand.u32 %v30, 4294901760
    %v3093 = vsub.f32 %v30, %v3092
    %v3094 = vand.u32 %v3093, 4294901760
    %3095 = vmatpush1.msra.mxu0 %v3094
    %3096 = vmatprep.subr.mxu0 0.0
    %v3097 = vand.u32 %v29, 4294901760
    %v3098 = vsub.f32 %v29, %v3097
    %v3099 = vand.u32 %v3098, 4294901760
    %3100 = vmatpush1.msra.mxu0 %v3099
    %3101 = vmatprep.subr.mxu0 0.0
    %v3102 = vand.u32 %v28, 4294901760
    %v3103 = vsub.f32 %v28, %v3102
    %v3104 = vand.u32 %v3103, 4294901760
    %3105 = vmatpush1.msra.mxu0 %v3104
    %3106 = vmatprep.subr.mxu0 0.0
    %v3107 = vand.u32 %v27, 4294901760
    %v3108 = vsub.f32 %v27, %v3107
    %v3109 = vand.u32 %v3108, 4294901760
    %3110 = vmatpush1.msra.mxu0 %v3109
    %3111 = vmatprep.subr.mxu0 0.0
    %3112 = vmatpush2.msra.mxu0 0.0
    %3113 = vmatprep.subr.mxu0 0.0
    %3114 = vmatpush2.msra.mxu0 0.0
    %3115 = vmatprep.subr.mxu0 0.0
    %3116 = vmatpush2.msra.mxu0 0.0
    %3117 = vmatprep.subr.mxu0 0.0
    %3118 = vmatpush2.msra.mxu0 0.0
    %3119 = vmatprep.subr.mxu0 0.0
    %3120 = vmatpush2.msra.mxu0 0.0
    %3121 = vmatprep.subr.mxu0 0.0
    %3122 = vmatpush2.msra.mxu0 0.0
    %3123 = vmatprep.subr.mxu0 0.0
    %3124 = vmatpush2.msra.mxu0 0.0
    %3125 = vmatprep.subr.mxu0 0.0
    %3126 = vmatpush2.msra.mxu0 0.0
    %3127 = vmatprep.subr.mxu0 0.0
    %3128 = vmatpush2.msra.mxu0 0.0
    %3129 = vmatprep.subr.mxu0 0.0
    %3130 = vmatpush2.msra.mxu0 0.0
    %3131 = vmatprep.subr.mxu0 0.0
    %3132 = vmatpush2.msra.mxu0 0.0
    %3133 = vmatprep.subr.mxu0 0.0
    %3134 = vmatpush2.msra.mxu0 0.0
    %3135 = vmatprep.subr.mxu0 0.0
    %3136 = vmatpush2.msra.mxu0 0.0
    %3137 = vmatprep.subr.mxu0 0.0
    %3138 = vmatpush2.msra.mxu0 0.0
    %3139 = vmatprep.subr.mxu0 0.0
    %3140 = vmatpush2.msra.mxu0 0.0
    %3141 = vmatprep.subr.mxu0 0.0
    %3142 = vmatpush2.msra.mxu0 0.0
    %3143 = vmatprep.mubr.f32.mxu0 0.0
    %v3144 = vand.u32 %v2738, 4294901760
    %3145 = vmatmul.mubr.f32.gmra.mxu0 %v3144
    %v3146 = vpop.f32.mrf.mxu0
    %v3147 = vadd.f32 %v3064, %v3146
    %v3148 = vpop.f32.mrf.mxu0
    %3149 = vdwg.mxu0
    %3150 = vmatprep.subr.mxu0 0.0
    %3151 = vmatpush1.msra.mxu0 0.0
    %3152 = vmatprep.subr.mxu0 0.0
    %3153 = vmatpush1.msra.mxu0 0.0
    %3154 = vmatprep.subr.mxu0 0.0
    %3155 = vmatpush1.msra.mxu0 0.0
    %3156 = vmatprep.subr.mxu0 0.0
    %3157 = vmatpush1.msra.mxu0 0.0
    %3158 = vmatprep.subr.mxu0 0.0
    %3159 = vmatpush1.msra.mxu0 0.0
    %3160 = vmatprep.subr.mxu0 0.0
    %3161 = vmatpush1.msra.mxu0 0.0
    %3162 = vmatprep.subr.mxu0 0.0
    %3163 = vmatpush1.msra.mxu0 0.0
    %3164 = vmatprep.subr.mxu0 0.0
    %3165 = vmatpush1.msra.mxu0 0.0
    %3166 = vmatprep.subr.mxu0 0.0
    %3167 = vmatpush1.msra.mxu0 0.0
    %3168 = vmatprep.subr.mxu0 0.0
    %3169 = vmatpush1.msra.mxu0 0.0
    %3170 = vmatprep.subr.mxu0 0.0
    %3171 = vmatpush1.msra.mxu0 0.0
    %3172 = vmatprep.subr.mxu0 0.0
    %3173 = vmatpush1.msra.mxu0 0.0
    %3174 = vmatprep.subr.mxu0 0.0
    %v3175 = vand.u32 %v30, 4294901760
    %3176 = vmatpush1.msra.mxu0 %v3175
    %3177 = vmatprep.subr.mxu0 0.0
    %v3178 = vand.u32 %v29, 4294901760
    %3179 = vmatpush1.msra.mxu0 %v3178
    %3180 = vmatprep.subr.mxu0 0.0
    %v3181 = vand.u32 %v28, 4294901760
    %3182 = vmatpush1.msra.mxu0 %v3181
    %3183 = vmatprep.subr.mxu0 0.0
    %v3184 = vand.u32 %v27, 4294901760
    %3185 = vmatpush1.msra.mxu0 %v3184
    %3186 = vmatprep.subr.mxu0 0.0
    %3187 = vmatpush2.msra.mxu0 0.0
    %3188 = vmatprep.subr.mxu0 0.0
    %3189 = vmatpush2.msra.mxu0 0.0
    %3190 = vmatprep.subr.mxu0 0.0
    %3191 = vmatpush2.msra.mxu0 0.0
    %3192 = vmatprep.subr.mxu0 0.0
    %3193 = vmatpush2.msra.mxu0 0.0
    %3194 = vmatprep.subr.mxu0 0.0
    %3195 = vmatpush2.msra.mxu0 0.0
    %3196 = vmatprep.subr.mxu0 0.0
    %3197 = vmatpush2.msra.mxu0 0.0
    %3198 = vmatprep.subr.mxu0 0.0
    %3199 = vmatpush2.msra.mxu0 0.0
    %3200 = vmatprep.subr.mxu0 0.0
    %3201 = vmatpush2.msra.mxu0 0.0
    %3202 = vmatprep.subr.mxu0 0.0
    %3203 = vmatpush2.msra.mxu0 0.0
    %3204 = vmatprep.subr.mxu0 0.0
    %3205 = vmatpush2.msra.mxu0 0.0
    %3206 = vmatprep.subr.mxu0 0.0
    %3207 = vmatpush2.msra.mxu0 0.0
    %3208 = vmatprep.subr.mxu0 0.0
    %3209 = vmatpush2.msra.mxu0 0.0
    %3210 = vmatprep.subr.mxu0 0.0
    %3211 = vmatpush2.msra.mxu0 0.0
    %3212 = vmatprep.subr.mxu0 0.0
    %3213 = vmatpush2.msra.mxu0 0.0
    %3214 = vmatprep.subr.mxu0 0.0
    %3215 = vmatpush2.msra.mxu0 0.0
    %3216 = vmatprep.subr.mxu0 0.0
    %3217 = vmatpush2.msra.mxu0 0.0
    %3218 = vmatprep.mubr.f32.mxu0 0.0
    %v3219 = vand.u32 %v2738, 4294901760
    %3220 = vmatmul.mubr.f32.gmra.mxu0 %v3219
    %v3221 = vpop.f32.mrf.mxu0
    %v3222 = vadd.f32 %v3147, %v3221
    %v3223 = vpop.f32.mrf.mxu0
    %3224 = vdwg.mxu0
    %v3225 = vadd.f32 %v571, %v3222
    %v3226 = vmul.f32 %v3225, 0.5
    %v3227 = vtanh.pop %v3226
    %v3228 = vmul.f32 %v3227, 0.5
    %v3229 = vadd.f32 %v3228, 0.5
    %v3230 = vadd.f32 %v3222, %v1093
    %3232 = vrot.lane.b32.xlu0 %v3230, 64
    %v3233 = vpop.permute.xlu0 %3232
    %v3235 = vmul.f32 %v3229, %v3233
    %3237 = vrot.lane.b32.xlu0 %v3235, 64
    %v3238 = vpop.permute.xlu0 %3237
    %v3240 = vadd.f32 %v571, %v3238
    %v3241 = vtanh.pop %v3240
    %v3242 = vsub.f32 1.0, %v3229
    %3244 = vrot.lane.b32.xlu0 %v3241, 96
    %v3245 = vpop.permute.xlu0 %3244
    %v3247 = vmul.f32 %v3242, %v3245
    %v3249 = vmul.f32 %v3229, %v2723
    %v3250 = vadd.f32 %v3247, %v3249
    %v3252 = vrot.slane %v3250, 6
    %3253 = vrot.lane.b32.xlu0 %v3252, 64
    %v3254 = vpop.permute.xlu0 %3253
    %v3256 = vmul.f32 %v571, %v3254
    %3258 = vrot.lane.b32.xlu0 %v3256, 32
    %v3259 = vpop.permute.xlu0 %3258
    %v3261 = vsel %vm1128, %v3259, 0.0
    %3262 = vadd.xlane.f32.xlu0 %v3261
    %v3263 = vpop.xlane.xlu0 %3262
    %v3264 = vadd.f32 %v3263, %v573
    %3265 = vrot.lane.b32.xlu0 %v3250, 96
    %v3266 = vpop.permute.xlu0 %3265
    %v3267 = vsel %vm594, %v3266, 0
    %3269 = vmatprep.subr.mxu0 0.0
    %3270 = vmatpush1.msra.mxu0 0.0
    %3271 = vmatprep.subr.mxu0 0.0
    %3272 = vmatpush1.msra.mxu0 0.0
    %3273 = vmatprep.subr.mxu0 0.0
    %3274 = vmatpush1.msra.mxu0 0.0
    %3275 = vmatprep.subr.mxu0 0.0
    %3276 = vmatpush1.msra.mxu0 0.0
    %3277 = vmatprep.subr.mxu0 0.0
    %3278 = vmatpush1.msra.mxu0 0.0
    %3279 = vmatprep.subr.mxu0 0.0
    %3280 = vmatpush1.msra.mxu0 0.0
    %3281 = vmatprep.subr.mxu0 0.0
    %3282 = vmatpush1.msra.mxu0 0.0
    %3283 = vmatprep.subr.mxu0 0.0
    %3284 = vmatpush1.msra.mxu0 0.0
    %3285 = vmatprep.subr.mxu0 0.0
    %3286 = vmatpush1.msra.mxu0 0.0
    %3287 = vmatprep.subr.mxu0 0.0
    %3288 = vmatpush1.msra.mxu0 0.0
    %3289 = vmatprep.subr.mxu0 0.0
    %3290 = vmatpush1.msra.mxu0 0.0
    %3291 = vmatprep.subr.mxu0 0.0
    %3292 = vmatpush1.msra.mxu0 0.0
    %3293 = vmatprep.subr.mxu0 0.0
    %v3294 = vand.u32 %v30, 4294901760
    %3295 = vmatpush1.msra.mxu0 %v3294
    %3296 = vmatprep.subr.mxu0 0.0
    %v3297 = vand.u32 %v29, 4294901760
    %3298 = vmatpush1.msra.mxu0 %v3297
    %3299 = vmatprep.subr.mxu0 0.0
    %v3300 = vand.u32 %v28, 4294901760
    %3301 = vmatpush1.msra.mxu0 %v3300
    %3302 = vmatprep.subr.mxu0 0.0
    %v3303 = vand.u32 %v27, 4294901760
    %3304 = vmatpush1.msra.mxu0 %v3303
    %3305 = vmatprep.subr.mxu0 0.0
    %3306 = vmatpush2.msra.mxu0 0.0
    %3307 = vmatprep.subr.mxu0 0.0
    %3308 = vmatpush2.msra.mxu0 0.0
    %3309 = vmatprep.subr.mxu0 0.0
    %3310 = vmatpush2.msra.mxu0 0.0
    %3311 = vmatprep.subr.mxu0 0.0
    %3312 = vmatpush2.msra.mxu0 0.0
    %3313 = vmatprep.subr.mxu0 0.0
    %3314 = vmatpush2.msra.mxu0 0.0
    %3315 = vmatprep.subr.mxu0 0.0
    %3316 = vmatpush2.msra.mxu0 0.0
    %3317 = vmatprep.subr.mxu0 0.0
    %3318 = vmatpush2.msra.mxu0 0.0
    %3319 = vmatprep.subr.mxu0 0.0
    %3320 = vmatpush2.msra.mxu0 0.0
    %3321 = vmatprep.subr.mxu0 0.0
    %3322 = vmatpush2.msra.mxu0 0.0
    %3323 = vmatprep.subr.mxu0 0.0
    %3324 = vmatpush2.msra.mxu0 0.0
    %3325 = vmatprep.subr.mxu0 0.0
    %3326 = vmatpush2.msra.mxu0 0.0
    %3327 = vmatprep.subr.mxu0 0.0
    %3328 = vmatpush2.msra.mxu0 0.0
    %3329 = vmatprep.subr.mxu0 0.0
    %3330 = vmatpush2.msra.mxu0 0.0
    %3331 = vmatprep.subr.mxu0 0.0
    %3332 = vmatpush2.msra.mxu0 0.0
    %3333 = vmatprep.subr.mxu0 0.0
    %3334 = vmatpush2.msra.mxu0 0.0
    %3335 = vmatprep.subr.mxu0 0.0
    %3336 = vmatpush2.msra.mxu0 0.0
    %3337 = vmatprep.mubr.f32.mxu0 0.0
    %v3338 = vand.u32 %v3267, 4294901760
    %v3339 = vsub.f32 %v3267, %v3338
    %v3340 = vand.u32 %v3339, 4294901760
    %v3341 = vsub.f32 %v3339, %v3340
    %v3342 = vand.u32 %v3341, 4294901760
    %3343 = vmatmul.mubr.f32.gmra.mxu0 %v3342
    %v3344 = vpop.f32.mrf.mxu0
    %v3345 = vadd.f32 0.0, %v3344
    %v3346 = vpop.f32.mrf.mxu0
    %3347 = vdwg.mxu0
    %3348 = vmatprep.subr.mxu0 0.0
    %3349 = vmatpush1.msra.mxu0 0.0
    %3350 = vmatprep.subr.mxu0 0.0
    %3351 = vmatpush1.msra.mxu0 0.0
    %3352 = vmatprep.subr.mxu0 0.0
    %3353 = vmatpush1.msra.mxu0 0.0
    %3354 = vmatprep.subr.mxu0 0.0
    %3355 = vmatpush1.msra.mxu0 0.0
    %3356 = vmatprep.subr.mxu0 0.0
    %3357 = vmatpush1.msra.mxu0 0.0
    %3358 = vmatprep.subr.mxu0 0.0
    %3359 = vmatpush1.msra.mxu0 0.0
    %3360 = vmatprep.subr.mxu0 0.0
    %3361 = vmatpush1.msra.mxu0 0.0
    %3362 = vmatprep.subr.mxu0 0.0
    %3363 = vmatpush1.msra.mxu0 0.0
    %3364 = vmatprep.subr.mxu0 0.0
    %3365 = vmatpush1.msra.mxu0 0.0
    %3366 = vmatprep.subr.mxu0 0.0
    %3367 = vmatpush1.msra.mxu0 0.0
    %3368 = vmatprep.subr.mxu0 0.0
    %3369 = vmatpush1.msra.mxu0 0.0
    %3370 = vmatprep.subr.mxu0 0.0
    %3371 = vmatpush1.msra.mxu0 0.0
    %3372 = vmatprep.subr.mxu0 0.0
    %v3373 = vand.u32 %v30, 4294901760
    %v3374 = vsub.f32 %v30, %v3373
    %v3375 = vand.u32 %v3374, 4294901760
    %v3376 = vsub.f32 %v3374, %v3375
    %v3377 = vand.u32 %v3376, 4294901760
    %3378 = vmatpush1.msra.mxu0 %v3377
    %3379 = vmatprep.subr.mxu0 0.0
    %v3380 = vand.u32 %v29, 4294901760
    %v3381 = vsub.f32 %v29, %v3380
    %v3382 = vand.u32 %v3381, 4294901760
    %v3383 = vsub.f32 %v3381, %v3382
    %v3384 = vand.u32 %v3383, 4294901760
    %3385 = vmatpush1.msra.mxu0 %v3384
    %3386 = vmatprep.subr.mxu0 0.0
    %v3387 = vand.u32 %v28, 4294901760
    %v3388 = vsub.f32 %v28, %v3387
    %v3389 = vand.u32 %v3388, 4294901760
    %v3390 = vsub.f32 %v3388, %v3389
    %v3391 = vand.u32 %v3390, 4294901760
    %3392 = vmatpush1.msra.mxu0 %v3391
    %3393 = vmatprep.subr.mxu0 0.0
    %v3394 = vand.u32 %v27, 4294901760
    %v3395 = vsub.f32 %v27, %v3394
    %v3396 = vand.u32 %v3395, 4294901760
    %v3397 = vsub.f32 %v3395, %v3396
    %v3398 = vand.u32 %v3397, 4294901760
    %3399 = vmatpush1.msra.mxu0 %v3398
    %3400 = vmatprep.subr.mxu0 0.0
    %3401 = vmatpush2.msra.mxu0 0.0
    %3402 = vmatprep.subr.mxu0 0.0
    %3403 = vmatpush2.msra.mxu0 0.0
    %3404 = vmatprep.subr.mxu0 0.0
    %3405 = vmatpush2.msra.mxu0 0.0
    %3406 = vmatprep.subr.mxu0 0.0
    %3407 = vmatpush2.msra.mxu0 0.0
    %3408 = vmatprep.subr.mxu0 0.0
    %3409 = vmatpush2.msra.mxu0 0.0
    %3410 = vmatprep.subr.mxu0 0.0
    %3411 = vmatpush2.msra.mxu0 0.0
    %3412 = vmatprep.subr.mxu0 0.0
    %3413 = vmatpush2.msra.mxu0 0.0
    %3414 = vmatprep.subr.mxu0 0.0
    %3415 = vmatpush2.msra.mxu0 0.0
    %3416 = vmatprep.subr.mxu0 0.0
    %3417 = vmatpush2.msra.mxu0 0.0
    %3418 = vmatprep.subr.mxu0 0.0
    %3419 = vmatpush2.msra.mxu0 0.0
    %3420 = vmatprep.subr.mxu0 0.0
    %3421 = vmatpush2.msra.mxu0 0.0
    %3422 = vmatprep.subr.mxu0 0.0
    %3423 = vmatpush2.msra.mxu0 0.0
    %3424 = vmatprep.subr.mxu0 0.0
    %3425 = vmatpush2.msra.mxu0 0.0
    %3426 = vmatprep.subr.mxu0 0.0
    %3427 = vmatpush2.msra.mxu0 0.0
    %3428 = vmatprep.subr.mxu0 0.0
    %3429 = vmatpush2.msra.mxu0 0.0
    %3430 = vmatprep.subr.mxu0 0.0
    %3431 = vmatpush2.msra.mxu0 0.0
    %3432 = vmatprep.mubr.f32.mxu0 0.0
    %v3433 = vand.u32 %v3267, 4294901760
    %3434 = vmatmul.mubr.f32.gmra.mxu0 %v3433
    %v3435 = vpop.f32.mrf.mxu0
    %v3436 = vadd.f32 %v3345, %v3435
    %v3437 = vpop.f32.mrf.mxu0
    %3438 = vdwg.mxu0
    %3439 = vmatprep.subr.mxu0 0.0
    %3440 = vmatpush1.msra.mxu0 0.0
    %3441 = vmatprep.subr.mxu0 0.0
    %3442 = vmatpush1.msra.mxu0 0.0
    %3443 = vmatprep.subr.mxu0 0.0
    %3444 = vmatpush1.msra.mxu0 0.0
    %3445 = vmatprep.subr.mxu0 0.0
    %3446 = vmatpush1.msra.mxu0 0.0
    %3447 = vmatprep.subr.mxu0 0.0
    %3448 = vmatpush1.msra.mxu0 0.0
    %3449 = vmatprep.subr.mxu0 0.0
    %3450 = vmatpush1.msra.mxu0 0.0
    %3451 = vmatprep.subr.mxu0 0.0
    %3452 = vmatpush1.msra.mxu0 0.0
    %3453 = vmatprep.subr.mxu0 0.0
    %3454 = vmatpush1.msra.mxu0 0.0
    %3455 = vmatprep.subr.mxu0 0.0
    %3456 = vmatpush1.msra.mxu0 0.0
    %3457 = vmatprep.subr.mxu0 0.0
    %3458 = vmatpush1.msra.mxu0 0.0
    %3459 = vmatprep.subr.mxu0 0.0
    %3460 = vmatpush1.msra.mxu0 0.0
    %3461 = vmatprep.subr.mxu0 0.0
    %3462 = vmatpush1.msra.mxu0 0.0
    %3463 = vmatprep.subr.mxu0 0.0
    %v3464 = vand.u32 %v30, 4294901760
    %v3465 = vsub.f32 %v30, %v3464
    %3466 = vmatpush1.msra.mxu0 %v3465
    %3467 = vmatprep.subr.mxu0 0.0
    %v3468 = vand.u32 %v29, 4294901760
    %v3469 = vsub.f32 %v29, %v3468
    %3470 = vmatpush1.msra.mxu0 %v3469
    %3471 = vmatprep.subr.mxu0 0.0
    %v3472 = vand.u32 %v28, 4294901760
    %v3473 = vsub.f32 %v28, %v3472
    %3474 = vmatpush1.msra.mxu0 %v3473
    %3475 = vmatprep.subr.mxu0 0.0
    %v3476 = vand.u32 %v27, 4294901760
    %v3477 = vsub.f32 %v27, %v3476
    %3478 = vmatpush1.msra.mxu0 %v3477
    %3479 = vmatprep.subr.mxu0 0.0
    %3480 = vmatpush2.msra.mxu0 0.0
    %3481 = vmatprep.subr.mxu0 0.0
    %3482 = vmatpush2.msra.mxu0 0.0
    %3483 = vmatprep.subr.mxu0 0.0
    %3484 = vmatpush2.msra.mxu0 0.0
    %3485 = vmatprep.subr.mxu0 0.0
    %3486 = vmatpush2.msra.mxu0 0.0
    %3487 = vmatprep.subr.mxu0 0.0
    %3488 = vmatpush2.msra.mxu0 0.0
    %3489 = vmatprep.subr.mxu0 0.0
    %3490 = vmatpush2.msra.mxu0 0.0
    %3491 = vmatprep.subr.mxu0 0.0
    %3492 = vmatpush2.msra.mxu0 0.0
    %3493 = vmatprep.subr.mxu0 0.0
    %3494 = vmatpush2.msra.mxu0 0.0
    %3495 = vmatprep.subr.mxu0 0.0
    %3496 = vmatpush2.msra.mxu0 0.0
    %3497 = vmatprep.subr.mxu0 0.0
    %3498 = vmatpush2.msra.mxu0 0.0
    %3499 = vmatprep.subr.mxu0 0.0
    %3500 = vmatpush2.msra.mxu0 0.0
    %3501 = vmatprep.subr.mxu0 0.0
    %3502 = vmatpush2.msra.mxu0 0.0
    %3503 = vmatprep.subr.mxu0 0.0
    %3504 = vmatpush2.msra.mxu0 0.0
    %3505 = vmatprep.subr.mxu0 0.0
    %3506 = vmatpush2.msra.mxu0 0.0
    %3507 = vmatprep.subr.mxu0 0.0
    %3508 = vmatpush2.msra.mxu0 0.0
    %3509 = vmatprep.subr.mxu0 0.0
    %3510 = vmatpush2.msra.mxu0 0.0
    %3511 = vmatprep.mubr.f32.mxu0 0.0
    %v3512 = vand.u32 %v3267, 4294901760
    %v3513 = vsub.f32 %v3267, %v3512
    %3514 = vmatmul.mubr.f32.gmra.mxu0 %v3513
    %v3515 = vpop.f32.mrf.mxu0
    %v3516 = vadd.f32 %v3436, %v3515
    %v3517 = vpop.f32.mrf.mxu0
    %3518 = vdwg.mxu0
    %3519 = vmatprep.subr.mxu0 0.0
    %3520 = vmatpush1.msra.mxu0 0.0
    %3521 = vmatprep.subr.mxu0 0.0
    %3522 = vmatpush1.msra.mxu0 0.0
    %3523 = vmatprep.subr.mxu0 0.0
    %3524 = vmatpush1.msra.mxu0 0.0
    %3525 = vmatprep.subr.mxu0 0.0
    %3526 = vmatpush1.msra.mxu0 0.0
    %3527 = vmatprep.subr.mxu0 0.0
    %3528 = vmatpush1.msra.mxu0 0.0
    %3529 = vmatprep.subr.mxu0 0.0
    %3530 = vmatpush1.msra.mxu0 0.0
    %3531 = vmatprep.subr.mxu0 0.0
    %3532 = vmatpush1.msra.mxu0 0.0
    %3533 = vmatprep.subr.mxu0 0.0
    %3534 = vmatpush1.msra.mxu0 0.0
    %3535 = vmatprep.subr.mxu0 0.0
    %3536 = vmatpush1.msra.mxu0 0.0
    %3537 = vmatprep.subr.mxu0 0.0
    %3538 = vmatpush1.msra.mxu0 0.0
    %3539 = vmatprep.subr.mxu0 0.0
    %3540 = vmatpush1.msra.mxu0 0.0
    %3541 = vmatprep.subr.mxu0 0.0
    %3542 = vmatpush1.msra.mxu0 0.0
    %3543 = vmatprep.subr.mxu0 0.0
    %v3544 = vand.u32 %v30, 4294901760
    %3545 = vmatpush1.msra.mxu0 %v3544
    %3546 = vmatprep.subr.mxu0 0.0
    %v3547 = vand.u32 %v29, 4294901760
    %3548 = vmatpush1.msra.mxu0 %v3547
    %3549 = vmatprep.subr.mxu0 0.0
    %v3550 = vand.u32 %v28, 4294901760
    %3551 = vmatpush1.msra.mxu0 %v3550
    %3552 = vmatprep.subr.mxu0 0.0
    %v3553 = vand.u32 %v27, 4294901760
    %3554 = vmatpush1.msra.mxu0 %v3553
    %3555 = vmatprep.subr.mxu0 0.0
    %3556 = vmatpush2.msra.mxu0 0.0
    %3557 = vmatprep.subr.mxu0 0.0
    %3558 = vmatpush2.msra.mxu0 0.0
    %3559 = vmatprep.subr.mxu0 0.0
    %3560 = vmatpush2.msra.mxu0 0.0
    %3561 = vmatprep.subr.mxu0 0.0
    %3562 = vmatpush2.msra.mxu0 0.0
    %3563 = vmatprep.subr.mxu0 0.0
    %3564 = vmatpush2.msra.mxu0 0.0
    %3565 = vmatprep.subr.mxu0 0.0
    %3566 = vmatpush2.msra.mxu0 0.0
    %3567 = vmatprep.subr.mxu0 0.0
    %3568 = vmatpush2.msra.mxu0 0.0
    %3569 = vmatprep.subr.mxu0 0.0
    %3570 = vmatpush2.msra.mxu0 0.0
    %3571 = vmatprep.subr.mxu0 0.0
    %3572 = vmatpush2.msra.mxu0 0.0
    %3573 = vmatprep.subr.mxu0 0.0
    %3574 = vmatpush2.msra.mxu0 0.0
    %3575 = vmatprep.subr.mxu0 0.0
    %3576 = vmatpush2.msra.mxu0 0.0
    %3577 = vmatprep.subr.mxu0 0.0
    %3578 = vmatpush2.msra.mxu0 0.0
    %3579 = vmatprep.subr.mxu0 0.0
    %3580 = vmatpush2.msra.mxu0 0.0
    %3581 = vmatprep.subr.mxu0 0.0
    %3582 = vmatpush2.msra.mxu0 0.0
    %3583 = vmatprep.subr.mxu0 0.0
    %3584 = vmatpush2.msra.mxu0 0.0
    %3585 = vmatprep.subr.mxu0 0.0
    %3586 = vmatpush2.msra.mxu0 0.0
    %3587 = vmatprep.mubr.f32.mxu0 0.0
    %v3588 = vand.u32 %v3267, 4294901760
    %v3589 = vsub.f32 %v3267, %v3588
    %v3590 = vand.u32 %v3589, 4294901760
    %3591 = vmatmul.mubr.f32.gmra.mxu0 %v3590
    %v3592 = vpop.f32.mrf.mxu0
    %v3593 = vadd.f32 %v3516, %v3592
    %v3594 = vpop.f32.mrf.mxu0
    %3595 = vdwg.mxu0
    %3596 = vmatprep.subr.mxu0 0.0
    %3597 = vmatpush1.msra.mxu0 0.0
    %3598 = vmatprep.subr.mxu0 0.0
    %3599 = vmatpush1.msra.mxu0 0.0
    %3600 = vmatprep.subr.mxu0 0.0
    %3601 = vmatpush1.msra.mxu0 0.0
    %3602 = vmatprep.subr.mxu0 0.0
    %3603 = vmatpush1.msra.mxu0 0.0
    %3604 = vmatprep.subr.mxu0 0.0
    %3605 = vmatpush1.msra.mxu0 0.0
    %3606 = vmatprep.subr.mxu0 0.0
    %3607 = vmatpush1.msra.mxu0 0.0
    %3608 = vmatprep.subr.mxu0 0.0
    %3609 = vmatpush1.msra.mxu0 0.0
    %3610 = vmatprep.subr.mxu0 0.0
    %3611 = vmatpush1.msra.mxu0 0.0
    %3612 = vmatprep.subr.mxu0 0.0
    %3613 = vmatpush1.msra.mxu0 0.0
    %3614 = vmatprep.subr.mxu0 0.0
    %3615 = vmatpush1.msra.mxu0 0.0
    %3616 = vmatprep.subr.mxu0 0.0
    %3617 = vmatpush1.msra.mxu0 0.0
    %3618 = vmatprep.subr.mxu0 0.0
    %3619 = vmatpush1.msra.mxu0 0.0
    %3620 = vmatprep.subr.mxu0 0.0
    %v3621 = vand.u32 %v30, 4294901760
    %v3622 = vsub.f32 %v30, %v3621
    %v3623 = vand.u32 %v3622, 4294901760
    %3624 = vmatpush1.msra.mxu0 %v3623
    %3625 = vmatprep.subr.mxu0 0.0
    %v3626 = vand.u32 %v29, 4294901760
    %v3627 = vsub.f32 %v29, %v3626
    %v3628 = vand.u32 %v3627, 4294901760
    %3629 = vmatpush1.msra.mxu0 %v3628
    %3630 = vmatprep.subr.mxu0 0.0
    %v3631 = vand.u32 %v28, 4294901760
    %v3632 = vsub.f32 %v28, %v3631
    %v3633 = vand.u32 %v3632, 4294901760
    %3634 = vmatpush1.msra.mxu0 %v3633
    %3635 = vmatprep.subr.mxu0 0.0
    %v3636 = vand.u32 %v27, 4294901760
    %v3637 = vsub.f32 %v27, %v3636
    %v3638 = vand.u32 %v3637, 4294901760
    %3639 = vmatpush1.msra.mxu0 %v3638
    %3640 = vmatprep.subr.mxu0 0.0
    %3641 = vmatpush2.msra.mxu0 0.0
    %3642 = vmatprep.subr.mxu0 0.0
    %3643 = vmatpush2.msra.mxu0 0.0
    %3644 = vmatprep.subr.mxu0 0.0
    %3645 = vmatpush2.msra.mxu0 0.0
    %3646 = vmatprep.subr.mxu0 0.0
    %3647 = vmatpush2.msra.mxu0 0.0
    %3648 = vmatprep.subr.mxu0 0.0
    %3649 = vmatpush2.msra.mxu0 0.0
    %3650 = vmatprep.subr.mxu0 0.0
    %3651 = vmatpush2.msra.mxu0 0.0
    %3652 = vmatprep.subr.mxu0 0.0
    %3653 = vmatpush2.msra.mxu0 0.0
    %3654 = vmatprep.subr.mxu0 0.0
    %3655 = vmatpush2.msra.mxu0 0.0
    %3656 = vmatprep.subr.mxu0 0.0
    %3657 = vmatpush2.msra.mxu0 0.0
    %3658 = vmatprep.subr.mxu0 0.0
    %3659 = vmatpush2.msra.mxu0 0.0
    %3660 = vmatprep.subr.mxu0 0.0
    %3661 = vmatpush2.msra.mxu0 0.0
    %3662 = vmatprep.subr.mxu0 0.0
    %3663 = vmatpush2.msra.mxu0 0.0
    %3664 = vmatprep.subr.mxu0 0.0
    %3665 = vmatpush2.msra.mxu0 0.0
    %3666 = vmatprep.subr.mxu0 0.0
    %3667 = vmatpush2.msra.mxu0 0.0
    %3668 = vmatprep.subr.mxu0 0.0
    %3669 = vmatpush2.msra.mxu0 0.0
    %3670 = vmatprep.subr.mxu0 0.0
    %3671 = vmatpush2.msra.mxu0 0.0
    %3672 = vmatprep.mubr.f32.mxu0 0.0
    %v3673 = vand.u32 %v3267, 4294901760
    %3674 = vmatmul.mubr.f32.gmra.mxu0 %v3673
    %v3675 = vpop.f32.mrf.mxu0
    %v3676 = vadd.f32 %v3593, %v3675
    %v3677 = vpop.f32.mrf.mxu0
    %3678 = vdwg.mxu0
    %3679 = vmatprep.subr.mxu0 0.0
    %3680 = vmatpush1.msra.mxu0 0.0
    %3681 = vmatprep.subr.mxu0 0.0
    %3682 = vmatpush1.msra.mxu0 0.0
    %3683 = vmatprep.subr.mxu0 0.0
    %3684 = vmatpush1.msra.mxu0 0.0
    %3685 = vmatprep.subr.mxu0 0.0
    %3686 = vmatpush1.msra.mxu0 0.0
    %3687 = vmatprep.subr.mxu0 0.0
    %3688 = vmatpush1.msra.mxu0 0.0
    %3689 = vmatprep.subr.mxu0 0.0
    %3690 = vmatpush1.msra.mxu0 0.0
    %3691 = vmatprep.subr.mxu0 0.0
    %3692 = vmatpush1.msra.mxu0 0.0
    %3693 = vmatprep.subr.mxu0 0.0
    %3694 = vmatpush1.msra.mxu0 0.0
    %3695 = vmatprep.subr.mxu0 0.0
    %3696 = vmatpush1.msra.mxu0 0.0
    %3697 = vmatprep.subr.mxu0 0.0
    %3698 = vmatpush1.msra.mxu0 0.0
    %3699 = vmatprep.subr.mxu0 0.0
    %3700 = vmatpush1.msra.mxu0 0.0
    %3701 = vmatprep.subr.mxu0 0.0
    %3702 = vmatpush1.msra.mxu0 0.0
    %3703 = vmatprep.subr.mxu0 0.0
    %v3704 = vand.u32 %v30, 4294901760
    %3705 = vmatpush1.msra.mxu0 %v3704
    %3706 = vmatprep.subr.mxu0 0.0
    %v3707 = vand.u32 %v29, 4294901760
    %3708 = vmatpush1.msra.mxu0 %v3707
    %3709 = vmatprep.subr.mxu0 0.0
    %v3710 = vand.u32 %v28, 4294901760
    %3711 = vmatpush1.msra.mxu0 %v3710
    %3712 = vmatprep.subr.mxu0 0.0
    %v3713 = vand.u32 %v27, 4294901760
    %3714 = vmatpush1.msra.mxu0 %v3713
    %3715 = vmatprep.subr.mxu0 0.0
    %3716 = vmatpush2.msra.mxu0 0.0
    %3717 = vmatprep.subr.mxu0 0.0
    %3718 = vmatpush2.msra.mxu0 0.0
    %3719 = vmatprep.subr.mxu0 0.0
    %3720 = vmatpush2.msra.mxu0 0.0
    %3721 = vmatprep.subr.mxu0 0.0
    %3722 = vmatpush2.msra.mxu0 0.0
    %3723 = vmatprep.subr.mxu0 0.0
    %3724 = vmatpush2.msra.mxu0 0.0
    %3725 = vmatprep.subr.mxu0 0.0
    %3726 = vmatpush2.msra.mxu0 0.0
    %3727 = vmatprep.subr.mxu0 0.0
    %3728 = vmatpush2.msra.mxu0 0.0
    %3729 = vmatprep.subr.mxu0 0.0
    %3730 = vmatpush2.msra.mxu0 0.0
    %3731 = vmatprep.subr.mxu0 0.0
    %3732 = vmatpush2.msra.mxu0 0.0
    %3733 = vmatprep.subr.mxu0 0.0
    %3734 = vmatpush2.msra.mxu0 0.0
    %3735 = vmatprep.subr.mxu0 0.0
    %3736 = vmatpush2.msra.mxu0 0.0
    %3737 = vmatprep.subr.mxu0 0.0
    %3738 = vmatpush2.msra.mxu0 0.0
    %3739 = vmatprep.subr.mxu0 0.0
    %3740 = vmatpush2.msra.mxu0 0.0
    %3741 = vmatprep.subr.mxu0 0.0
    %3742 = vmatpush2.msra.mxu0 0.0
    %3743 = vmatprep.subr.mxu0 0.0
    %3744 = vmatpush2.msra.mxu0 0.0
    %3745 = vmatprep.subr.mxu0 0.0
    %3746 = vmatpush2.msra.mxu0 0.0
    %3747 = vmatprep.mubr.f32.mxu0 0.0
    %v3748 = vand.u32 %v3267, 4294901760
    %3749 = vmatmul.mubr.f32.gmra.mxu0 %v3748
    %v3750 = vpop.f32.mrf.mxu0
    %v3751 = vadd.f32 %v3676, %v3750
    %v3752 = vpop.f32.mrf.mxu0
    %3753 = vdwg.mxu0
    %v3755 = vrot.slane %v3751, 6
    %v3757 = vadd.f32 %v571, %v3755
    %v3758 = vmul.f32 %v3757, 0.5
    %v3759 = vtanh.pop %v3758
    %v3760 = vmul.f32 %v3759, 0.5
    %v3761 = vadd.f32 %v3760, 0.5
    %v3762 = vadd.f32 %v3751, %v1093
    %v3764 = vrot.slane %v3762, 6
    %3765 = vrot.lane.b32.xlu0 %v3764, 64
    %v3766 = vpop.permute.xlu0 %3765
    %v3768 = vmul.f32 %v3761, %v3766
    %3770 = vrot.lane.b32.xlu0 %v3768, 64
    %v3771 = vpop.permute.xlu0 %3770
    %v3773 = vadd.f32 %v571, %v3771
    %v3774 = vtanh.pop %v3773
    %v3775 = vsub.f32 1.0, %v3761
    %3777 = vrot.lane.b32.xlu0 %v3774, 96
    %v3778 = vpop.permute.xlu0 %3777
    %v3780 = vmul.f32 %v3775, %v3778
    %v3782 = vmul.f32 %v3761, %v3252
    %v3783 = vadd.f32 %v3780, %v3782
    %v3785 = vrot.slane %v3783, 6
    %3786 = vrot.lane.b32.xlu0 %v3785, 64
    %v3787 = vpop.permute.xlu0 %3786
    %v3789 = vmul.f32 %v571, %v3787
    %3791 = vrot.lane.b32.xlu0 %v3789, 32
    %v3792 = vpop.permute.xlu0 %3791
    %v3794 = vsel %vm1662, %v3792, 0.0
    %3795 = vadd.xlane.f32.xlu0 %v3794
    %v3796 = vpop.xlane.xlu0 %3795
    %v3797 = vadd.f32 %v3796, %v573
    %v3798 = vrot.slane %v3783, 2
    %3799 = vrot.lane.b32.xlu0 %v3798, 96
    %v3800 = vpop.permute.xlu0 %3799
    %v3801 = vsel %vm594, %v3800, 0
    %3803 = vmatprep.subr.mxu0 0.0
    %3804 = vmatpush1.msra.mxu0 0.0
    %3805 = vmatprep.subr.mxu0 0.0
    %3806 = vmatpush1.msra.mxu0 0.0
    %3807 = vmatprep.subr.mxu0 0.0
    %3808 = vmatpush1.msra.mxu0 0.0
    %3809 = vmatprep.subr.mxu0 0.0
    %3810 = vmatpush1.msra.mxu0 0.0
    %3811 = vmatprep.subr.mxu0 0.0
    %3812 = vmatpush1.msra.mxu0 0.0
    %3813 = vmatprep.subr.mxu0 0.0
    %3814 = vmatpush1.msra.mxu0 0.0
    %3815 = vmatprep.subr.mxu0 0.0
    %3816 = vmatpush1.msra.mxu0 0.0
    %3817 = vmatprep.subr.mxu0 0.0
    %3818 = vmatpush1.msra.mxu0 0.0
    %3819 = vmatprep.subr.mxu0 0.0
    %3820 = vmatpush1.msra.mxu0 0.0
    %3821 = vmatprep.subr.mxu0 0.0
    %3822 = vmatpush1.msra.mxu0 0.0
    %3823 = vmatprep.subr.mxu0 0.0
    %3824 = vmatpush1.msra.mxu0 0.0
    %3825 = vmatprep.subr.mxu0 0.0
    %3826 = vmatpush1.msra.mxu0 0.0
    %3827 = vmatprep.subr.mxu0 0.0
    %v3828 = vand.u32 %v30, 4294901760
    %3829 = vmatpush1.msra.mxu0 %v3828
    %3830 = vmatprep.subr.mxu0 0.0
    %v3831 = vand.u32 %v29, 4294901760
    %3832 = vmatpush1.msra.mxu0 %v3831
    %3833 = vmatprep.subr.mxu0 0.0
    %v3834 = vand.u32 %v28, 4294901760
    %3835 = vmatpush1.msra.mxu0 %v3834
    %3836 = vmatprep.subr.mxu0 0.0
    %v3837 = vand.u32 %v27, 4294901760
    %3838 = vmatpush1.msra.mxu0 %v3837
    %3839 = vmatprep.subr.mxu0 0.0
    %3840 = vmatpush2.msra.mxu0 0.0
    %3841 = vmatprep.subr.mxu0 0.0
    %3842 = vmatpush2.msra.mxu0 0.0
    %3843 = vmatprep.subr.mxu0 0.0
    %3844 = vmatpush2.msra.mxu0 0.0
    %3845 = vmatprep.subr.mxu0 0.0
    %3846 = vmatpush2.msra.mxu0 0.0
    %3847 = vmatprep.subr.mxu0 0.0
    %3848 = vmatpush2.msra.mxu0 0.0
    %3849 = vmatprep.subr.mxu0 0.0
    %3850 = vmatpush2.msra.mxu0 0.0
    %3851 = vmatprep.subr.mxu0 0.0
    %3852 = vmatpush2.msra.mxu0 0.0
    %3853 = vmatprep.subr.mxu0 0.0
    %3854 = vmatpush2.msra.mxu0 0.0
    %3855 = vmatprep.subr.mxu0 0.0
    %3856 = vmatpush2.msra.mxu0 0.0
    %3857 = vmatprep.subr.mxu0 0.0
    %3858 = vmatpush2.msra.mxu0 0.0
    %3859 = vmatprep.subr.mxu0 0.0
    %3860 = vmatpush2.msra.mxu0 0.0
    %3861 = vmatprep.subr.mxu0 0.0
    %3862 = vmatpush2.msra.mxu0 0.0
    %3863 = vmatprep.subr.mxu0 0.0
    %3864 = vmatpush2.msra.mxu0 0.0
    %3865 = vmatprep.subr.mxu0 0.0
    %3866 = vmatpush2.msra.mxu0 0.0
    %3867 = vmatprep.subr.mxu0 0.0
    %3868 = vmatpush2.msra.mxu0 0.0
    %3869 = vmatprep.subr.mxu0 0.0
    %3870 = vmatpush2.msra.mxu0 0.0
    %3871 = vmatprep.mubr.f32.mxu0 0.0
    %v3872 = vand.u32 %v3801, 4294901760
    %v3873 = vsub.f32 %v3801, %v3872
    %v3874 = vand.u32 %v3873, 4294901760
    %v3875 = vsub.f32 %v3873, %v3874
    %v3876 = vand.u32 %v3875, 4294901760
    %3877 = vmatmul.mubr.f32.gmra.mxu0 %v3876
    %v3878 = vpop.f32.mrf.mxu0
    %v3879 = vadd.f32 0.0, %v3878
    %v3880 = vpop.f32.mrf.mxu0
    %3881 = vdwg.mxu0
    %3882 = vmatprep.subr.mxu0 0.0
    %3883 = vmatpush1.msra.mxu0 0.0
    %3884 = vmatprep.subr.mxu0 0.0
    %3885 = vmatpush1.msra.mxu0 0.0
    %3886 = vmatprep.subr.mxu0 0.0
    %3887 = vmatpush1.msra.mxu0 0.0
    %3888 = vmatprep.subr.mxu0 0.0
    %3889 = vmatpush1.msra.mxu0 0.0
    %3890 = vmatprep.subr.mxu0 0.0
    %3891 = vmatpush1.msra.mxu0 0.0
    %3892 = vmatprep.subr.mxu0 0.0
    %3893 = vmatpush1.msra.mxu0 0.0
    %3894 = vmatprep.subr.mxu0 0.0
    %3895 = vmatpush1.msra.mxu0 0.0
    %3896 = vmatprep.subr.mxu0 0.0
    %3897 = vmatpush1.msra.mxu0 0.0
    %3898 = vmatprep.subr.mxu0 0.0
    %3899 = vmatpush1.msra.mxu0 0.0
    %3900 = vmatprep.subr.mxu0 0.0
    %3901 = vmatpush1.msra.mxu0 0.0
    %3902 = vmatprep.subr.mxu0 0.0
    %3903 = vmatpush1.msra.mxu0 0.0
    %3904 = vmatprep.subr.mxu0 0.0
    %3905 = vmatpush1.msra.mxu0 0.0
    %3906 = vmatprep.subr.mxu0 0.0
    %v3907 = vand.u32 %v30, 4294901760
    %v3908 = vsub.f32 %v30, %v3907
    %v3909 = vand.u32 %v3908, 4294901760
    %v3910 = vsub.f32 %v3908, %v3909
    %v3911 = vand.u32 %v3910, 4294901760
    %3912 = vmatpush1.msra.mxu0 %v3911
    %3913 = vmatprep.subr.mxu0 0.0
    %v3914 = vand.u32 %v29, 4294901760
    %v3915 = vsub.f32 %v29, %v3914
    %v3916 = vand.u32 %v3915, 4294901760
    %v3917 = vsub.f32 %v3915, %v3916
    %v3918 = vand.u32 %v3917, 4294901760
    %3919 = vmatpush1.msra.mxu0 %v3918
    %3920 = vmatprep.subr.mxu0 0.0
    %v3921 = vand.u32 %v28, 4294901760
    %v3922 = vsub.f32 %v28, %v3921
    %v3923 = vand.u32 %v3922, 4294901760
    %v3924 = vsub.f32 %v3922, %v3923
    %v3925 = vand.u32 %v3924, 4294901760
    %3926 = vmatpush1.msra.mxu0 %v3925
    %3927 = vmatprep.subr.mxu0 0.0
    %v3928 = vand.u32 %v27, 4294901760
    %v3929 = vsub.f32 %v27, %v3928
    %v3930 = vand.u32 %v3929, 4294901760
    %v3931 = vsub.f32 %v3929, %v3930
    %v3932 = vand.u32 %v3931, 4294901760
    %3933 = vmatpush1.msra.mxu0 %v3932
    %3934 = vmatprep.subr.mxu0 0.0
    %3935 = vmatpush2.msra.mxu0 0.0
    %3936 = vmatprep.subr.mxu0 0.0
    %3937 = vmatpush2.msra.mxu0 0.0
    %3938 = vmatprep.subr.mxu0 0.0
    %3939 = vmatpush2.msra.mxu0 0.0
    %3940 = vmatprep.subr.mxu0 0.0
    %3941 = vmatpush2.msra.mxu0 0.0
    %3942 = vmatprep.subr.mxu0 0.0
    %3943 = vmatpush2.msra.mxu0 0.0
    %3944 = vmatprep.subr.mxu0 0.0
    %3945 = vmatpush2.msra.mxu0 0.0
    %3946 = vmatprep.subr.mxu0 0.0
    %3947 = vmatpush2.msra.mxu0 0.0
    %3948 = vmatprep.subr.mxu0 0.0
    %3949 = vmatpush2.msra.mxu0 0.0
    %3950 = vmatprep.subr.mxu0 0.0
    %3951 = vmatpush2.msra.mxu0 0.0
    %3952 = vmatprep.subr.mxu0 0.0
    %3953 = vmatpush2.msra.mxu0 0.0
    %3954 = vmatprep.subr.mxu0 0.0
    %3955 = vmatpush2.msra.mxu0 0.0
    %3956 = vmatprep.subr.mxu0 0.0
    %3957 = vmatpush2.msra.mxu0 0.0
    %3958 = vmatprep.subr.mxu0 0.0
    %3959 = vmatpush2.msra.mxu0 0.0
    %3960 = vmatprep.subr.mxu0 0.0
    %3961 = vmatpush2.msra.mxu0 0.0
    %3962 = vmatprep.subr.mxu0 0.0
    %3963 = vmatpush2.msra.mxu0 0.0
    %3964 = vmatprep.subr.mxu0 0.0
    %3965 = vmatpush2.msra.mxu0 0.0
    %3966 = vmatprep.mubr.f32.mxu0 0.0
    %v3967 = vand.u32 %v3801, 4294901760
    %3968 = vmatmul.mubr.f32.gmra.mxu0 %v3967
    %v3969 = vpop.f32.mrf.mxu0
    %v3970 = vadd.f32 %v3879, %v3969
    %v3971 = vpop.f32.mrf.mxu0
    %3972 = vdwg.mxu0
    %3973 = vmatprep.subr.mxu0 0.0
    %3974 = vmatpush1.msra.mxu0 0.0
    %3975 = vmatprep.subr.mxu0 0.0
    %3976 = vmatpush1.msra.mxu0 0.0
    %3977 = vmatprep.subr.mxu0 0.0
    %3978 = vmatpush1.msra.mxu0 0.0
    %3979 = vmatprep.subr.mxu0 0.0
    %3980 = vmatpush1.msra.mxu0 0.0
    %3981 = vmatprep.subr.mxu0 0.0
    %3982 = vmatpush1.msra.mxu0 0.0
    %3983 = vmatprep.subr.mxu0 0.0
    %3984 = vmatpush1.msra.mxu0 0.0
    %3985 = vmatprep.subr.mxu0 0.0
    %3986 = vmatpush1.msra.mxu0 0.0
    %3987 = vmatprep.subr.mxu0 0.0
    %3988 = vmatpush1.msra.mxu0 0.0
    %3989 = vmatprep.subr.mxu0 0.0
    %3990 = vmatpush1.msra.mxu0 0.0
    %3991 = vmatprep.subr.mxu0 0.0
    %3992 = vmatpush1.msra.mxu0 0.0
    %3993 = vmatprep.subr.mxu0 0.0
    %3994 = vmatpush1.msra.mxu0 0.0
    %3995 = vmatprep.subr.mxu0 0.0
    %3996 = vmatpush1.msra.mxu0 0.0
    %3997 = vmatprep.subr.mxu0 0.0
    %v3998 = vand.u32 %v30, 4294901760
    %v3999 = vsub.f32 %v30, %v3998
    %4000 = vmatpush1.msra.mxu0 %v3999
    %4001 = vmatprep.subr.mxu0 0.0
    %v4002 = vand.u32 %v29, 4294901760
    %v4003 = vsub.f32 %v29, %v4002
    %4004 = vmatpush1.msra.mxu0 %v4003
    %4005 = vmatprep.subr.mxu0 0.0
    %v4006 = vand.u32 %v28, 4294901760
    %v4007 = vsub.f32 %v28, %v4006
    %4008 = vmatpush1.msra.mxu0 %v4007
    %4009 = vmatprep.subr.mxu0 0.0
    %v4010 = vand.u32 %v27, 4294901760
    %v4011 = vsub.f32 %v27, %v4010
    %4012 = vmatpush1.msra.mxu0 %v4011
    %4013 = vmatprep.subr.mxu0 0.0
    %4014 = vmatpush2.msra.mxu0 0.0
    %4015 = vmatprep.subr.mxu0 0.0
    %4016 = vmatpush2.msra.mxu0 0.0
    %4017 = vmatprep.subr.mxu0 0.0
    %4018 = vmatpush2.msra.mxu0 0.0
    %4019 = vmatprep.subr.mxu0 0.0
    %4020 = vmatpush2.msra.mxu0 0.0
    %4021 = vmatprep.subr.mxu0 0.0
    %4022 = vmatpush2.msra.mxu0 0.0
    %4023 = vmatprep.subr.mxu0 0.0
    %4024 = vmatpush2.msra.mxu0 0.0
    %4025 = vmatprep.subr.mxu0 0.0
    %4026 = vmatpush2.msra.mxu0 0.0
    %4027 = vmatprep.subr.mxu0 0.0
    %4028 = vmatpush2.msra.mxu0 0.0
    %4029 = vmatprep.subr.mxu0 0.0
    %4030 = vmatpush2.msra.mxu0 0.0
    %4031 = vmatprep.subr.mxu0 0.0
    %4032 = vmatpush2.msra.mxu0 0.0
    %4033 = vmatprep.subr.mxu0 0.0
    %4034 = vmatpush2.msra.mxu0 0.0
    %4035 = vmatprep.subr.mxu0 0.0
    %4036 = vmatpush2.msra.mxu0 0.0
    %4037 = vmatprep.subr.mxu0 0.0
    %4038 = vmatpush2.msra.mxu0 0.0
    %4039 = vmatprep.subr.mxu0 0.0
    %4040 = vmatpush2.msra.mxu0 0.0
    %4041 = vmatprep.subr.mxu0 0.0
    %4042 = vmatpush2.msra.mxu0 0.0
    %4043 = vmatprep.subr.mxu0 0.0
    %4044 = vmatpush2.msra.mxu0 0.0
    %4045 = vmatprep.mubr.f32.mxu0 0.0
    %v4046 = vand.u32 %v3801, 4294901760
    %v4047 = vsub.f32 %v3801, %v4046
    %4048 = vmatmul.mubr.f32.gmra.mxu0 %v4047
    %v4049 = vpop.f32.mrf.mxu0
    %v4050 = vadd.f32 %v3970, %v4049
    %v4051 = vpop.f32.mrf.mxu0
    %4052 = vdwg.mxu0
    %4053 = vmatprep.subr.mxu0 0.0
    %4054 = vmatpush1.msra.mxu0 0.0
    %4055 = vmatprep.subr.mxu0 0.0
    %4056 = vmatpush1.msra.mxu0 0.0
    %4057 = vmatprep.subr.mxu0 0.0
    %4058 = vmatpush1.msra.mxu0 0.0
    %4059 = vmatprep.subr.mxu0 0.0
    %4060 = vmatpush1.msra.mxu0 0.0
    %4061 = vmatprep.subr.mxu0 0.0
    %4062 = vmatpush1.msra.mxu0 0.0
    %4063 = vmatprep.subr.mxu0 0.0
    %4064 = vmatpush1.msra.mxu0 0.0
    %4065 = vmatprep.subr.mxu0 0.0
    %4066 = vmatpush1.msra.mxu0 0.0
    %4067 = vmatprep.subr.mxu0 0.0
    %4068 = vmatpush1.msra.mxu0 0.0
    %4069 = vmatprep.subr.mxu0 0.0
    %4070 = vmatpush1.msra.mxu0 0.0
    %4071 = vmatprep.subr.mxu0 0.0
    %4072 = vmatpush1.msra.mxu0 0.0
    %4073 = vmatprep.subr.mxu0 0.0
    %4074 = vmatpush1.msra.mxu0 0.0
    %4075 = vmatprep.subr.mxu0 0.0
    %4076 = vmatpush1.msra.mxu0 0.0
    %4077 = vmatprep.subr.mxu0 0.0
    %v4078 = vand.u32 %v30, 4294901760
    %4079 = vmatpush1.msra.mxu0 %v4078
    %4080 = vmatprep.subr.mxu0 0.0
    %v4081 = vand.u32 %v29, 4294901760
    %4082 = vmatpush1.msra.mxu0 %v4081
    %4083 = vmatprep.subr.mxu0 0.0
    %v4084 = vand.u32 %v28, 4294901760
    %4085 = vmatpush1.msra.mxu0 %v4084
    %4086 = vmatprep.subr.mxu0 0.0
    %v4087 = vand.u32 %v27, 4294901760
    %4088 = vmatpush1.msra.mxu0 %v4087
    %4089 = vmatprep.subr.mxu0 0.0
    %4090 = vmatpush2.msra.mxu0 0.0
    %4091 = vmatprep.subr.mxu0 0.0
    %4092 = vmatpush2.msra.mxu0 0.0
    %4093 = vmatprep.subr.mxu0 0.0
    %4094 = vmatpush2.msra.mxu0 0.0
    %4095 = vmatprep.subr.mxu0 0.0
    %4096 = vmatpush2.msra.mxu0 0.0
    %4097 = vmatprep.subr.mxu0 0.0
    %4098 = vmatpush2.msra.mxu0 0.0
    %4099 = vmatprep.subr.mxu0 0.0
    %4100 = vmatpush2.msra.mxu0 0.0
    %4101 = vmatprep.subr.mxu0 0.0
    %4102 = vmatpush2.msra.mxu0 0.0
    %4103 = vmatprep.subr.mxu0 0.0
    %4104 = vmatpush2.msra.mxu0 0.0
    %4105 = vmatprep.subr.mxu0 0.0
    %4106 = vmatpush2.msra.mxu0 0.0
    %4107 = vmatprep.subr.mxu0 0.0
    %4108 = vmatpush2.msra.mxu0 0.0
    %4109 = vmatprep.subr.mxu0 0.0
    %4110 = vmatpush2.msra.mxu0 0.0
    %4111 = vmatprep.subr.mxu0 0.0
    %4112 = vmatpush2.msra.mxu0 0.0
    %4113 = vmatprep.subr.mxu0 0.0
    %4114 = vmatpush2.msra.mxu0 0.0
    %4115 = vmatprep.subr.mxu0 0.0
    %4116 = vmatpush2.msra.mxu0 0.0
    %4117 = vmatprep.subr.mxu0 0.0
    %4118 = vmatpush2.msra.mxu0 0.0
    %4119 = vmatprep.subr.mxu0 0.0
    %4120 = vmatpush2.msra.mxu0 0.0
    %4121 = vmatprep.mubr.f32.mxu0 0.0
    %v4122 = vand.u32 %v3801, 4294901760
    %v4123 = vsub.f32 %v3801, %v4122
    %v4124 = vand.u32 %v4123, 4294901760
    %4125 = vmatmul.mubr.f32.gmra.mxu0 %v4124
    %v4126 = vpop.f32.mrf.mxu0
    %v4127 = vadd.f32 %v4050, %v4126
    %v4128 = vpop.f32.mrf.mxu0
    %4129 = vdwg.mxu0
    %4130 = vmatprep.subr.mxu0 0.0
    %4131 = vmatpush1.msra.mxu0 0.0
    %4132 = vmatprep.subr.mxu0 0.0
    %4133 = vmatpush1.msra.mxu0 0.0
    %4134 = vmatprep.subr.mxu0 0.0
    %4135 = vmatpush1.msra.mxu0 0.0
    %4136 = vmatprep.subr.mxu0 0.0
    %4137 = vmatpush1.msra.mxu0 0.0
    %4138 = vmatprep.subr.mxu0 0.0
    %4139 = vmatpush1.msra.mxu0 0.0
    %4140 = vmatprep.subr.mxu0 0.0
    %4141 = vmatpush1.msra.mxu0 0.0
    %4142 = vmatprep.subr.mxu0 0.0
    %4143 = vmatpush1.msra.mxu0 0.0
    %4144 = vmatprep.subr.mxu0 0.0
    %4145 = vmatpush1.msra.mxu0 0.0
    %4146 = vmatprep.subr.mxu0 0.0
    %4147 = vmatpush1.msra.mxu0 0.0
    %4148 = vmatprep.subr.mxu0 0.0
    %4149 = vmatpush1.msra.mxu0 0.0
    %4150 = vmatprep.subr.mxu0 0.0
    %4151 = vmatpush1.msra.mxu0 0.0
    %4152 = vmatprep.subr.mxu0 0.0
    %4153 = vmatpush1.msra.mxu0 0.0
    %4154 = vmatprep.subr.mxu0 0.0
    %v4155 = vand.u32 %v30, 4294901760
    %v4156 = vsub.f32 %v30, %v4155
    %v4157 = vand.u32 %v4156, 4294901760
    %4158 = vmatpush1.msra.mxu0 %v4157
    %4159 = vmatprep.subr.mxu0 0.0
    %v4160 = vand.u32 %v29, 4294901760
    %v4161 = vsub.f32 %v29, %v4160
    %v4162 = vand.u32 %v4161, 4294901760
    %4163 = vmatpush1.msra.mxu0 %v4162
    %4164 = vmatprep.subr.mxu0 0.0
    %v4165 = vand.u32 %v28, 4294901760
    %v4166 = vsub.f32 %v28, %v4165
    %v4167 = vand.u32 %v4166, 4294901760
    %4168 = vmatpush1.msra.mxu0 %v4167
    %4169 = vmatprep.subr.mxu0 0.0
    %v4170 = vand.u32 %v27, 4294901760
    %v4171 = vsub.f32 %v27, %v4170
    %v4172 = vand.u32 %v4171, 4294901760
    %4173 = vmatpush1.msra.mxu0 %v4172
    %4174 = vmatprep.subr.mxu0 0.0
    %4175 = vmatpush2.msra.mxu0 0.0
    %4176 = vmatprep.subr.mxu0 0.0
    %4177 = vmatpush2.msra.mxu0 0.0
    %4178 = vmatprep.subr.mxu0 0.0
    %4179 = vmatpush2.msra.mxu0 0.0
    %4180 = vmatprep.subr.mxu0 0.0
    %4181 = vmatpush2.msra.mxu0 0.0
    %4182 = vmatprep.subr.mxu0 0.0
    %4183 = vmatpush2.msra.mxu0 0.0
    %4184 = vmatprep.subr.mxu0 0.0
    %4185 = vmatpush2.msra.mxu0 0.0
    %4186 = vmatprep.subr.mxu0 0.0
    %4187 = vmatpush2.msra.mxu0 0.0
    %4188 = vmatprep.subr.mxu0 0.0
    %4189 = vmatpush2.msra.mxu0 0.0
    %4190 = vmatprep.subr.mxu0 0.0
    %4191 = vmatpush2.msra.mxu0 0.0
    %4192 = vmatprep.subr.mxu0 0.0
    %4193 = vmatpush2.msra.mxu0 0.0
    %4194 = vmatprep.subr.mxu0 0.0
    %4195 = vmatpush2.msra.mxu0 0.0
    %4196 = vmatprep.subr.mxu0 0.0
    %4197 = vmatpush2.msra.mxu0 0.0
    %4198 = vmatprep.subr.mxu0 0.0
    %4199 = vmatpush2.msra.mxu0 0.0
    %4200 = vmatprep.subr.mxu0 0.0
    %4201 = vmatpush2.msra.mxu0 0.0
    %4202 = vmatprep.subr.mxu0 0.0
    %4203 = vmatpush2.msra.mxu0 0.0
    %4204 = vmatprep.subr.mxu0 0.0
    %4205 = vmatpush2.msra.mxu0 0.0
    %4206 = vmatprep.mubr.f32.mxu0 0.0
    %v4207 = vand.u32 %v3801, 4294901760
    %4208 = vmatmul.mubr.f32.gmra.mxu0 %v4207
    %v4209 = vpop.f32.mrf.mxu0
    %v4210 = vadd.f32 %v4127, %v4209
    %v4211 = vpop.f32.mrf.mxu0
    %4212 = vdwg.mxu0
    %4213 = vmatprep.subr.mxu0 0.0
    %4214 = vmatpush1.msra.mxu0 0.0
    %4215 = vmatprep.subr.mxu0 0.0
    %4216 = vmatpush1.msra.mxu0 0.0
    %4217 = vmatprep.subr.mxu0 0.0
    %4218 = vmatpush1.msra.mxu0 0.0
    %4219 = vmatprep.subr.mxu0 0.0
    %4220 = vmatpush1.msra.mxu0 0.0
    %4221 = vmatprep.subr.mxu0 0.0
    %4222 = vmatpush1.msra.mxu0 0.0
    %4223 = vmatprep.subr.mxu0 0.0
    %4224 = vmatpush1.msra.mxu0 0.0
    %4225 = vmatprep.subr.mxu0 0.0
    %4226 = vmatpush1.msra.mxu0 0.0
    %4227 = vmatprep.subr.mxu0 0.0
    %4228 = vmatpush1.msra.mxu0 0.0
    %4229 = vmatprep.subr.mxu0 0.0
    %4230 = vmatpush1.msra.mxu0 0.0
    %4231 = vmatprep.subr.mxu0 0.0
    %4232 = vmatpush1.msra.mxu0 0.0
    %4233 = vmatprep.subr.mxu0 0.0
    %4234 = vmatpush1.msra.mxu0 0.0
    %4235 = vmatprep.subr.mxu0 0.0
    %4236 = vmatpush1.msra.mxu0 0.0
    %4237 = vmatprep.subr.mxu0 0.0
    %v4238 = vand.u32 %v30, 4294901760
    %4239 = vmatpush1.msra.mxu0 %v4238
    %4240 = vmatprep.subr.mxu0 0.0
    %v4241 = vand.u32 %v29, 4294901760
    %4242 = vmatpush1.msra.mxu0 %v4241
    %4243 = vmatprep.subr.mxu0 0.0
    %v4244 = vand.u32 %v28, 4294901760
    %4245 = vmatpush1.msra.mxu0 %v4244
    %4246 = vmatprep.subr.mxu0 0.0
    %v4247 = vand.u32 %v27, 4294901760
    %4248 = vmatpush1.msra.mxu0 %v4247
    %4249 = vmatprep.subr.mxu0 0.0
    %4250 = vmatpush2.msra.mxu0 0.0
    %4251 = vmatprep.subr.mxu0 0.0
    %4252 = vmatpush2.msra.mxu0 0.0
    %4253 = vmatprep.subr.mxu0 0.0
    %4254 = vmatpush2.msra.mxu0 0.0
    %4255 = vmatprep.subr.mxu0 0.0
    %4256 = vmatpush2.msra.mxu0 0.0
    %4257 = vmatprep.subr.mxu0 0.0
    %4258 = vmatpush2.msra.mxu0 0.0
    %4259 = vmatprep.subr.mxu0 0.0
    %4260 = vmatpush2.msra.mxu0 0.0
    %4261 = vmatprep.subr.mxu0 0.0
    %4262 = vmatpush2.msra.mxu0 0.0
    %4263 = vmatprep.subr.mxu0 0.0
    %4264 = vmatpush2.msra.mxu0 0.0
    %4265 = vmatprep.subr.mxu0 0.0
    %4266 = vmatpush2.msra.mxu0 0.0
    %4267 = vmatprep.subr.mxu0 0.0
    %4268 = vmatpush2.msra.mxu0 0.0
    %4269 = vmatprep.subr.mxu0 0.0
    %4270 = vmatpush2.msra.mxu0 0.0
    %4271 = vmatprep.subr.mxu0 0.0
    %4272 = vmatpush2.msra.mxu0 0.0
    %4273 = vmatprep.subr.mxu0 0.0
    %4274 = vmatpush2.msra.mxu0 0.0
    %4275 = vmatprep.subr.mxu0 0.0
    %4276 = vmatpush2.msra.mxu0 0.0
    %4277 = vmatprep.subr.mxu0 0.0
    %4278 = vmatpush2.msra.mxu0 0.0
    %4279 = vmatprep.subr.mxu0 0.0
    %4280 = vmatpush2.msra.mxu0 0.0
    %4281 = vmatprep.mubr.f32.mxu0 0.0
    %v4282 = vand.u32 %v3801, 4294901760
    %4283 = vmatmul.mubr.f32.gmra.mxu0 %v4282
    %v4284 = vpop.f32.mrf.mxu0
    %v4285 = vadd.f32 %v4210, %v4284
    %v4286 = vpop.f32.mrf.mxu0
    %4287 = vdwg.mxu0
    %v4289 = vrot.slane %v4285, 4
    %v4291 = vadd.f32 %v571, %v4289
    %v4292 = vmul.f32 %v4291, 0.5
    %v4293 = vtanh.pop %v4292
    %v4294 = vmul.f32 %v4293, 0.5
    %v4295 = vadd.f32 %v4294, 0.5
    %v4296 = vadd.f32 %v4285, %v1093
    %v4298 = vrot.slane %v4296, 4
    %4299 = vrot.lane.b32.xlu0 %v4298, 64
    %v4300 = vpop.permute.xlu0 %4299
    %v4302 = vmul.f32 %v4295, %v4300
    %4304 = vrot.lane.b32.xlu0 %v4302, 64
    %v4305 = vpop.permute.xlu0 %4304
    %v4307 = vadd.f32 %v571, %v4305
    %v4308 = vtanh.pop %v4307
    %v4309 = vsub.f32 1.0, %v4295
    %4311 = vrot.lane.b32.xlu0 %v4308, 96
    %v4312 = vpop.permute.xlu0 %4311
    %v4314 = vmul.f32 %v4309, %v4312
    %v4316 = vmul.f32 %v4295, %v3785
    %v4317 = vadd.f32 %v4314, %v4316
    %v4319 = vrot.slane %v4317, 6
    %4320 = vrot.lane.b32.xlu0 %v4319, 64
    %v4321 = vpop.permute.xlu0 %4320
    %v4323 = vmul.f32 %v571, %v4321
    %4325 = vrot.lane.b32.xlu0 %v4323, 32
    %v4326 = vpop.permute.xlu0 %4325
    %v4328 = vsel %vm2197, %v4326, 0.0
    %4329 = vadd.xlane.f32.xlu0 %v4328
    %v4330 = vpop.xlane.xlu0 %4329
    %v4331 = vadd.f32 %v4330, %v573
    %v4332 = vrot.slane %v4317, 4
    %4333 = vrot.lane.b32.xlu0 %v4332, 96
    %v4334 = vpop.permute.xlu0 %4333
    %v4335 = vsel %vm594, %v4334, 0
    %4337 = vmatprep.subr.mxu0 0.0
    %4338 = vmatpush1.msra.mxu0 0.0
    %4339 = vmatprep.subr.mxu0 0.0
    %4340 = vmatpush1.msra.mxu0 0.0
    %4341 = vmatprep.subr.mxu0 0.0
    %4342 = vmatpush1.msra.mxu0 0.0
    %4343 = vmatprep.subr.mxu0 0.0
    %4344 = vmatpush1.msra.mxu0 0.0
    %4345 = vmatprep.subr.mxu0 0.0
    %4346 = vmatpush1.msra.mxu0 0.0
    %4347 = vmatprep.subr.mxu0 0.0
    %4348 = vmatpush1.msra.mxu0 0.0
    %4349 = vmatprep.subr.mxu0 0.0
    %4350 = vmatpush1.msra.mxu0 0.0
    %4351 = vmatprep.subr.mxu0 0.0
    %4352 = vmatpush1.msra.mxu0 0.0
    %4353 = vmatprep.subr.mxu0 0.0
    %4354 = vmatpush1.msra.mxu0 0.0
    %4355 = vmatprep.subr.mxu0 0.0
    %4356 = vmatpush1.msra.mxu0 0.0
    %4357 = vmatprep.subr.mxu0 0.0
    %4358 = vmatpush1.msra.mxu0 0.0
    %4359 = vmatprep.subr.mxu0 0.0
    %4360 = vmatpush1.msra.mxu0 0.0
    %4361 = vmatprep.subr.mxu0 0.0
    %v4362 = vand.u32 %v30, 4294901760
    %4363 = vmatpush1.msra.mxu0 %v4362
    %4364 = vmatprep.subr.mxu0 0.0
    %v4365 = vand.u32 %v29, 4294901760
    %4366 = vmatpush1.msra.mxu0 %v4365
    %4367 = vmatprep.subr.mxu0 0.0
    %v4368 = vand.u32 %v28, 4294901760
    %4369 = vmatpush1.msra.mxu0 %v4368
    %4370 = vmatprep.subr.mxu0 0.0
    %v4371 = vand.u32 %v27, 4294901760
    %4372 = vmatpush1.msra.mxu0 %v4371
    %4373 = vmatprep.subr.mxu0 0.0
    %4374 = vmatpush2.msra.mxu0 0.0
    %4375 = vmatprep.subr.mxu0 0.0
    %4376 = vmatpush2.msra.mxu0 0.0
    %4377 = vmatprep.subr.mxu0 0.0
    %4378 = vmatpush2.msra.mxu0 0.0
    %4379 = vmatprep.subr.mxu0 0.0
    %4380 = vmatpush2.msra.mxu0 0.0
    %4381 = vmatprep.subr.mxu0 0.0
    %4382 = vmatpush2.msra.mxu0 0.0
    %4383 = vmatprep.subr.mxu0 0.0
    %4384 = vmatpush2.msra.mxu0 0.0
    %4385 = vmatprep.subr.mxu0 0.0
    %4386 = vmatpush2.msra.mxu0 0.0
    %4387 = vmatprep.subr.mxu0 0.0
    %4388 = vmatpush2.msra.mxu0 0.0
    %4389 = vmatprep.subr.mxu0 0.0
    %4390 = vmatpush2.msra.mxu0 0.0
    %4391 = vmatprep.subr.mxu0 0.0
    %4392 = vmatpush2.msra.mxu0 0.0
    %4393 = vmatprep.subr.mxu0 0.0
    %4394 = vmatpush2.msra.mxu0 0.0
    %4395 = vmatprep.subr.mxu0 0.0
    %4396 = vmatpush2.msra.mxu0 0.0
    %4397 = vmatprep.subr.mxu0 0.0
    %4398 = vmatpush2.msra.mxu0 0.0
    %4399 = vmatprep.subr.mxu0 0.0
    %4400 = vmatpush2.msra.mxu0 0.0
    %4401 = vmatprep.subr.mxu0 0.0
    %4402 = vmatpush2.msra.mxu0 0.0
    %4403 = vmatprep.subr.mxu0 0.0
    %4404 = vmatpush2.msra.mxu0 0.0
    %4405 = vmatprep.mubr.f32.mxu0 0.0
    %v4406 = vand.u32 %v4335, 4294901760
    %v4407 = vsub.f32 %v4335, %v4406
    %v4408 = vand.u32 %v4407, 4294901760
    %v4409 = vsub.f32 %v4407, %v4408
    %v4410 = vand.u32 %v4409, 4294901760
    %4411 = vmatmul.mubr.f32.gmra.mxu0 %v4410
    %v4412 = vpop.f32.mrf.mxu0
    %v4413 = vadd.f32 0.0, %v4412
    %v4414 = vpop.f32.mrf.mxu0
    %4415 = vdwg.mxu0
    %4416 = vmatprep.subr.mxu0 0.0
    %4417 = vmatpush1.msra.mxu0 0.0
    %4418 = vmatprep.subr.mxu0 0.0
    %4419 = vmatpush1.msra.mxu0 0.0
    %4420 = vmatprep.subr.mxu0 0.0
    %4421 = vmatpush1.msra.mxu0 0.0
    %4422 = vmatprep.subr.mxu0 0.0
    %4423 = vmatpush1.msra.mxu0 0.0
    %4424 = vmatprep.subr.mxu0 0.0
    %4425 = vmatpush1.msra.mxu0 0.0
    %4426 = vmatprep.subr.mxu0 0.0
    %4427 = vmatpush1.msra.mxu0 0.0
    %4428 = vmatprep.subr.mxu0 0.0
    %4429 = vmatpush1.msra.mxu0 0.0
    %4430 = vmatprep.subr.mxu0 0.0
    %4431 = vmatpush1.msra.mxu0 0.0
    %4432 = vmatprep.subr.mxu0 0.0
    %4433 = vmatpush1.msra.mxu0 0.0
    %4434 = vmatprep.subr.mxu0 0.0
    %4435 = vmatpush1.msra.mxu0 0.0
    %4436 = vmatprep.subr.mxu0 0.0
    %4437 = vmatpush1.msra.mxu0 0.0
    %4438 = vmatprep.subr.mxu0 0.0
    %4439 = vmatpush1.msra.mxu0 0.0
    %4440 = vmatprep.subr.mxu0 0.0
    %v4441 = vand.u32 %v30, 4294901760
    %v4442 = vsub.f32 %v30, %v4441
    %v4443 = vand.u32 %v4442, 4294901760
    %v4444 = vsub.f32 %v4442, %v4443
    %v4445 = vand.u32 %v4444, 4294901760
    %4446 = vmatpush1.msra.mxu0 %v4445
    %4447 = vmatprep.subr.mxu0 0.0
    %v4448 = vand.u32 %v29, 4294901760
    %v4449 = vsub.f32 %v29, %v4448
    %v4450 = vand.u32 %v4449, 4294901760
    %v4451 = vsub.f32 %v4449, %v4450
    %v4452 = vand.u32 %v4451, 4294901760
    %4453 = vmatpush1.msra.mxu0 %v4452
    %4454 = vmatprep.subr.mxu0 0.0
    %v4455 = vand.u32 %v28, 4294901760
    %v4456 = vsub.f32 %v28, %v4455
    %v4457 = vand.u32 %v4456, 4294901760
    %v4458 = vsub.f32 %v4456, %v4457
    %v4459 = vand.u32 %v4458, 4294901760
    %4460 = vmatpush1.msra.mxu0 %v4459
    %4461 = vmatprep.subr.mxu0 0.0
    %v4462 = vand.u32 %v27, 4294901760
    %v4463 = vsub.f32 %v27, %v4462
    %v4464 = vand.u32 %v4463, 4294901760
    %v4465 = vsub.f32 %v4463, %v4464
    %v4466 = vand.u32 %v4465, 4294901760
    %4467 = vmatpush1.msra.mxu0 %v4466
    %4468 = vmatprep.subr.mxu0 0.0
    %4469 = vmatpush2.msra.mxu0 0.0
    %4470 = vmatprep.subr.mxu0 0.0
    %4471 = vmatpush2.msra.mxu0 0.0
    %4472 = vmatprep.subr.mxu0 0.0
    %4473 = vmatpush2.msra.mxu0 0.0
    %4474 = vmatprep.subr.mxu0 0.0
    %4475 = vmatpush2.msra.mxu0 0.0
    %4476 = vmatprep.subr.mxu0 0.0
    %4477 = vmatpush2.msra.mxu0 0.0
    %4478 = vmatprep.subr.mxu0 0.0
    %4479 = vmatpush2.msra.mxu0 0.0
    %4480 = vmatprep.subr.mxu0 0.0
    %4481 = vmatpush2.msra.mxu0 0.0
    %4482 = vmatprep.subr.mxu0 0.0
    %4483 = vmatpush2.msra.mxu0 0.0
    %4484 = vmatprep.subr.mxu0 0.0
    %4485 = vmatpush2.msra.mxu0 0.0
    %4486 = vmatprep.subr.mxu0 0.0
    %4487 = vmatpush2.msra.mxu0 0.0
    %4488 = vmatprep.subr.mxu0 0.0
    %4489 = vmatpush2.msra.mxu0 0.0
    %4490 = vmatprep.subr.mxu0 0.0
    %4491 = vmatpush2.msra.mxu0 0.0
    %4492 = vmatprep.subr.mxu0 0.0
    %4493 = vmatpush2.msra.mxu0 0.0
    %4494 = vmatprep.subr.mxu0 0.0
    %4495 = vmatpush2.msra.mxu0 0.0
    %4496 = vmatprep.subr.mxu0 0.0
    %4497 = vmatpush2.msra.mxu0 0.0
    %4498 = vmatprep.subr.mxu0 0.0
    %4499 = vmatpush2.msra.mxu0 0.0
    %4500 = vmatprep.mubr.f32.mxu0 0.0
    %v4501 = vand.u32 %v4335, 4294901760
    %4502 = vmatmul.mubr.f32.gmra.mxu0 %v4501
    %v4503 = vpop.f32.mrf.mxu0
    %v4504 = vadd.f32 %v4413, %v4503
    %v4505 = vpop.f32.mrf.mxu0
    %4506 = vdwg.mxu0
    %4507 = vmatprep.subr.mxu0 0.0
    %4508 = vmatpush1.msra.mxu0 0.0
    %4509 = vmatprep.subr.mxu0 0.0
    %4510 = vmatpush1.msra.mxu0 0.0
    %4511 = vmatprep.subr.mxu0 0.0
    %4512 = vmatpush1.msra.mxu0 0.0
    %4513 = vmatprep.subr.mxu0 0.0
    %4514 = vmatpush1.msra.mxu0 0.0
    %4515 = vmatprep.subr.mxu0 0.0
    %4516 = vmatpush1.msra.mxu0 0.0
    %4517 = vmatprep.subr.mxu0 0.0
    %4518 = vmatpush1.msra.mxu0 0.0
    %4519 = vmatprep.subr.mxu0 0.0
    %4520 = vmatpush1.msra.mxu0 0.0
    %4521 = vmatprep.subr.mxu0 0.0
    %4522 = vmatpush1.msra.mxu0 0.0
    %4523 = vmatprep.subr.mxu0 0.0
    %4524 = vmatpush1.msra.mxu0 0.0
    %4525 = vmatprep.subr.mxu0 0.0
    %4526 = vmatpush1.msra.mxu0 0.0
    %4527 = vmatprep.subr.mxu0 0.0
    %4528 = vmatpush1.msra.mxu0 0.0
    %4529 = vmatprep.subr.mxu0 0.0
    %4530 = vmatpush1.msra.mxu0 0.0
    %4531 = vmatprep.subr.mxu0 0.0
    %v4532 = vand.u32 %v30, 4294901760
    %v4533 = vsub.f32 %v30, %v4532
    %4534 = vmatpush1.msra.mxu0 %v4533
    %4535 = vmatprep.subr.mxu0 0.0
    %v4536 = vand.u32 %v29, 4294901760
    %v4537 = vsub.f32 %v29, %v4536
    %4538 = vmatpush1.msra.mxu0 %v4537
    %4539 = vmatprep.subr.mxu0 0.0
    %v4540 = vand.u32 %v28, 4294901760
    %v4541 = vsub.f32 %v28, %v4540
    %4542 = vmatpush1.msra.mxu0 %v4541
    %4543 = vmatprep.subr.mxu0 0.0
    %v4544 = vand.u32 %v27, 4294901760
    %v4545 = vsub.f32 %v27, %v4544
    %4546 = vmatpush1.msra.mxu0 %v4545
    %4547 = vmatprep.subr.mxu0 0.0
    %4548 = vmatpush2.msra.mxu0 0.0
    %4549 = vmatprep.subr.mxu0 0.0
    %4550 = vmatpush2.msra.mxu0 0.0
    %4551 = vmatprep.subr.mxu0 0.0
    %4552 = vmatpush2.msra.mxu0 0.0
    %4553 = vmatprep.subr.mxu0 0.0
    %4554 = vmatpush2.msra.mxu0 0.0
    %4555 = vmatprep.subr.mxu0 0.0
    %4556 = vmatpush2.msra.mxu0 0.0
    %4557 = vmatprep.subr.mxu0 0.0
    %4558 = vmatpush2.msra.mxu0 0.0
    %4559 = vmatprep.subr.mxu0 0.0
    %4560 = vmatpush2.msra.mxu0 0.0
    %4561 = vmatprep.subr.mxu0 0.0
    %4562 = vmatpush2.msra.mxu0 0.0
    %4563 = vmatprep.subr.mxu0 0.0
    %4564 = vmatpush2.msra.mxu0 0.0
    %4565 = vmatprep.subr.mxu0 0.0
    %4566 = vmatpush2.msra.mxu0 0.0
    %4567 = vmatprep.subr.mxu0 0.0
    %4568 = vmatpush2.msra.mxu0 0.0
    %4569 = vmatprep.subr.mxu0 0.0
    %4570 = vmatpush2.msra.mxu0 0.0
    %4571 = vmatprep.subr.mxu0 0.0
    %4572 = vmatpush2.msra.mxu0 0.0
    %4573 = vmatprep.subr.mxu0 0.0
    %4574 = vmatpush2.msra.mxu0 0.0
    %4575 = vmatprep.subr.mxu0 0.0
    %4576 = vmatpush2.msra.mxu0 0.0
    %4577 = vmatprep.subr.mxu0 0.0
    %4578 = vmatpush2.msra.mxu0 0.0
    %4579 = vmatprep.mubr.f32.mxu0 0.0
    %v4580 = vand.u32 %v4335, 4294901760
    %v4581 = vsub.f32 %v4335, %v4580
    %4582 = vmatmul.mubr.f32.gmra.mxu0 %v4581
    %v4583 = vpop.f32.mrf.mxu0
    %v4584 = vadd.f32 %v4504, %v4583
    %v4585 = vpop.f32.mrf.mxu0
    %4586 = vdwg.mxu0
    %4587 = vmatprep.subr.mxu0 0.0
    %4588 = vmatpush1.msra.mxu0 0.0
    %4589 = vmatprep.subr.mxu0 0.0
    %4590 = vmatpush1.msra.mxu0 0.0
    %4591 = vmatprep.subr.mxu0 0.0
    %4592 = vmatpush1.msra.mxu0 0.0
    %4593 = vmatprep.subr.mxu0 0.0
    %4594 = vmatpush1.msra.mxu0 0.0
    %4595 = vmatprep.subr.mxu0 0.0
    %4596 = vmatpush1.msra.mxu0 0.0
    %4597 = vmatprep.subr.mxu0 0.0
    %4598 = vmatpush1.msra.mxu0 0.0
    %4599 = vmatprep.subr.mxu0 0.0
    %4600 = vmatpush1.msra.mxu0 0.0
    %4601 = vmatprep.subr.mxu0 0.0
    %4602 = vmatpush1.msra.mxu0 0.0
    %4603 = vmatprep.subr.mxu0 0.0
    %4604 = vmatpush1.msra.mxu0 0.0
    %4605 = vmatprep.subr.mxu0 0.0
    %4606 = vmatpush1.msra.mxu0 0.0
    %4607 = vmatprep.subr.mxu0 0.0
    %4608 = vmatpush1.msra.mxu0 0.0
    %4609 = vmatprep.subr.mxu0 0.0
    %4610 = vmatpush1.msra.mxu0 0.0
    %4611 = vmatprep.subr.mxu0 0.0
    %v4612 = vand.u32 %v30, 4294901760
    %4613 = vmatpush1.msra.mxu0 %v4612
    %4614 = vmatprep.subr.mxu0 0.0
    %v4615 = vand.u32 %v29, 4294901760
    %4616 = vmatpush1.msra.mxu0 %v4615
    %4617 = vmatprep.subr.mxu0 0.0
    %v4618 = vand.u32 %v28, 4294901760
    %4619 = vmatpush1.msra.mxu0 %v4618
    %4620 = vmatprep.subr.mxu0 0.0
    %v4621 = vand.u32 %v27, 4294901760
    %4622 = vmatpush1.msra.mxu0 %v4621
    %4623 = vmatprep.subr.mxu0 0.0
    %4624 = vmatpush2.msra.mxu0 0.0
    %4625 = vmatprep.subr.mxu0 0.0
    %4626 = vmatpush2.msra.mxu0 0.0
    %4627 = vmatprep.subr.mxu0 0.0
    %4628 = vmatpush2.msra.mxu0 0.0
    %4629 = vmatprep.subr.mxu0 0.0
    %4630 = vmatpush2.msra.mxu0 0.0
    %4631 = vmatprep.subr.mxu0 0.0
    %4632 = vmatpush2.msra.mxu0 0.0
    %4633 = vmatprep.subr.mxu0 0.0
    %4634 = vmatpush2.msra.mxu0 0.0
    %4635 = vmatprep.subr.mxu0 0.0
    %4636 = vmatpush2.msra.mxu0 0.0
    %4637 = vmatprep.subr.mxu0 0.0
    %4638 = vmatpush2.msra.mxu0 0.0
    %4639 = vmatprep.subr.mxu0 0.0
    %4640 = vmatpush2.msra.mxu0 0.0
    %4641 = vmatprep.subr.mxu0 0.0
    %4642 = vmatpush2.msra.mxu0 0.0
    %4643 = vmatprep.subr.mxu0 0.0
    %4644 = vmatpush2.msra.mxu0 0.0
    %4645 = vmatprep.subr.mxu0 0.0
    %4646 = vmatpush2.msra.mxu0 0.0
    %4647 = vmatprep.subr.mxu0 0.0
    %4648 = vmatpush2.msra.mxu0 0.0
    %4649 = vmatprep.subr.mxu0 0.0
    %4650 = vmatpush2.msra.mxu0 0.0
    %4651 = vmatprep.subr.mxu0 0.0
    %4652 = vmatpush2.msra.mxu0 0.0
    %4653 = vmatprep.subr.mxu0 0.0
    %4654 = vmatpush2.msra.mxu0 0.0
    %4655 = vmatprep.mubr.f32.mxu0 0.0
    %v4656 = vand.u32 %v4335, 4294901760
    %v4657 = vsub.f32 %v4335, %v4656
    %v4658 = vand.u32 %v4657, 4294901760
    %4659 = vmatmul.mubr.f32.gmra.mxu0 %v4658
    %v4660 = vpop.f32.mrf.mxu0
    %v4661 = vadd.f32 %v4584, %v4660
    %v4662 = vpop.f32.mrf.mxu0
    %4663 = vdwg.mxu0
    %4664 = vmatprep.subr.mxu0 0.0
    %4665 = vmatpush1.msra.mxu0 0.0
    %4666 = vmatprep.subr.mxu0 0.0
    %4667 = vmatpush1.msra.mxu0 0.0
    %4668 = vmatprep.subr.mxu0 0.0
    %4669 = vmatpush1.msra.mxu0 0.0
    %4670 = vmatprep.subr.mxu0 0.0
    %4671 = vmatpush1.msra.mxu0 0.0
    %4672 = vmatprep.subr.mxu0 0.0
    %4673 = vmatpush1.msra.mxu0 0.0
    %4674 = vmatprep.subr.mxu0 0.0
    %4675 = vmatpush1.msra.mxu0 0.0
    %4676 = vmatprep.subr.mxu0 0.0
    %4677 = vmatpush1.msra.mxu0 0.0
    %4678 = vmatprep.subr.mxu0 0.0
    %4679 = vmatpush1.msra.mxu0 0.0
    %4680 = vmatprep.subr.mxu0 0.0
    %4681 = vmatpush1.msra.mxu0 0.0
    %4682 = vmatprep.subr.mxu0 0.0
    %4683 = vmatpush1.msra.mxu0 0.0
    %4684 = vmatprep.subr.mxu0 0.0
    %4685 = vmatpush1.msra.mxu0 0.0
    %4686 = vmatprep.subr.mxu0 0.0
    %4687 = vmatpush1.msra.mxu0 0.0
    %4688 = vmatprep.subr.mxu0 0.0
    %v4689 = vand.u32 %v30, 4294901760
    %v4690 = vsub.f32 %v30, %v4689
    %v4691 = vand.u32 %v4690, 4294901760
    %4692 = vmatpush1.msra.mxu0 %v4691
    %4693 = vmatprep.subr.mxu0 0.0
    %v4694 = vand.u32 %v29, 4294901760
    %v4695 = vsub.f32 %v29, %v4694
    %v4696 = vand.u32 %v4695, 4294901760
    %4697 = vmatpush1.msra.mxu0 %v4696
    %4698 = vmatprep.subr.mxu0 0.0
    %v4699 = vand.u32 %v28, 4294901760
    %v4700 = vsub.f32 %v28, %v4699
    %v4701 = vand.u32 %v4700, 4294901760
    %4702 = vmatpush1.msra.mxu0 %v4701
    %4703 = vmatprep.subr.mxu0 0.0
    %v4704 = vand.u32 %v27, 4294901760
    %v4705 = vsub.f32 %v27, %v4704
    %v4706 = vand.u32 %v4705, 4294901760
    %4707 = vmatpush1.msra.mxu0 %v4706
    %4708 = vmatprep.subr.mxu0 0.0
    %4709 = vmatpush2.msra.mxu0 0.0
    %4710 = vmatprep.subr.mxu0 0.0
    %4711 = vmatpush2.msra.mxu0 0.0
    %4712 = vmatprep.subr.mxu0 0.0
    %4713 = vmatpush2.msra.mxu0 0.0
    %4714 = vmatprep.subr.mxu0 0.0
    %4715 = vmatpush2.msra.mxu0 0.0
    %4716 = vmatprep.subr.mxu0 0.0
    %4717 = vmatpush2.msra.mxu0 0.0
    %4718 = vmatprep.subr.mxu0 0.0
    %4719 = vmatpush2.msra.mxu0 0.0
    %4720 = vmatprep.subr.mxu0 0.0
    %4721 = vmatpush2.msra.mxu0 0.0
    %4722 = vmatprep.subr.mxu0 0.0
    %4723 = vmatpush2.msra.mxu0 0.0
    %4724 = vmatprep.subr.mxu0 0.0
    %4725 = vmatpush2.msra.mxu0 0.0
    %4726 = vmatprep.subr.mxu0 0.0
    %4727 = vmatpush2.msra.mxu0 0.0
    %4728 = vmatprep.subr.mxu0 0.0
    %4729 = vmatpush2.msra.mxu0 0.0
    %4730 = vmatprep.subr.mxu0 0.0
    %4731 = vmatpush2.msra.mxu0 0.0
    %4732 = vmatprep.subr.mxu0 0.0
    %4733 = vmatpush2.msra.mxu0 0.0
    %4734 = vmatprep.subr.mxu0 0.0
    %4735 = vmatpush2.msra.mxu0 0.0
    %4736 = vmatprep.subr.mxu0 0.0
    %4737 = vmatpush2.msra.mxu0 0.0
    %4738 = vmatprep.subr.mxu0 0.0
    %4739 = vmatpush2.msra.mxu0 0.0
    %4740 = vmatprep.mubr.f32.mxu0 0.0
    %v4741 = vand.u32 %v4335, 4294901760
    %4742 = vmatmul.mubr.f32.gmra.mxu0 %v4741
    %v4743 = vpop.f32.mrf.mxu0
    %v4744 = vadd.f32 %v4661, %v4743
    %v4745 = vpop.f32.mrf.mxu0
    %4746 = vdwg.mxu0
    %4747 = vmatprep.subr.mxu0 0.0
    %4748 = vmatpush1.msra.mxu0 0.0
    %4749 = vmatprep.subr.mxu0 0.0
    %4750 = vmatpush1.msra.mxu0 0.0
    %4751 = vmatprep.subr.mxu0 0.0
    %4752 = vmatpush1.msra.mxu0 0.0
    %4753 = vmatprep.subr.mxu0 0.0
    %4754 = vmatpush1.msra.mxu0 0.0
    %4755 = vmatprep.subr.mxu0 0.0
    %4756 = vmatpush1.msra.mxu0 0.0
    %4757 = vmatprep.subr.mxu0 0.0
    %4758 = vmatpush1.msra.mxu0 0.0
    %4759 = vmatprep.subr.mxu0 0.0
    %4760 = vmatpush1.msra.mxu0 0.0
    %4761 = vmatprep.subr.mxu0 0.0
    %4762 = vmatpush1.msra.mxu0 0.0
    %4763 = vmatprep.subr.mxu0 0.0
    %4764 = vmatpush1.msra.mxu0 0.0
    %4765 = vmatprep.subr.mxu0 0.0
    %4766 = vmatpush1.msra.mxu0 0.0
    %4767 = vmatprep.subr.mxu0 0.0
    %4768 = vmatpush1.msra.mxu0 0.0
    %4769 = vmatprep.subr.mxu0 0.0
    %4770 = vmatpush1.msra.mxu0 0.0
    %4771 = vmatprep.subr.mxu0 0.0
    %v4772 = vand.u32 %v30, 4294901760
    %4773 = vmatpush1.msra.mxu0 %v4772
    %4774 = vmatprep.subr.mxu0 0.0
    %v4775 = vand.u32 %v29, 4294901760
    %4776 = vmatpush1.msra.mxu0 %v4775
    %4777 = vmatprep.subr.mxu0 0.0
    %v4778 = vand.u32 %v28, 4294901760
    %4779 = vmatpush1.msra.mxu0 %v4778
    %4780 = vmatprep.subr.mxu0 0.0
    %v4781 = vand.u32 %v27, 4294901760
    %4782 = vmatpush1.msra.mxu0 %v4781
    %4783 = vmatprep.subr.mxu0 0.0
    %4784 = vmatpush2.msra.mxu0 0.0
    %4785 = vmatprep.subr.mxu0 0.0
    %4786 = vmatpush2.msra.mxu0 0.0
    %4787 = vmatprep.subr.mxu0 0.0
    %4788 = vmatpush2.msra.mxu0 0.0
    %4789 = vmatprep.subr.mxu0 0.0
    %4790 = vmatpush2.msra.mxu0 0.0
    %4791 = vmatprep.subr.mxu0 0.0
    %4792 = vmatpush2.msra.mxu0 0.0
    %4793 = vmatprep.subr.mxu0 0.0
    %4794 = vmatpush2.msra.mxu0 0.0
    %4795 = vmatprep.subr.mxu0 0.0
    %4796 = vmatpush2.msra.mxu0 0.0
    %4797 = vmatprep.subr.mxu0 0.0
    %4798 = vmatpush2.msra.mxu0 0.0
    %4799 = vmatprep.subr.mxu0 0.0
    %4800 = vmatpush2.msra.mxu0 0.0
    %4801 = vmatprep.subr.mxu0 0.0
    %4802 = vmatpush2.msra.mxu0 0.0
    %4803 = vmatprep.subr.mxu0 0.0
    %4804 = vmatpush2.msra.mxu0 0.0
    %4805 = vmatprep.subr.mxu0 0.0
    %4806 = vmatpush2.msra.mxu0 0.0
    %4807 = vmatprep.subr.mxu0 0.0
    %4808 = vmatpush2.msra.mxu0 0.0
    %4809 = vmatprep.subr.mxu0 0.0
    %4810 = vmatpush2.msra.mxu0 0.0
    %4811 = vmatprep.subr.mxu0 0.0
    %4812 = vmatpush2.msra.mxu0 0.0
    %4813 = vmatprep.subr.mxu0 0.0
    %4814 = vmatpush2.msra.mxu0 0.0
    %4815 = vmatprep.mubr.f32.mxu0 0.0
    %v4816 = vand.u32 %v4335, 4294901760
    %4817 = vmatmul.mubr.f32.gmra.mxu0 %v4816
    %v4818 = vpop.f32.mrf.mxu0
    %v4819 = vadd.f32 %v4744, %v4818
    %v4820 = vpop.f32.mrf.mxu0
    %4821 = vdwg.mxu0
    %v4823 = vrot.slane %v4819, 2
    %v4825 = vadd.f32 %v571, %v4823
    %v4826 = vmul.f32 %v4825, 0.5
    %v4827 = vtanh.pop %v4826
    %v4828 = vmul.f32 %v4827, 0.5
    %v4829 = vadd.f32 %v4828, 0.5
    %v4830 = vadd.f32 %v4819, %v1093
    %v4832 = vrot.slane %v4830, 2
    %4833 = vrot.lane.b32.xlu0 %v4832, 64
    %v4834 = vpop.permute.xlu0 %4833
    %v4836 = vmul.f32 %v4829, %v4834
    %4838 = vrot.lane.b32.xlu0 %v4836, 64
    %v4839 = vpop.permute.xlu0 %4838
    %v4841 = vadd.f32 %v571, %v4839
    %v4842 = vtanh.pop %v4841
    %v4843 = vsub.f32 1.0, %v4829
    %4845 = vrot.lane.b32.xlu0 %v4842, 96
    %v4846 = vpop.permute.xlu0 %4845
    %v4848 = vmul.f32 %v4843, %v4846
    %v4850 = vmul.f32 %v4829, %v4319
    %v4851 = vadd.f32 %v4848, %v4850
    %4853 = vrot.lane.b32.xlu0 %v4851, 96
    %v4854 = vpop.permute.xlu0 %4853
    %4856 = vst.msk [vmem:[#allocation4 - $0x6] sm:$0xc0] %vm2197, %v4854
    %v4858 = vrot.slane %v1132, 2
    %4859 = vrot.lane.b32.xlu0 %v4858, 1
    %v4860 = vpop.permute.xlu0 %4859
    %v4863 = vrot.slane %v1666, 4
    %4864 = vrot.lane.b32.xlu0 %v4863, 2
    %v4865 = vpop.permute.xlu0 %4864
    %v4868 = vrot.slane %v2201, 6
    %4869 = vrot.lane.b32.xlu0 %v4868, 3
    %v4870 = vpop.permute.xlu0 %4869
    %4873 = vrot.lane.b32.xlu0 %v2735, 4
    %v4874 = vpop.permute.xlu0 %4873
    %v4877 = vrot.slane %v3264, 2
    %4878 = vrot.lane.b32.xlu0 %v4877, 5
    %v4879 = vpop.permute.xlu0 %4878
    %v4882 = vrot.slane %v3797, 4
    %4883 = vrot.lane.b32.xlu0 %v4882, 6
    %v4884 = vpop.permute.xlu0 %4883
    %v4887 = vrot.slane %v4331, 6
    %4888 = vrot.lane.b32.xlu0 %v4887, 7
    %v4889 = vpop.permute.xlu0 %4888
    %vm4891 = vcmask 7168
    %v4892 = vsel %vm4891, %v593, %v4860
    %vm4893 = vcmask 15360
    %v4894 = vsel %vm4893, %v4892, %v4865
    %vm4895 = vcmask 23552
    %v4896 = vsel %vm4895, %v4894, %v4870
    %v4897 = vsel %vm49, %v4896, %v4874
    %vm4898 = vcmask 39936
    %v4899 = vsel %vm4898, %v4897, %v4879
    %vm4900 = vcmask 48128
    %v4901 = vsel %vm4900, %v4899, %v4884
    %vm4902 = vcmask 56320
    %v4903 = vsel %vm4902, %v4901, %v4889
    %vm4904 = vcmask 58368
    %4905 = vst.msk [vmem:[#allocation2] sm:$0x3] %vm4904, %v4903
    // Predicated region
    $region26: #{value_synapse_forward.1} parent=1 // pred_check
      _
    $region27: #{value_synapse_forward.1} parent=1 // pred_check_branch
      %4907 = sbr.rel (0) target = $region29
    $region28: #{value_synapse_forward.1} parent=1 // pred_region
      %s4909 = ssub.s32 32, 32
      %4910 = vsyncadd [#allocation3], %s4909
      %s4912 = sshll.u32 [#allocation2], 4
      %s4913 = int_to_ptr.vmem [resolvable:$true] %s4912
      %4915 = dma.vmem_to_hbm [thread:$0]  %s4913, 32, %s6, [#allocation3]
    $region29: #{value_synapse_forward.1} parent=1 // pred_fallthru
      _
    // Predicated region
    $region30: #{value_synapse_forward.1} parent=1 // pred_check
      _
    $region31: #{value_synapse_forward.1} parent=1 // pred_check_branch
      %4917 = sbr.rel (0) target = $region33
    $region32: #{value_synapse_forward.1} parent=1 // pred_region
      %s4919 = ssub.s32 32, 32
      %4920 = vsyncadd [#allocation5], %s4919
      %s4922 = sshll.u32 [#allocation4], 4
      %s4923 = int_to_ptr.vmem [resolvable:$true] %s4922
      %4925 = dma.vmem_to_hbm [thread:$0]  %s4923, 32, %s7, [#allocation5]
    $region33: #{value_synapse_forward.1} parent=1 // pred_fallthru
      _
    // Predicated region
    $region34: #{value_synapse_forward.1} parent=1 // pred_check
      _
    $region35: #{value_synapse_forward.1} parent=1 // pred_check_branch
      %4927 = sbr.rel (0) target = $region37
    $region36: #{value_synapse_forward.1} parent=1 // pred_region
      %4928 = dma.done [#allocation3], 32
    $region37: #{value_synapse_forward.1} parent=1 // pred_fallthru
      _
    // Predicated region
    $region38: #{value_synapse_forward.1} parent=1 // pred_check
      _
    $region39: #{value_synapse_forward.1} parent=1 // pred_check_branch
      %4930 = sbr.rel (0) target = $region41
    $region40: #{value_synapse_forward.1} parent=1 // pred_region
      %4931 = dma.done [#allocation5], 32
    $region41: #{value_synapse_forward.1} parent=1 // pred_fallthru
      _
    %4932 = vsyncpa [#allocation3], 1
    %4933 = vsyncpa [#allocation5], 1

</llo_original>
